<compile_context>
chip_gen: v7x
topology: tpu7x:2x2x1
jax: 0.10.0
libtpu: 0.0.40
codegen_flags: <defaults>
</compile_context>

<pallas_src>
import functools

import jax
import jax.numpy as jnp
from jax.experimental import pallas as pl
from jax.experimental.pallas import tpu as pltpu

EPS = 1e-5
COUT = 64      # conv1 output channels (fixed by the module)
CPAD = 128     # lane-padded channel width used inside the kernel


# ----------------------------- Pallas kernel -----------------------------

def _out_block_kernel(x_ref, w1_ref, bn_s_ref, bn_b_ref, w2_ref, b2_ref, kt_ref,
                      o_ref, xpad_ref, *, Hin, Win, Cin, Q, R):
    f32 = jnp.float32
    bf16 = jnp.bfloat16

    # ---- padded input built in VMEM; zero only the halo strips --------------
    xpad_ref[:, 0:1, :, :] = jnp.zeros((1, 1, Win + 2, Cin), f32)
    xpad_ref[:, Hin + 1:Hin + 2, :, :] = jnp.zeros((1, 1, Win + 2, Cin), f32)
    xpad_ref[:, :, 0:1, :] = jnp.zeros((1, Hin + 2, 1, Cin), f32)
    xpad_ref[:, :, Win + 1:Win + 2, :] = jnp.zeros((1, Hin + 2, 1, Cin), f32)
    xpad_ref[:, 1:Hin + 1, 1:Win + 1, :] = x_ref[...]

    # ---- conv1 (bias=False): 9 shifted (Q,Cin)x(Cin,CPAD) bf16 dots ---------
    #      accumulated in f32 (no im2col scratch, no misaligned patch stores).
    acc = jnp.zeros((Q, CPAD), f32)
    t = 0
    for dy in range(3):
        for dx in range(3):
            tap = xpad_ref[0, dy:dy + Hin, dx:dx + Win, :].reshape(Q, Cin)
            acc = acc + jnp.dot(tap.astype(bf16),
                                w1_ref[t * Cin:(t + 1) * Cin, :],
                                preferred_element_type=f32)
            t += 1

    # ---- folded BatchNorm + ReLU (padded lanes have scale=bias=0 -> stay 0) -
    y = jnp.maximum(acc * bn_s_ref[...] + bn_b_ref[...], 0.0)        # (Q, CPAD)

    # ---- conv2 (1x1, 64 -> 1) at LOW resolution: VPU channel reduce ---------
    #      (valid because the 1x1 conv commutes with the linear spatial resize;
    #       the bias is added after the resize, as in the PyTorch graph).
    cb = jnp.sum(y * w2_ref[...], axis=-1)[None, :]                  # (1, Q)

    # ---- bilinear(align_corners=True) resize = ONE matmul against the
    #      precomputed Kronecker operator kt[(p,q),(h,w)] = Ry[p,h]*Rx[q,w] ----
    out = jax.lax.dot_general(cb, kt_ref[...], (((1,), (0,)), ((), ())),
                              preferred_element_type=f32)            # (1, R)
    o_ref[...] = (out + b2_ref[...]).reshape(1, 1, R)


# ----------------------------- wrapper -----------------------------

def _interp_matrix(n_in, n_out):
    """align_corners=True 1-D bilinear weights, shape (n_in, n_out)."""
    scale = (n_in - 1) / (n_out - 1) if n_out > 1 else 0.0
    src = jnp.arange(n_out, dtype=jnp.float32) * scale               # (n_out,)
    p = jnp.arange(n_in, dtype=jnp.float32)                          # (n_in,)
    return jnp.maximum(0.0, 1.0 - jnp.abs(src[None, :] - p[:, None]))


def out_block_forward(prep, x, H, W):
    """x: NHWC (B, Hin, Win, Cin) f32; returns NHWC (B, H, W, 1)."""
    B, Hin, Win, Cin = x.shape
    Q, R = Hin * Win, H * W

    # Constant-folded by XLA (H/W static, shapes static): no in-kernel iota math.
    Ry = _interp_matrix(Hin, H)                                      # (Hin, H)
    Rx = _interp_matrix(Win, W)                                      # (Win, W)
    kt = (Ry[:, None, :, None] * Rx[None, :, None, :]).reshape(Q, R).astype(jnp.float32)

    # VMEM budget from actual buffer sizes (double-buffered I/O) + headroom.
    buf_bytes = (
        2 * (Hin * Win * Cin * 4)            # x block
        + 2 * (9 * Cin * CPAD * 2)           # w1 (bf16)
        + 2 * 3 * (CPAD * 4)                 # bn scale / bias / w2
        + 2 * (Q * R * 4)                    # interpolation operator
        + 2 * (R * 4)                        # output block
        + (Hin + 2) * (Win + 2) * Cin * 4    # padded-input scratch
    )
    vmem_limit = buf_bytes + (6 << 20)       # headroom for acc/y/tap temporaries

    kern = functools.partial(_out_block_kernel, Hin=Hin, Win=Win, Cin=Cin,
                             Q=Q, R=R)
    out = pl.pallas_call(
        kern,
        out_shape=jax.ShapeDtypeStruct((B, 1, R), jnp.float32),
        grid=(B,),                                           # v7x: one b per TC
        in_specs=[
            pl.BlockSpec((1, Hin, Win, Cin), lambda b: (b, 0, 0, 0)),  # x
            pl.BlockSpec((9 * Cin, CPAD), lambda b: (0, 0)),           # w1
            pl.BlockSpec((1, CPAD), lambda b: (0, 0)),                 # bn scale
            pl.BlockSpec((1, CPAD), lambda b: (0, 0)),                 # bn bias
            pl.BlockSpec((1, CPAD), lambda b: (0, 0)),                 # w2
            pl.BlockSpec((1, 1), lambda b: (0, 0)),                    # b2
            pl.BlockSpec((Q, R), lambda b: (0, 0)),                    # kt
        ],
        out_specs=pl.BlockSpec((1, 1, R), lambda b: (b, 0, 0)),
        scratch_shapes=[
            pltpu.VMEM((1, Hin + 2, Win + 2, Cin), jnp.float32),       # padded x
        ],
        compiler_params=pltpu.CompilerParams(
            dimension_semantics=("parallel",),
            vmem_limit_bytes=int(vmem_limit)),
    )(x, prep["w1"], prep["bn_scale"], prep["bn_bias"], prep["w2"], prep["b2"],
      kt)
    # Single-channel NHWC output (== PyTorch (B, 1, H, W) in NCHW).
    return out.reshape(B, H, W, 1)


# ----------------------------- parameter prep -----------------------------

def fold_and_pad_params(raw, Cin):
    """Fold eval-mode BatchNorm into conv1 and lane-pad channels 64 -> 128."""
    scale = raw["bn_gamma"] / jnp.sqrt(raw["bn_var"] + EPS)          # (64,)
    bias = raw["bn_beta"] - raw["bn_mean"] * scale                   # (64,)
    w1 = raw["conv1_w"].reshape(9 * Cin, COUT)                       # HWIO -> taps
    w1p = jnp.zeros((9 * Cin, CPAD), jnp.float32).at[:, :COUT].set(w1)
    sp = jnp.zeros((1, CPAD), jnp.float32).at[0, :COUT].set(scale)
    bp = jnp.zeros((1, CPAD), jnp.float32).at[0, :COUT].set(bias)
    w2p = jnp.zeros((1, CPAD), jnp.float32).at[0, :COUT].set(raw["conv2_w"])
    return dict(w1=w1p.astype(jnp.bfloat16), bn_scale=sp, bn_bias=bp, w2=w2p,
                b2=jnp.reshape(raw["conv2_b"], (1, 1)).astype(jnp.float32))


# ----------------------------- main -----------------------------

if __name__ == "__main__":
    key = jax.random.PRNGKey(0)
    k = jax.random.split(key, 8)

    B, Hin, Win, Cin = 2, 16, 16, 64     # small DCTNet-like decoder feature
    H, W = 32, 32                        # interpolate target size

    x = jax.random.normal(k[0], (B, Hin, Win, Cin), jnp.float32)
    raw = dict(
        conv1_w=jax.random.normal(k[1], (3, 3, Cin, COUT), jnp.float32) * 0.05,
        bn_gamma=1.0 + 0.1 * jax.random.normal(k[2], (COUT,), jnp.float32),
        bn_beta=0.1 * jax.random.normal(k[3], (COUT,), jnp.float32),
        bn_mean=0.1 * jax.random.normal(k[4], (COUT,), jnp.float32),
        bn_var=jnp.abs(1.0 + 0.1 * jax.random.normal(k[5], (COUT,), jnp.float32)),
        conv2_w=jax.random.normal(k[6], (COUT,), jnp.float32) * 0.05,
        conv2_b=jax.random.normal(k[7], (), jnp.float32) * 0.05,
    )
    prep = fold_and_pad_params(raw, Cin)

    fwd = jax.jit(out_block_forward, static_argnums=(2, 3))
    out = fwd(prep, x, H, W)
    jax.block_until_ready(out)
    print("KERNEL_OK")
</pallas_src>

<mosaic_0001>
module attributes {stable_mosaic.version = 11 : i64} {
  func.func @_out_block_kernel(%arg0: i32, %arg1: memref<1x16x16x64xf32, #tpu.memory_space<vmem>>, %arg2: memref<576x128xbf16, #tpu.memory_space<vmem>>, %arg3: memref<1x128xf32, #tpu.memory_space<vmem>>, %arg4: memref<1x128xf32, #tpu.memory_space<vmem>>, %arg5: memref<1x128xf32, #tpu.memory_space<vmem>>, %arg6: memref<1x1xf32, #tpu.memory_space<vmem>>, %arg7: memref<256x1024xf32, #tpu.memory_space<vmem>>, %arg8: memref<1x1x1024xf32, #tpu.memory_space<vmem>>, %arg9: memref<1x18x18x64xf32, #tpu.memory_space<vmem>>) attributes {dimension_semantics = [#tpu.dimension_semantics<parallel>], iteration_bounds = array<i64: 2>, scalar_prefetch = 0 : i64, scratch_operands = 1 : i64, tpu.core_type = #tpu.core_type<tc>, window_params = [{transform_indices = @transform_0, window_bounds = array<i64: 1, 16, 16, 64>}, {pipeline_mode = #tpu.pipeline_mode<synchronous>, transform_indices = @transform_1, window_bounds = array<i64: 576, 128>}, {pipeline_mode = #tpu.pipeline_mode<synchronous>, transform_indices = @transform_2, window_bounds = array<i64: 1, 128>}, {pipeline_mode = #tpu.pipeline_mode<synchronous>, transform_indices = @transform_3, window_bounds = array<i64: 1, 128>}, {pipeline_mode = #tpu.pipeline_mode<synchronous>, transform_indices = @transform_4, window_bounds = array<i64: 1, 128>}, {pipeline_mode = #tpu.pipeline_mode<synchronous>, transform_indices = @transform_5, window_bounds = array<i64: 1, 1>}, {pipeline_mode = #tpu.pipeline_mode<synchronous>, transform_indices = @transform_6, window_bounds = array<i64: 256, 1024>}, {transform_indices = @transform_7, window_bounds = array<i64: 1, 1, 1024>}]} {
    %cst = arith.constant 0.000000e+00 : f32
    %0 = vector.broadcast %cst : f32 to vector<1x1x18x64xf32>
    %c0 = arith.constant 0 : index
    %c0_0 = arith.constant 0 : index
    %c0_1 = arith.constant 0 : index
    %c0_2 = arith.constant 0 : index
    %1 = vector.load %arg9[%c0, %c0_0, %c0_1, %c0_2] : memref<1x18x18x64xf32, #tpu.memory_space<vmem>>, vector<1x1x18x64xf32>
    tpu.vector_store %arg9[%c0, %c0_0, %c0_1, %c0_2], %0 {strides = array<i32>} : memref<1x18x18x64xf32, #tpu.memory_space<vmem>>, vector<1x1x18x64xf32>,
    %cst_3 = arith.constant 0.000000e+00 : f32
    %2 = vector.broadcast %cst_3 : f32 to vector<1x1x18x64xf32>
    %c0_4 = arith.constant 0 : index
    %c17 = arith.constant 17 : index
    %c0_5 = arith.constant 0 : index
    %c0_6 = arith.constant 0 : index
    %3 = vector.load %arg9[%c0_4, %c17, %c0_5, %c0_6] : memref<1x18x18x64xf32, #tpu.memory_space<vmem>>, vector<1x1x18x64xf32>
    tpu.vector_store %arg9[%c0_4, %c17, %c0_5, %c0_6], %2 {strides = array<i32>} : memref<1x18x18x64xf32, #tpu.memory_space<vmem>>, vector<1x1x18x64xf32>,
    %cst_7 = arith.constant 0.000000e+00 : f32
    %4 = vector.broadcast %cst_7 : f32 to vector<1x18x1x64xf32>
    %c0_8 = arith.constant 0 : index
    %c0_9 = arith.constant 0 : index
    %c0_10 = arith.constant 0 : index
    %c0_11 = arith.constant 0 : index
    %5 = vector.load %arg9[%c0_8, %c0_9, %c0_10, %c0_11] : memref<1x18x18x64xf32, #tpu.memory_space<vmem>>, vector<1x18x1x64xf32>
    tpu.vector_store %arg9[%c0_8, %c0_9, %c0_10, %c0_11], %4 {strides = array<i32>} : memref<1x18x18x64xf32, #tpu.memory_space<vmem>>, vector<1x18x1x64xf32>,
    %cst_12 = arith.constant 0.000000e+00 : f32
    %6 = vector.broadcast %cst_12 : f32 to vector<1x18x1x64xf32>
    %c0_13 = arith.constant 0 : index
    %c0_14 = arith.constant 0 : index
    %c17_15 = arith.constant 17 : index
    %c0_16 = arith.constant 0 : index
    %7 = vector.load %arg9[%c0_13, %c0_14, %c17_15, %c0_16] : memref<1x18x18x64xf32, #tpu.memory_space<vmem>>, vector<1x18x1x64xf32>
    tpu.vector_store %arg9[%c0_13, %c0_14, %c17_15, %c0_16], %6 {strides = array<i32>} : memref<1x18x18x64xf32, #tpu.memory_space<vmem>>, vector<1x18x1x64xf32>,
    %c0_17 = arith.constant 0 : index
    %c0_18 = arith.constant 0 : index
    %c0_19 = arith.constant 0 : index
    %c0_20 = arith.constant 0 : index
    %8 = vector.load %arg1[%c0_17, %c0_18, %c0_19, %c0_20] : memref<1x16x16x64xf32, #tpu.memory_space<vmem>>, vector<1x16x16x64xf32>
    %c0_21 = arith.constant 0 : index
    %c1 = arith.constant 1 : index
    %c1_22 = arith.constant 1 : index
    %c0_23 = arith.constant 0 : index
    %9 = vector.load %arg9[%c0_21, %c1, %c1_22, %c0_23] : memref<1x18x18x64xf32, #tpu.memory_space<vmem>>, vector<1x16x16x64xf32>
    tpu.vector_store %arg9[%c0_21, %c1, %c1_22, %c0_23], %8 {strides = array<i32>} : memref<1x18x18x64xf32, #tpu.memory_space<vmem>>, vector<1x16x16x64xf32>,
    %cst_24 = arith.constant 0.000000e+00 : f32
    %10 = vector.broadcast %cst_24 : f32 to vector<256x128xf32>
    %c0_25 = arith.constant 0 : index
    %c0_26 = arith.constant 0 : index
    %c0_27 = arith.constant 0 : index
    %c0_28 = arith.constant 0 : index
    %11 = vector.load %arg9[%c0_25, %c0_26, %c0_27, %c0_28] : memref<1x18x18x64xf32, #tpu.memory_space<vmem>>, vector<1x16x16x64xf32>
    %12 = vector.shape_cast %11 : vector<1x16x16x64xf32> to vector<16x16x64xf32>
    %13 = vector.shape_cast %12 : vector<16x16x64xf32> to vector<256x64xf32>
    %14 = arith.truncf %13 : vector<256x64xf32> to vector<256x64xbf16>
    %c0_29 = arith.constant 0 : index
    %c0_30 = arith.constant 0 : index
    %15 = vector.load %arg2[%c0_29, %c0_30] : memref<576x128xbf16, #tpu.memory_space<vmem>>, vector<64x128xbf16>
    %cst_31 = arith.constant dense<0.000000e+00> : vector<256x128xf32>
    %16 = tpu.matmul %14, %15, %cst_31 {dimension_numbers = #tpu.dot_dimension_numbers<[1], [0], [0], [1], [0, 0, 1, 1], [], []>} : vector<256x64xbf16>, vector<64x128xbf16>, vector<256x128xf32> -> vector<256x128xf32>
    %17 = arith.addf %10, %16 : vector<256x128xf32>
    %c0_32 = arith.constant 0 : index
    %c0_33 = arith.constant 0 : index
    %c1_34 = arith.constant 1 : index
    %c0_35 = arith.constant 0 : index
    %18 = vector.load %arg9[%c0_32, %c0_33, %c1_34, %c0_35] : memref<1x18x18x64xf32, #tpu.memory_space<vmem>>, vector<1x16x16x64xf32>
    %19 = vector.shape_cast %18 : vector<1x16x16x64xf32> to vector<16x16x64xf32>
    %20 = vector.shape_cast %19 : vector<16x16x64xf32> to vector<256x64xf32>
    %21 = arith.truncf %20 : vector<256x64xf32> to vector<256x64xbf16>
    %c64 = arith.constant 64 : index
    %c0_36 = arith.constant 0 : index
    %22 = vector.load %arg2[%c64, %c0_36] : memref<576x128xbf16, #tpu.memory_space<vmem>>, vector<64x128xbf16>
    %cst_37 = arith.constant dense<0.000000e+00> : vector<256x128xf32>
    %23 = tpu.matmul %21, %22, %cst_37 {dimension_numbers = #tpu.dot_dimension_numbers<[1], [0], [0], [1], [0, 0, 1, 1], [], []>} : vector<256x64xbf16>, vector<64x128xbf16>, vector<256x128xf32> -> vector<256x128xf32>
    %24 = arith.addf %17, %23 : vector<256x128xf32>
    %c0_38 = arith.constant 0 : index
    %c0_39 = arith.constant 0 : index
    %c2 = arith.constant 2 : index
    %c0_40 = arith.constant 0 : index
    %25 = vector.load %arg9[%c0_38, %c0_39, %c2, %c0_40] : memref<1x18x18x64xf32, #tpu.memory_space<vmem>>, vector<1x16x16x64xf32>
    %26 = vector.shape_cast %25 : vector<1x16x16x64xf32> to vector<16x16x64xf32>
    %27 = vector.shape_cast %26 : vector<16x16x64xf32> to vector<256x64xf32>
    %28 = arith.truncf %27 : vector<256x64xf32> to vector<256x64xbf16>
    %c128 = arith.constant 128 : index
    %c0_41 = arith.constant 0 : index
    %29 = vector.load %arg2[%c128, %c0_41] : memref<576x128xbf16, #tpu.memory_space<vmem>>, vector<64x128xbf16>
    %cst_42 = arith.constant dense<0.000000e+00> : vector<256x128xf32>
    %30 = tpu.matmul %28, %29, %cst_42 {dimension_numbers = #tpu.dot_dimension_numbers<[1], [0], [0], [1], [0, 0, 1, 1], [], []>} : vector<256x64xbf16>, vector<64x128xbf16>, vector<256x128xf32> -> vector<256x128xf32>
    %31 = arith.addf %24, %30 : vector<256x128xf32>
    %c0_43 = arith.constant 0 : index
    %c1_44 = arith.constant 1 : index
    %c0_45 = arith.constant 0 : index
    %c0_46 = arith.constant 0 : index
    %32 = vector.load %arg9[%c0_43, %c1_44, %c0_45, %c0_46] : memref<1x18x18x64xf32, #tpu.memory_space<vmem>>, vector<1x16x16x64xf32>
    %33 = vector.shape_cast %32 : vector<1x16x16x64xf32> to vector<16x16x64xf32>
    %34 = vector.shape_cast %33 : vector<16x16x64xf32> to vector<256x64xf32>
    %35 = arith.truncf %34 : vector<256x64xf32> to vector<256x64xbf16>
    %c192 = arith.constant 192 : index
    %c0_47 = arith.constant 0 : index
    %36 = vector.load %arg2[%c192, %c0_47] : memref<576x128xbf16, #tpu.memory_space<vmem>>, vector<64x128xbf16>
    %cst_48 = arith.constant dense<0.000000e+00> : vector<256x128xf32>
    %37 = tpu.matmul %35, %36, %cst_48 {dimension_numbers = #tpu.dot_dimension_numbers<[1], [0], [0], [1], [0, 0, 1, 1], [], []>} : vector<256x64xbf16>, vector<64x128xbf16>, vector<256x128xf32> -> vector<256x128xf32>
    %38 = arith.addf %31, %37 : vector<256x128xf32>
    %c0_49 = arith.constant 0 : index
    %c1_50 = arith.constant 1 : index
    %c1_51 = arith.constant 1 : index
    %c0_52 = arith.constant 0 : index
    %39 = vector.load %arg9[%c0_49, %c1_50, %c1_51, %c0_52] : memref<1x18x18x64xf32, #tpu.memory_space<vmem>>, vector<1x16x16x64xf32>
    %40 = vector.shape_cast %39 : vector<1x16x16x64xf32> to vector<16x16x64xf32>
    %41 = vector.shape_cast %40 : vector<16x16x64xf32> to vector<256x64xf32>
    %42 = arith.truncf %41 : vector<256x64xf32> to vector<256x64xbf16>
    %c256 = arith.constant 256 : index
    %c0_53 = arith.constant 0 : index
    %43 = vector.load %arg2[%c256, %c0_53] : memref<576x128xbf16, #tpu.memory_space<vmem>>, vector<64x128xbf16>
    %cst_54 = arith.constant dense<0.000000e+00> : vector<256x128xf32>
    %44 = tpu.matmul %42, %43, %cst_54 {dimension_numbers = #tpu.dot_dimension_numbers<[1], [0], [0], [1], [0, 0, 1, 1], [], []>} : vector<256x64xbf16>, vector<64x128xbf16>, vector<256x128xf32> -> vector<256x128xf32>
    %45 = arith.addf %38, %44 : vector<256x128xf32>
    %c0_55 = arith.constant 0 : index
    %c1_56 = arith.constant 1 : index
    %c2_57 = arith.constant 2 : index
    %c0_58 = arith.constant 0 : index
    %46 = vector.load %arg9[%c0_55, %c1_56, %c2_57, %c0_58] : memref<1x18x18x64xf32, #tpu.memory_space<vmem>>, vector<1x16x16x64xf32>
    %47 = vector.shape_cast %46 : vector<1x16x16x64xf32> to vector<16x16x64xf32>
    %48 = vector.shape_cast %47 : vector<16x16x64xf32> to vector<256x64xf32>
    %49 = arith.truncf %48 : vector<256x64xf32> to vector<256x64xbf16>
    %c320 = arith.constant 320 : index
    %c0_59 = arith.constant 0 : index
    %50 = vector.load %arg2[%c320, %c0_59] : memref<576x128xbf16, #tpu.memory_space<vmem>>, vector<64x128xbf16>
    %cst_60 = arith.constant dense<0.000000e+00> : vector<256x128xf32>
    %51 = tpu.matmul %49, %50, %cst_60 {dimension_numbers = #tpu.dot_dimension_numbers<[1], [0], [0], [1], [0, 0, 1, 1], [], []>} : vector<256x64xbf16>, vector<64x128xbf16>, vector<256x128xf32> -> vector<256x128xf32>
    %52 = arith.addf %45, %51 : vector<256x128xf32>
    %c0_61 = arith.constant 0 : index
    %c2_62 = arith.constant 2 : index
    %c0_63 = arith.constant 0 : index
    %c0_64 = arith.constant 0 : index
    %53 = vector.load %arg9[%c0_61, %c2_62, %c0_63, %c0_64] : memref<1x18x18x64xf32, #tpu.memory_space<vmem>>, vector<1x16x16x64xf32>
    %54 = vector.shape_cast %53 : vector<1x16x16x64xf32> to vector<16x16x64xf32>
    %55 = vector.shape_cast %54 : vector<16x16x64xf32> to vector<256x64xf32>
    %56 = arith.truncf %55 : vector<256x64xf32> to vector<256x64xbf16>
    %c384 = arith.constant 384 : index
    %c0_65 = arith.constant 0 : index
    %57 = vector.load %arg2[%c384, %c0_65] : memref<576x128xbf16, #tpu.memory_space<vmem>>, vector<64x128xbf16>
    %cst_66 = arith.constant dense<0.000000e+00> : vector<256x128xf32>
    %58 = tpu.matmul %56, %57, %cst_66 {dimension_numbers = #tpu.dot_dimension_numbers<[1], [0], [0], [1], [0, 0, 1, 1], [], []>} : vector<256x64xbf16>, vector<64x128xbf16>, vector<256x128xf32> -> vector<256x128xf32>
    %59 = arith.addf %52, %58 : vector<256x128xf32>
    %c0_67 = arith.constant 0 : index
    %c2_68 = arith.constant 2 : index
    %c1_69 = arith.constant 1 : index
    %c0_70 = arith.constant 0 : index
    %60 = vector.load %arg9[%c0_67, %c2_68, %c1_69, %c0_70] : memref<1x18x18x64xf32, #tpu.memory_space<vmem>>, vector<1x16x16x64xf32>
    %61 = vector.shape_cast %60 : vector<1x16x16x64xf32> to vector<16x16x64xf32>
    %62 = vector.shape_cast %61 : vector<16x16x64xf32> to vector<256x64xf32>
    %63 = arith.truncf %62 : vector<256x64xf32> to vector<256x64xbf16>
    %c448 = arith.constant 448 : index
    %c0_71 = arith.constant 0 : index
    %64 = vector.load %arg2[%c448, %c0_71] : memref<576x128xbf16, #tpu.memory_space<vmem>>, vector<64x128xbf16>
    %cst_72 = arith.constant dense<0.000000e+00> : vector<256x128xf32>
    %65 = tpu.matmul %63, %64, %cst_72 {dimension_numbers = #tpu.dot_dimension_numbers<[1], [0], [0], [1], [0, 0, 1, 1], [], []>} : vector<256x64xbf16>, vector<64x128xbf16>, vector<256x128xf32> -> vector<256x128xf32>
    %66 = arith.addf %59, %65 : vector<256x128xf32>
    %c0_73 = arith.constant 0 : index
    %c2_74 = arith.constant 2 : index
    %c2_75 = arith.constant 2 : index
    %c0_76 = arith.constant 0 : index
    %67 = vector.load %arg9[%c0_73, %c2_74, %c2_75, %c0_76] : memref<1x18x18x64xf32, #tpu.memory_space<vmem>>, vector<1x16x16x64xf32>
    %68 = vector.shape_cast %67 : vector<1x16x16x64xf32> to vector<16x16x64xf32>
    %69 = vector.shape_cast %68 : vector<16x16x64xf32> to vector<256x64xf32>
    %70 = arith.truncf %69 : vector<256x64xf32> to vector<256x64xbf16>
    %c512 = arith.constant 512 : index
    %c0_77 = arith.constant 0 : index
    %71 = vector.load %arg2[%c512, %c0_77] : memref<576x128xbf16, #tpu.memory_space<vmem>>, vector<64x128xbf16>
    %cst_78 = arith.constant dense<0.000000e+00> : vector<256x128xf32>
    %72 = tpu.matmul %70, %71, %cst_78 {dimension_numbers = #tpu.dot_dimension_numbers<[1], [0], [0], [1], [0, 0, 1, 1], [], []>} : vector<256x64xbf16>, vector<64x128xbf16>, vector<256x128xf32> -> vector<256x128xf32>
    %73 = arith.addf %66, %72 : vector<256x128xf32>
    %c0_79 = arith.constant 0 : index
    %c0_80 = arith.constant 0 : index
    %74 = vector.load %arg3[%c0_79, %c0_80] : memref<1x128xf32, #tpu.memory_space<vmem>>, vector<1x128xf32>
    %75 = vector.broadcast %74 : vector<1x128xf32> to vector<256x128xf32>
    %76 = arith.mulf %73, %75 : vector<256x128xf32>
    %c0_81 = arith.constant 0 : index
    %c0_82 = arith.constant 0 : index
    %77 = vector.load %arg4[%c0_81, %c0_82] : memref<1x128xf32, #tpu.memory_space<vmem>>, vector<1x128xf32>
    %78 = vector.broadcast %77 : vector<1x128xf32> to vector<256x128xf32>
    %79 = arith.addf %76, %78 : vector<256x128xf32>
    %cst_83 = arith.constant 0.000000e+00 : f32
    %80 = vector.broadcast %cst_83 : f32 to vector<256x128xf32>
    %81 = arith.maximumf %79, %80 : vector<256x128xf32>
    %c0_84 = arith.constant 0 : index
    %c0_85 = arith.constant 0 : index
    %82 = vector.load %arg5[%c0_84, %c0_85] : memref<1x128xf32, #tpu.memory_space<vmem>>, vector<1x128xf32>
    %83 = vector.broadcast %82 : vector<1x128xf32> to vector<256x128xf32>
    %84 = arith.mulf %81, %83 : vector<256x128xf32>
    %cst_86 = arith.constant dense<0.000000e+00> : vector<256xf32>
    %85 = vector.multi_reduction <add>, %84, %cst_86 [1] : vector<256x128xf32> to vector<256xf32>
    %86 = vector.shape_cast %85 : vector<256xf32> to vector<1x256xf32>
    %c0_87 = arith.constant 0 : index
    %c0_88 = arith.constant 0 : index
    %87 = vector.load %arg7[%c0_87, %c0_88] : memref<256x1024xf32, #tpu.memory_space<vmem>>, vector<256x1024xf32>
    %cst_89 = arith.constant dense<0.000000e+00> : vector<1x1024xf32>
    %88 = tpu.matmul %86, %87, %cst_89 {dimension_numbers = #tpu.dot_dimension_numbers<[1], [0], [0], [1], [0, 0, 1, 1], [], []>} : vector<1x256xf32>, vector<256x1024xf32>, vector<1x1024xf32> -> vector<1x1024xf32>
    %c0_90 = arith.constant 0 : index
    %c0_91 = arith.constant 0 : index
    %89 = vector.load %arg6[%c0_90, %c0_91] : memref<1x1xf32, #tpu.memory_space<vmem>>, vector<1x1xf32>
    %90 = vector.broadcast %89 : vector<1x1xf32> to vector<1x1024xf32>
    %91 = arith.addf %88, %90 : vector<1x1024xf32>
    %92 = vector.shape_cast %91 : vector<1x1024xf32> to vector<1x1x1024xf32>
    %c0_92 = arith.constant 0 : index
    %c0_93 = arith.constant 0 : index
    %c0_94 = arith.constant 0 : index
    %93 = vector.load %arg8[%c0_92, %c0_93, %c0_94] : memref<1x1x1024xf32, #tpu.memory_space<vmem>>, vector<1x1x1024xf32>
    tpu.vector_store %arg8[%c0_92, %c0_93, %c0_94], %92 {strides = array<i32>} : memref<1x1x1024xf32, #tpu.memory_space<vmem>>, vector<1x1x1024xf32>,
    return
  }
  func.func @transform_0(%arg0: i32) -> (i32, i32, i32, i32) {
    %c0_i32 = arith.constant 0 : i32
    %c0_i32_0 = arith.constant 0 : i32
    %c0_i32_1 = arith.constant 0 : i32
    %c0_i32_2 = arith.constant 0 : i32
    return %arg0, %c0_i32, %c0_i32_0, %c0_i32_1 : i32, i32, i32, i32
  }
  func.func @transform_1(%arg0: i32) -> (i32, i32) {
    %c0_i32 = arith.constant 0 : i32
    %c0_i32_0 = arith.constant 0 : i32
    %c0_i32_1 = arith.constant 0 : i32
    return %c0_i32, %c0_i32_0 : i32, i32
  }
  func.func @transform_2(%arg0: i32) -> (i32, i32) {
    %c0_i32 = arith.constant 0 : i32
    %c0_i32_0 = arith.constant 0 : i32
    %c0_i32_1 = arith.constant 0 : i32
    return %c0_i32, %c0_i32_0 : i32, i32
  }
  func.func @transform_3(%arg0: i32) -> (i32, i32) {
    %c0_i32 = arith.constant 0 : i32
    %c0_i32_0 = arith.constant 0 : i32
    %c0_i32_1 = arith.constant 0 : i32
    return %c0_i32, %c0_i32_0 : i32, i32
  }
  func.func @transform_4(%arg0: i32) -> (i32, i32) {
    %c0_i32 = arith.constant 0 : i32
    %c0_i32_0 = arith.constant 0 : i32
    %c0_i32_1 = arith.constant 0 : i32
    return %c0_i32, %c0_i32_0 : i32, i32
  }
  func.func @transform_5(%arg0: i32) -> (i32, i32) {
    %c0_i32 = arith.constant 0 : i32
    %c0_i32_0 = arith.constant 0 : i32
    %c0_i32_1 = arith.constant 0 : i32
    return %c0_i32, %c0_i32_0 : i32, i32
  }
  func.func @transform_6(%arg0: i32) -> (i32, i32) {
    %c0_i32 = arith.constant 0 : i32
    %c0_i32_0 = arith.constant 0 : i32
    %c0_i32_1 = arith.constant 0 : i32
    return %c0_i32, %c0_i32_0 : i32, i32
  }
  func.func @transform_7(%arg0: i32) -> (i32, i32, i32) {
    %c0_i32 = arith.constant 0 : i32
    %c0_i32_0 = arith.constant 0 : i32
    %c0_i32_1 = arith.constant 0 : i32
    return %arg0, %c0_i32, %c0_i32_0 : i32, i32, i32
  }
}

</mosaic_0001>

<llo_original>
// kernel: out_block_forward.1
$region0: #{out_block_forward.1}
  #allocation0 [shape = 'u32[]', space=smem, size = 0x4, offset = 0x4, fixed_abs, tag = 'smem constant byte address 0x4 - core index']
  #allocation1 [shape = 'u32[144,128]{1,0:T(1,128)}', space=vmem, size = 0x12000, scoped, tag = 'internal scratch']
  #allocation2 [shape = 'f32[1,18,18,64]{3,2,1,0:T(8,128)}', space=vmem, size = 0x36000, scoped, tag = 'scratch operand']
  #allocation3 [shape = 'f32[1,1]{1,0:T(1,128)S(1)}', space=vmem, size = 0x200, scoped, tag = 'scoped memory for out_block_forward.1']
  %s0 = inlined_call_operand.vmem [shape: f32[2,16,16,64], index: 0, kind: input, shape index: {}]
  %s1 = inlined_call_operand.vmem [shape: bf16[576,128], index: 1, kind: input, shape index: {}]
  %s2 = inlined_call_operand.vmem [shape: f32[1,128], index: 2, kind: input, shape index: {}]
  %s3 = inlined_call_operand.vmem [shape: f32[1,128], index: 3, kind: input, shape index: {}]
  %s4 = inlined_call_operand.vmem [shape: f32[1,128], index: 4, kind: input, shape index: {}]
  %s5 = inlined_call_operand.<no memory space> [shape: f32[1,1], index: 5, kind: input, shape index: {}]
  %s6 = inlined_call_operand.vmem [shape: f32[256,1024], index: 6, kind: input, shape index: {}]
  %s7 = inlined_call_operand.vmem [shape: f32[2,1,1024], index: 7, kind: output, shape index: {}]
  %s8 = sld [smem:[#allocation0]]
  $region61: #{out_block_forward.1} parent=0
    _
  %s10 = ssub.s32 1, %s8
  %s11 = scalar_select 0, %s10, %s8
  %v12 = vstv %s5
  %13 = vst [vmem:[#allocation3] sm:$0x1] %v12
  loop: start=0, step=1, limit=4
  $region2: #{out_block_forward.1} parent=0 // loop_pre_header
    _
  $region3: #{out_block_forward.1} parent=0 // loop_header
    %s15 = sphi 0, %s19
    %p16 = scmp.ge.s32.totalorder %s15, 4
    %s25 = sphi 0, %s27
    %s28 = sphi 0, %s25
    %s29 = sphi 0, %s28
    %s45 = sphi 0, %s29
    %s49 = sphi 0, %s49
    %s51 = sphi 0, %s49
    %s52 = sphi 0, %s51
    %s66 = sphi 0, %s52
    %s70 = sphi 0, %s70
    %s72 = sphi 0, %s70
    %s73 = sphi 0, %s72
    %s87 = sphi 0, %s73
    %s91 = sphi 0, %s91
    %s93 = sphi 0, %s91
    %s94 = sphi 0, %s93
    %s108 = sphi 0, %s94
    %s112 = sphi 0, %s112
    %s114 = sphi 0, %s112
    %s115 = sphi 0, %s114
    %s129 = sphi 0, %s115
    %s133 = sphi 0, %s133
    %s135 = sphi 0, %s133
    %s136 = sphi 0, %s135
    %s150 = sphi 0, %s136
    %s154 = sphi 0, %s154
    %s156 = sphi 0, %s154
    %s157 = sphi 0, %s156
    %s171 = sphi 0, %s157
    %s177 = sphi 0, %s179
    %s180 = sphi 0, %s177
    %s181 = sphi 0, %s180
    %s197 = sphi 0, %s181
  $region4: #{out_block_forward.1} parent=0 // loop_header_branch
    %18 = sbr.rel (%p16) target = $region8
  $region5: #{out_block_forward.1} parent=0 // loop_body
    %s20 = ssub.s32 %s15, 1
    %s21 = ssub.s32 %s15, 2
    %s22 = sadd.s32 %s15, 1
    %s23 = ssub.s32 %s15, %s22
    %p24 = scmp.eq.s32.totalorder %s23, 0
    %s26 = sadd.s32 %s25, 1
    %s27 = scalar_select %p24, %s25, %s26
    %p30 = pneg %p24
    %p31 = scmp.eq.s32.totalorder %s15, 1
    %p32 = por %p30, %p31
    %p33 = scmp.ne.s32.totalorder %s25, %s28
    %p34 = scmp.eq.s32.totalorder %s15, 0
    %p35 = por %p33, %p34
    %p36 = scmp.ne.s32.totalorder %s25, %s28
    %p37 = scmp.eq.s32.totalorder %s20, 1
    %p38 = por %p36, %p37
    %p39 = scmp.ne.s32.totalorder %s28, %s29
    %p40 = scmp.eq.s32.totalorder %s20, 0
    %p41 = por %p39, %p40
    %p42 = scmp.ne.s32.totalorder %s28, %s29
    %p43 = scmp.eq.s32.totalorder %s21, 1
    %p44 = por %p42, %p43
    %p46 = scmp.ne.s32.totalorder %s29, %s45
    %p47 = scmp.eq.s32.totalorder %s21, 0
    %p48 = por %p46, %p47
    %s50 = sadd.s32 %s49, 1
    %p53 = scmp.eq.s32.totalorder %s15, 1
    %p54 = scmp.ne.s32.totalorder %s49, %s51
    %p55 = scmp.eq.s32.totalorder %s15, 0
    %p56 = por %p54, %p55
    %p57 = scmp.ne.s32.totalorder %s49, %s51
    %p58 = scmp.eq.s32.totalorder %s20, 1
    %p59 = por %p57, %p58
    %p60 = scmp.ne.s32.totalorder %s51, %s52
    %p61 = scmp.eq.s32.totalorder %s20, 0
    %p62 = por %p60, %p61
    %p63 = scmp.ne.s32.totalorder %s51, %s52
    %p64 = scmp.eq.s32.totalorder %s21, 1
    %p65 = por %p63, %p64
    %p67 = scmp.ne.s32.totalorder %s52, %s66
    %p68 = scmp.eq.s32.totalorder %s21, 0
    %p69 = por %p67, %p68
    %s71 = sadd.s32 %s70, 1
    %p74 = scmp.eq.s32.totalorder %s15, 1
    %p75 = scmp.ne.s32.totalorder %s70, %s72
    %p76 = scmp.eq.s32.totalorder %s15, 0
    %p77 = por %p75, %p76
    %p78 = scmp.ne.s32.totalorder %s70, %s72
    %p79 = scmp.eq.s32.totalorder %s20, 1
    %p80 = por %p78, %p79
    %p81 = scmp.ne.s32.totalorder %s72, %s73
    %p82 = scmp.eq.s32.totalorder %s20, 0
    %p83 = por %p81, %p82
    %p84 = scmp.ne.s32.totalorder %s72, %s73
    %p85 = scmp.eq.s32.totalorder %s21, 1
    %p86 = por %p84, %p85
    %p88 = scmp.ne.s32.totalorder %s73, %s87
    %p89 = scmp.eq.s32.totalorder %s21, 0
    %p90 = por %p88, %p89
    %s92 = sadd.s32 %s91, 1
    %p95 = scmp.eq.s32.totalorder %s15, 1
    %p96 = scmp.ne.s32.totalorder %s91, %s93
    %p97 = scmp.eq.s32.totalorder %s15, 0
    %p98 = por %p96, %p97
    %p99 = scmp.ne.s32.totalorder %s91, %s93
    %p100 = scmp.eq.s32.totalorder %s20, 1
    %p101 = por %p99, %p100
    %p102 = scmp.ne.s32.totalorder %s93, %s94
    %p103 = scmp.eq.s32.totalorder %s20, 0
    %p104 = por %p102, %p103
    %p105 = scmp.ne.s32.totalorder %s93, %s94
    %p106 = scmp.eq.s32.totalorder %s21, 1
    %p107 = por %p105, %p106
    %p109 = scmp.ne.s32.totalorder %s94, %s108
    %p110 = scmp.eq.s32.totalorder %s21, 0
    %p111 = por %p109, %p110
    %s113 = sadd.s32 %s112, 1
    %p116 = scmp.eq.s32.totalorder %s15, 1
    %p117 = scmp.ne.s32.totalorder %s112, %s114
    %p118 = scmp.eq.s32.totalorder %s15, 0
    %p119 = por %p117, %p118
    %p120 = scmp.ne.s32.totalorder %s112, %s114
    %p121 = scmp.eq.s32.totalorder %s20, 1
    %p122 = por %p120, %p121
    %p123 = scmp.ne.s32.totalorder %s114, %s115
    %p124 = scmp.eq.s32.totalorder %s20, 0
    %p125 = por %p123, %p124
    %p126 = scmp.ne.s32.totalorder %s114, %s115
    %p127 = scmp.eq.s32.totalorder %s21, 1
    %p128 = por %p126, %p127
    %p130 = scmp.ne.s32.totalorder %s115, %s129
    %p131 = scmp.eq.s32.totalorder %s21, 0
    %p132 = por %p130, %p131
    %s134 = sadd.s32 %s133, 1
    %p137 = scmp.eq.s32.totalorder %s15, 1
    %p138 = scmp.ne.s32.totalorder %s133, %s135
    %p139 = scmp.eq.s32.totalorder %s15, 0
    %p140 = por %p138, %p139
    %p141 = scmp.ne.s32.totalorder %s133, %s135
    %p142 = scmp.eq.s32.totalorder %s20, 1
    %p143 = por %p141, %p142
    %p144 = scmp.ne.s32.totalorder %s135, %s136
    %p145 = scmp.eq.s32.totalorder %s20, 0
    %p146 = por %p144, %p145
    %p147 = scmp.ne.s32.totalorder %s135, %s136
    %p148 = scmp.eq.s32.totalorder %s21, 1
    %p149 = por %p147, %p148
    %p151 = scmp.ne.s32.totalorder %s136, %s150
    %p152 = scmp.eq.s32.totalorder %s21, 0
    %p153 = por %p151, %p152
    %s155 = sadd.s32 %s154, 1
    %p158 = scmp.eq.s32.totalorder %s15, 1
    %p159 = scmp.ne.s32.totalorder %s154, %s156
    %p160 = scmp.eq.s32.totalorder %s15, 0
    %p161 = por %p159, %p160
    %p162 = scmp.ne.s32.totalorder %s154, %s156
    %p163 = scmp.eq.s32.totalorder %s20, 1
    %p164 = por %p162, %p163
    %p165 = scmp.ne.s32.totalorder %s156, %s157
    %p166 = scmp.eq.s32.totalorder %s20, 0
    %p167 = por %p165, %p166
    %p168 = scmp.ne.s32.totalorder %s156, %s157
    %p169 = scmp.eq.s32.totalorder %s21, 1
    %p170 = por %p168, %p169
    %p172 = scmp.ne.s32.totalorder %s157, %s171
    %p173 = scmp.eq.s32.totalorder %s21, 0
    %p174 = por %p172, %p173
    %s175 = ssub.s32 %s15, %s22
    %p176 = scmp.eq.s32.totalorder %s175, 0
    %s178 = sadd.s32 %s177, 1
    %s179 = scalar_select %p176, %s177, %s178
    %p182 = pneg %p176
    %p183 = scmp.eq.s32.totalorder %s15, 1
    %p184 = por %p182, %p183
    %p185 = scmp.ne.s32.totalorder %s177, %s180
    %p186 = scmp.eq.s32.totalorder %s15, 0
    %p187 = por %p185, %p186
    %p188 = scmp.ne.s32.totalorder %s177, %s180
    %p189 = scmp.eq.s32.totalorder %s20, 1
    %p190 = por %p188, %p189
    %p191 = scmp.ne.s32.totalorder %s180, %s181
    %p192 = scmp.eq.s32.totalorder %s20, 0
    %p193 = por %p191, %p192
    %p194 = scmp.ne.s32.totalorder %s180, %s181
    %p195 = scmp.eq.s32.totalorder %s21, 1
    %p196 = por %p194, %p195
    %p198 = scmp.ne.s32.totalorder %s181, %s197
    %p199 = scmp.eq.s32.totalorder %s21, 0
    %p200 = por %p198, %p199
    %p201 = scmp.le.s32.totalorder 1, %s15
    %p202 = scmp.lt.s32.totalorder %s15, 3
    %p203 = pnand %p201, %p202
    %p204 = pneg %p203
    // Predicated region
    $region9: #{out_block_forward.1} parent=5 // pred_check
      _
    $region10: #{out_block_forward.1} parent=5 // pred_check_branch
      %206 = sbr.rel (%p203) target = $region12
    $region11: #{out_block_forward.1} parent=5 // pred_region
      %s207 = ssub.s32 %s15, 1
      // Predicated region
      $region13: #{out_block_forward.1} parent=11 // pred_check
        %p208 = pneg %p62
      $region14: #{out_block_forward.1} parent=11 // pred_check_branch
        %210 = sbr.rel (%p208) target = $region16
      $region15: #{out_block_forward.1} parent=11 // pred_region
        _
      $region16: #{out_block_forward.1} parent=11 // pred_fallthru
        _
      // Predicated region
      $region17: #{out_block_forward.1} parent=11 // pred_check
        %p211 = pneg %p83
      $region18: #{out_block_forward.1} parent=11 // pred_check_branch
        %213 = sbr.rel (%p211) target = $region20
      $region19: #{out_block_forward.1} parent=11 // pred_region
        _
      $region20: #{out_block_forward.1} parent=11 // pred_fallthru
        _
      // Predicated region
      $region21: #{out_block_forward.1} parent=11 // pred_check
        %p214 = pneg %p104
      $region22: #{out_block_forward.1} parent=11 // pred_check_branch
        %216 = sbr.rel (%p214) target = $region24
      $region23: #{out_block_forward.1} parent=11 // pred_region
        _
      $region24: #{out_block_forward.1} parent=11 // pred_fallthru
        _
      // Predicated region
      $region25: #{out_block_forward.1} parent=11 // pred_check
        %p217 = pneg %p125
      $region26: #{out_block_forward.1} parent=11 // pred_check_branch
        %219 = sbr.rel (%p217) target = $region28
      $region27: #{out_block_forward.1} parent=11 // pred_region
        _
      $region28: #{out_block_forward.1} parent=11 // pred_fallthru
        _
      // Predicated region
      $region29: #{out_block_forward.1} parent=11 // pred_check
        %p220 = pneg %p146
      $region30: #{out_block_forward.1} parent=11 // pred_check_branch
        %222 = sbr.rel (%p220) target = $region32
      $region31: #{out_block_forward.1} parent=11 // pred_region
        _
      $region32: #{out_block_forward.1} parent=11 // pred_fallthru
        _
      // Predicated region
      $region33: #{out_block_forward.1} parent=11 // pred_check
        %p223 = pneg %p167
      $region34: #{out_block_forward.1} parent=11 // pred_check_branch
        %225 = sbr.rel (%p223) target = $region36
      $region35: #{out_block_forward.1} parent=11 // pred_region
        _
      $region36: #{out_block_forward.1} parent=11 // pred_fallthru
        _
    $region12: #{out_block_forward.1} parent=5 // pred_fallthru
      _
    %p226 = scmp.lt.s32.totalorder %s15, 2
    // Predicated region
    $region37: #{out_block_forward.1} parent=5 // pred_check
      %p227 = pneg %p226
    $region38: #{out_block_forward.1} parent=5 // pred_check_branch
      %229 = sbr.rel (%p227) target = $region40
    $region39: #{out_block_forward.1} parent=5 // pred_region
      // Predicated region
      $region41: #{out_block_forward.1} parent=39 // pred_check
        %p230 = pneg %p35
      $region42: #{out_block_forward.1} parent=39 // pred_check_branch
        %232 = sbr.rel (%p230) target = $region44
      $region43: #{out_block_forward.1} parent=39 // pred_region
        %p233 = scmp.lt.s32.totalorder %s15, 1
        %s234 = scalar_select %p233, %s15, 1
        %s235 = smul.addr %s234, 32
        %s236 = smul.addr %s235, 8
        %s237 = scalar_lea.vmem %s0, %s236
      $region44: #{out_block_forward.1} parent=39 // pred_fallthru
        _
    $region40: #{out_block_forward.1} parent=5 // pred_fallthru
      _
    %p238 = scmp.le.s32.totalorder 1, %s15
    %p239 = scmp.lt.s32.totalorder %s15, 3
    %p240 = pnand %p238, %p239
    %p241 = pneg %p240
    // Predicated region
    $region45: #{out_block_forward.1} parent=5 // pred_check
      _
    $region46: #{out_block_forward.1} parent=5 // pred_check_branch
      %243 = sbr.rel (%p240) target = $region48
    $region47: #{out_block_forward.1} parent=5 // pred_region
      %s244 = ssub.s32 %s15, 1
      %p245 = scmp.lt.s32.totalorder %s20, 1
      %s246 = scalar_select %p245, %s20, 1
      %s247 = smul.addr %s246, 32
      %s248 = smul.addr %s247, 8
      %s249 = scalar_lea.vmem %s0, %s248
      %p250 = pneg %p41
      %p251 = pneg %p38
      %p252 = pneg %p62
      %p253 = pneg %p59
      %p254 = pneg %p83
      %p255 = pneg %p80
      %p256 = pneg %p104
      %p257 = pneg %p101
      %p258 = pneg %p125
      %p259 = pneg %p122
      %p260 = pneg %p146
      %p261 = pneg %p143
      %p262 = pneg %p167
      %p263 = pneg %p164
      %p264 = pneg %p193
      %p265 = pneg %p190
      %p266 = scmp.lt.s32.totalorder %s20, 1
      %s267 = scalar_select %p266, %s20, 1
      %s268 = smul.addr %s267, 8
      %s269 = scalar_lea.vmem %s7, %s268
      %p270 = scmp.lt.s32.totalorder %s20, 1
      %s271 = scalar_select %p270, %s20, 1
      %s272 = smul.addr %s271, 32
      %s273 = smul.addr %s272, 8
      %s274 = scalar_lea.vmem %s0, %s273
      %p275 = scmp.lt.s32.totalorder %s20, 1
      %s276 = scalar_select %p275, %s20, 1
      %s277 = smul.addr %s276, 8
      %s278 = scalar_lea.vmem %s7, %s277
      %vm280 = vcmask 523264
      %281 = vst.msk [vmem:[#allocation2] sm:$0xff] %vm280, 0.0
      %282 = vst.msk [vmem:[#allocation2 + $0x8] sm:$0xff] %vm280, 0.0
      %vm283 = vcmask 517120
      %284 = vst.msk [vmem:[#allocation2 + $0x10] sm:$0x3] %vm283, 0.0
      %s285 = scalar_lea.vmem [#allocation2], 408
      %286 = vst.msk [vmem:[%s285] sm:$0xff] %vm280, 0.0
      %287 = vst.msk [vmem:[%s285 + $0x8] sm:$0xff] %vm280, 0.0
      %288 = vst.msk [vmem:[%s285 + $0x10] sm:$0x3] %vm283, 0.0
      %vm289 = vcmask 516096
      %290 = vst.msk [vmem:[#allocation2] sm:$0x1] %vm289, 0.0
      %291 = vst.msk [vmem:[#allocation2 + $0x18] sm:$0x1] %vm289, 0.0
      %292 = vst.msk [vmem:[#allocation2 + $0x30] sm:$0x1] %vm289, 0.0
      %293 = vst.msk [vmem:[#allocation2 + $0x48] sm:$0x1] %vm289, 0.0
      %294 = vst.msk [vmem:[#allocation2 + $0x60] sm:$0x1] %vm289, 0.0
      %295 = vst.msk [vmem:[#allocation2 + $0x78] sm:$0x1] %vm289, 0.0
      %296 = vst.msk [vmem:[#allocation2 + $0x90] sm:$0x1] %vm289, 0.0
      %297 = vst.msk [vmem:[#allocation2 + $0xa8] sm:$0x1] %vm289, 0.0
      %298 = vst.msk [vmem:[#allocation2 + $0xc0] sm:$0x1] %vm289, 0.0
      %299 = vst.msk [vmem:[#allocation2 + $0xd8] sm:$0x1] %vm289, 0.0
      %300 = vst.msk [vmem:[#allocation2 + $0xf0] sm:$0x1] %vm289, 0.0
      %301 = vst.msk [vmem:[#allocation2 + $0x108] sm:$0x1] %vm289, 0.0
      %302 = vst.msk [vmem:[#allocation2 + $0x120] sm:$0x1] %vm289, 0.0
      %303 = vst.msk [vmem:[#allocation2 + $0x138] sm:$0x1] %vm289, 0.0
      %304 = vst.msk [vmem:[#allocation2 + $0x150] sm:$0x1] %vm289, 0.0
      %305 = vst.msk [vmem:[#allocation2 + $0x168] sm:$0x1] %vm289, 0.0
      %306 = vst.msk [vmem:[#allocation2 + $0x180] sm:$0x1] %vm289, 0.0
      %307 = vst.msk [vmem:[#allocation2 + $0x198] sm:$0x1] %vm289, 0.0
      %308 = vst.msk [vmem:[#allocation2 + $0x11] sm:$0x1] %vm289, 0.0
      %309 = vst.msk [vmem:[#allocation2 + $0x29] sm:$0x1] %vm289, 0.0
      %310 = vst.msk [vmem:[#allocation2 + $0x41] sm:$0x1] %vm289, 0.0
      %311 = vst.msk [vmem:[#allocation2 + $0x59] sm:$0x1] %vm289, 0.0
      %312 = vst.msk [vmem:[#allocation2 + $0x71] sm:$0x1] %vm289, 0.0
      %313 = vst.msk [vmem:[#allocation2 + $0x89] sm:$0x1] %vm289, 0.0
      %314 = vst.msk [vmem:[#allocation2 + $0xa1] sm:$0x1] %vm289, 0.0
      %315 = vst.msk [vmem:[#allocation2 + $0xb9] sm:$0x1] %vm289, 0.0
      %316 = vst.msk [vmem:[#allocation2 + $0xd1] sm:$0x1] %vm289, 0.0
      %317 = vst.msk [vmem:[#allocation2 + $0xe9] sm:$0x1] %vm289, 0.0
      %318 = vst.msk [vmem:[#allocation2 + $0x101] sm:$0x1] %vm289, 0.0
      %319 = vst.msk [vmem:[#allocation2 + $0x119] sm:$0x1] %vm289, 0.0
      %320 = vst.msk [vmem:[#allocation2 + $0x131] sm:$0x1] %vm289, 0.0
      %321 = vst.msk [vmem:[#allocation2 + $0x149] sm:$0x1] %vm289, 0.0
      %322 = vst.msk [vmem:[#allocation2 + $0x161] sm:$0x1] %vm289, 0.0
      %323 = vst.msk [vmem:[#allocation2 + $0x179] sm:$0x1] %vm289, 0.0
      %324 = vst.msk [vmem:[#allocation2 + $0x191] sm:$0x1] %vm289, 0.0
      %325 = vst.msk [vmem:[#allocation2 + $0x1a9] sm:$0x1] %vm289, 0.0
      %v326 = vld [vmem:[%s274] sm:$0xff]
      %v327 = vld [vmem:[%s274 + $0x8] sm:$0xff]
      %v328 = vld [vmem:[%s274 + $0x10] sm:$0xff]
      %v329 = vld [vmem:[%s274 + $0x18] sm:$0xff]
      %v330 = vld [vmem:[%s274 + $0x20] sm:$0xff]
      %v331 = vld [vmem:[%s274 + $0x28] sm:$0xff]
      %v332 = vld [vmem:[%s274 + $0x30] sm:$0xff]
      %v333 = vld [vmem:[%s274 + $0x38] sm:$0xff]
      %v334 = vld [vmem:[%s274 + $0x40] sm:$0xff]
      %v335 = vld [vmem:[%s274 + $0x48] sm:$0xff]
      %v336 = vld [vmem:[%s274 + $0x50] sm:$0xff]
      %v337 = vld [vmem:[%s274 + $0x58] sm:$0xff]
      %v338 = vld [vmem:[%s274 + $0x60] sm:$0xff]
      %v339 = vld [vmem:[%s274 + $0x68] sm:$0xff]
      %v340 = vld [vmem:[%s274 + $0x70] sm:$0xff]
      %v341 = vld [vmem:[%s274 + $0x78] sm:$0xff]
      %v342 = vld [vmem:[%s274 + $0x80] sm:$0xff]
      %v343 = vld [vmem:[%s274 + $0x88] sm:$0xff]
      %v344 = vld [vmem:[%s274 + $0x90] sm:$0xff]
      %v345 = vld [vmem:[%s274 + $0x98] sm:$0xff]
      %v346 = vld [vmem:[%s274 + $0xa0] sm:$0xff]
      %v347 = vld [vmem:[%s274 + $0xa8] sm:$0xff]
      %v348 = vld [vmem:[%s274 + $0xb0] sm:$0xff]
      %v349 = vld [vmem:[%s274 + $0xb8] sm:$0xff]
      %v350 = vld [vmem:[%s274 + $0xc0] sm:$0xff]
      %v351 = vld [vmem:[%s274 + $0xc8] sm:$0xff]
      %v352 = vld [vmem:[%s274 + $0xd0] sm:$0xff]
      %v353 = vld [vmem:[%s274 + $0xd8] sm:$0xff]
      %v354 = vld [vmem:[%s274 + $0xe0] sm:$0xff]
      %v355 = vld [vmem:[%s274 + $0xe8] sm:$0xff]
      %v356 = vld [vmem:[%s274 + $0xf0] sm:$0xff]
      %v357 = vld [vmem:[%s274 + $0xf8] sm:$0xff]
      %s358 = scalar_lea.vmem [#allocation2], 24
      %359 = vst.msk [vmem:[%s358 + $0x1] sm:$0xff] %vm280, %v326
      %360 = vst.msk [vmem:[%s358 + $0x9] sm:$0xff] %vm280, %v327
      %361 = vst.msk [vmem:[%s358 + $0x19] sm:$0xff] %vm280, %v328
      %362 = vst.msk [vmem:[%s358 + $0x21] sm:$0xff] %vm280, %v329
      %363 = vst.msk [vmem:[%s358 + $0x31] sm:$0xff] %vm280, %v330
      %364 = vst.msk [vmem:[%s358 + $0x39] sm:$0xff] %vm280, %v331
      %365 = vst.msk [vmem:[%s358 + $0x49] sm:$0xff] %vm280, %v332
      %366 = vst.msk [vmem:[%s358 + $0x51] sm:$0xff] %vm280, %v333
      %367 = vst.msk [vmem:[%s358 + $0x61] sm:$0xff] %vm280, %v334
      %368 = vst.msk [vmem:[%s358 + $0x69] sm:$0xff] %vm280, %v335
      %369 = vst.msk [vmem:[%s358 + $0x79] sm:$0xff] %vm280, %v336
      %370 = vst.msk [vmem:[%s358 + $0x81] sm:$0xff] %vm280, %v337
      %371 = vst.msk [vmem:[%s358 + $0x91] sm:$0xff] %vm280, %v338
      %372 = vst.msk [vmem:[%s358 + $0x99] sm:$0xff] %vm280, %v339
      %373 = vst.msk [vmem:[%s358 + $0xa9] sm:$0xff] %vm280, %v340
      %374 = vst.msk [vmem:[%s358 + $0xb1] sm:$0xff] %vm280, %v341
      %375 = vst.msk [vmem:[%s358 + $0xc1] sm:$0xff] %vm280, %v342
      %376 = vst.msk [vmem:[%s358 + $0xc9] sm:$0xff] %vm280, %v343
      %377 = vst.msk [vmem:[%s358 + $0xd9] sm:$0xff] %vm280, %v344
      %378 = vst.msk [vmem:[%s358 + $0xe1] sm:$0xff] %vm280, %v345
      %379 = vst.msk [vmem:[%s358 + $0xf1] sm:$0xff] %vm280, %v346
      %380 = vst.msk [vmem:[%s358 + $0xf9] sm:$0xff] %vm280, %v347
      %381 = vst.msk [vmem:[%s358 + $0x109] sm:$0xff] %vm280, %v348
      %382 = vst.msk [vmem:[%s358 + $0x111] sm:$0xff] %vm280, %v349
      %383 = vst.msk [vmem:[%s358 + $0x121] sm:$0xff] %vm280, %v350
      %384 = vst.msk [vmem:[%s358 + $0x129] sm:$0xff] %vm280, %v351
      %385 = vst.msk [vmem:[%s358 + $0x139] sm:$0xff] %vm280, %v352
      %386 = vst.msk [vmem:[%s358 + $0x141] sm:$0xff] %vm280, %v353
      %387 = vst.msk [vmem:[%s358 + $0x151] sm:$0xff] %vm280, %v354
      %388 = vst.msk [vmem:[%s358 + $0x159] sm:$0xff] %vm280, %v355
      %389 = vst.msk [vmem:[%s358 + $0x169] sm:$0xff] %vm280, %v356
      %390 = vst.msk [vmem:[%s358 + $0x171] sm:$0xff] %vm280, %v357
      %v391 = vld [vmem:[#allocation2] sm:$0xff]
      %v392 = vld [vmem:[#allocation2 + $0x8] sm:$0xff]
      %v393 = vld [vmem:[#allocation2 + $0x18] sm:$0xff]
      %v394 = vld [vmem:[#allocation2 + $0x20] sm:$0xff]
      %v395 = vld [vmem:[#allocation2 + $0x30] sm:$0xff]
      %v396 = vld [vmem:[#allocation2 + $0x38] sm:$0xff]
      %v397 = vld [vmem:[#allocation2 + $0x48] sm:$0xff]
      %v398 = vld [vmem:[#allocation2 + $0x50] sm:$0xff]
      %v399 = vld [vmem:[#allocation2 + $0x60] sm:$0xff]
      %v400 = vld [vmem:[#allocation2 + $0x68] sm:$0xff]
      %v401 = vld [vmem:[#allocation2 + $0x78] sm:$0xff]
      %v402 = vld [vmem:[#allocation2 + $0x80] sm:$0xff]
      %v403 = vld [vmem:[#allocation2 + $0x90] sm:$0xff]
      %v404 = vld [vmem:[#allocation2 + $0x98] sm:$0xff]
      %v405 = vld [vmem:[#allocation2 + $0xa8] sm:$0xff]
      %v406 = vld [vmem:[#allocation2 + $0xb0] sm:$0xff]
      %v407 = vld [vmem:[#allocation2 + $0xc0] sm:$0xff]
      %v408 = vld [vmem:[#allocation2 + $0xc8] sm:$0xff]
      %v409 = vld [vmem:[#allocation2 + $0xd8] sm:$0xff]
      %v410 = vld [vmem:[#allocation2 + $0xe0] sm:$0xff]
      %v411 = vld [vmem:[#allocation2 + $0xf0] sm:$0xff]
      %v412 = vld [vmem:[#allocation2 + $0xf8] sm:$0xff]
      %v413 = vld [vmem:[#allocation2 + $0x108] sm:$0xff]
      %v414 = vld [vmem:[#allocation2 + $0x110] sm:$0xff]
      %v415 = vld [vmem:[#allocation2 + $0x120] sm:$0xff]
      %v416 = vld [vmem:[#allocation2 + $0x128] sm:$0xff]
      %v417 = vld [vmem:[#allocation2 + $0x138] sm:$0xff]
      %v418 = vld [vmem:[#allocation2 + $0x140] sm:$0xff]
      %v419 = vld [vmem:[#allocation2 + $0x150] sm:$0xff]
      %v420 = vld [vmem:[#allocation2 + $0x158] sm:$0xff]
      %v421 = vld [vmem:[#allocation2 + $0x168] sm:$0xff]
      %v422 = vld [vmem:[#allocation2 + $0x170] sm:$0xff]
      %v423 = vpack.c.bf16 %v392, %v391
      %v424 = vpack.c.bf16 %v394, %v393
      %v425 = vpack.c.bf16 %v396, %v395
      %v426 = vpack.c.bf16 %v398, %v397
      %v427 = vpack.c.bf16 %v400, %v399
      %v428 = vpack.c.bf16 %v402, %v401
      %v429 = vpack.c.bf16 %v404, %v403
      %v430 = vpack.c.bf16 %v406, %v405
      %v431 = vpack.c.bf16 %v408, %v407
      %v432 = vpack.c.bf16 %v410, %v409
      %v433 = vpack.c.bf16 %v412, %v411
      %v434 = vpack.c.bf16 %v414, %v413
      %v435 = vpack.c.bf16 %v416, %v415
      %v436 = vpack.c.bf16 %v418, %v417
      %v437 = vpack.c.bf16 %v420, %v419
      %v438 = vpack.c.bf16 %v422, %v421
      %v439 = vld [vmem:[%s1] sm:$0xf]
      %v440 = vld [vmem:[%s1 + $0x4] sm:$0xf]
      %v441 = vld [vmem:[%s1 + $0x8] sm:$0xf]
      %v442 = vld [vmem:[%s1 + $0xc] sm:$0xf]
      %v443 = vld [vmem:[%s1 + $0x10] sm:$0xf]
      %v444 = vld [vmem:[%s1 + $0x14] sm:$0xf]
      %v445 = vld [vmem:[%s1 + $0x18] sm:$0xf]
      %v446 = vld [vmem:[%s1 + $0x1c] sm:$0xf]
      %v447 = vld [vmem:[#allocation2 + $0x1] sm:$0xff]
      %v448 = vld [vmem:[#allocation2 + $0x9] sm:$0xff]
      %v449 = vld [vmem:[#allocation2 + $0x19] sm:$0xff]
      %v450 = vld [vmem:[#allocation2 + $0x21] sm:$0xff]
      %v451 = vld [vmem:[#allocation2 + $0x31] sm:$0xff]
      %v452 = vld [vmem:[#allocation2 + $0x39] sm:$0xff]
      %v453 = vld [vmem:[#allocation2 + $0x49] sm:$0xff]
      %v454 = vld [vmem:[#allocation2 + $0x51] sm:$0xff]
      %v455 = vld [vmem:[#allocation2 + $0x61] sm:$0xff]
      %v456 = vld [vmem:[#allocation2 + $0x69] sm:$0xff]
      %v457 = vld [vmem:[#allocation2 + $0x79] sm:$0xff]
      %v458 = vld [vmem:[#allocation2 + $0x81] sm:$0xff]
      %v459 = vld [vmem:[#allocation2 + $0x91] sm:$0xff]
      %v460 = vld [vmem:[#allocation2 + $0x99] sm:$0xff]
      %v461 = vld [vmem:[#allocation2 + $0xa9] sm:$0xff]
      %v462 = vld [vmem:[#allocation2 + $0xb1] sm:$0xff]
      %v463 = vld [vmem:[#allocation2 + $0xc1] sm:$0xff]
      %v464 = vld [vmem:[#allocation2 + $0xc9] sm:$0xff]
      %v465 = vld [vmem:[#allocation2 + $0xd9] sm:$0xff]
      %v466 = vld [vmem:[#allocation2 + $0xe1] sm:$0xff]
      %v467 = vld [vmem:[#allocation2 + $0xf1] sm:$0xff]
      %v468 = vld [vmem:[#allocation2 + $0xf9] sm:$0xff]
      %v469 = vld [vmem:[#allocation2 + $0x109] sm:$0xff]
      %v470 = vld [vmem:[#allocation2 + $0x111] sm:$0xff]
      %v471 = vld [vmem:[#allocation2 + $0x121] sm:$0xff]
      %v472 = vld [vmem:[#allocation2 + $0x129] sm:$0xff]
      %v473 = vld [vmem:[#allocation2 + $0x139] sm:$0xff]
      %v474 = vld [vmem:[#allocation2 + $0x141] sm:$0xff]
      %v475 = vld [vmem:[#allocation2 + $0x151] sm:$0xff]
      %v476 = vld [vmem:[#allocation2 + $0x159] sm:$0xff]
      %v477 = vld [vmem:[#allocation2 + $0x169] sm:$0xff]
      %v478 = vld [vmem:[#allocation2 + $0x171] sm:$0xff]
      %v479 = vpack.c.bf16 %v448, %v447
      %v480 = vpack.c.bf16 %v450, %v449
      %v481 = vpack.c.bf16 %v452, %v451
      %v482 = vpack.c.bf16 %v454, %v453
      %v483 = vpack.c.bf16 %v456, %v455
      %v484 = vpack.c.bf16 %v458, %v457
      %v485 = vpack.c.bf16 %v460, %v459
      %v486 = vpack.c.bf16 %v462, %v461
      %v487 = vpack.c.bf16 %v464, %v463
      %v488 = vpack.c.bf16 %v466, %v465
      %v489 = vpack.c.bf16 %v468, %v467
      %v490 = vpack.c.bf16 %v470, %v469
      %v491 = vpack.c.bf16 %v472, %v471
      %v492 = vpack.c.bf16 %v474, %v473
      %v493 = vpack.c.bf16 %v476, %v475
      %v494 = vpack.c.bf16 %v478, %v477
      %v495 = vld [vmem:[%s1 + $0x20] sm:$0xf]
      %v496 = vld [vmem:[%s1 + $0x24] sm:$0xf]
      %v497 = vld [vmem:[%s1 + $0x28] sm:$0xf]
      %v498 = vld [vmem:[%s1 + $0x2c] sm:$0xf]
      %v499 = vld [vmem:[%s1 + $0x30] sm:$0xf]
      %v500 = vld [vmem:[%s1 + $0x34] sm:$0xf]
      %v501 = vld [vmem:[%s1 + $0x38] sm:$0xf]
      %v502 = vld [vmem:[%s1 + $0x3c] sm:$0xf]
      %v511 = vunpack.c.l.b16 %v495
      %v512 = vunpack.c.l.b16 %v496
      %v513 = vunpack.c.l.b16 %v497
      %v514 = vunpack.c.l.b16 %v498
      %v515 = vunpack.c.l.b16 %v499
      %v516 = vunpack.c.l.b16 %v500
      %v517 = vunpack.c.l.b16 %v501
      %v518 = vunpack.c.l.b16 %v502
      %v519 = vpack.c.b16 %v512, %v511
      %v520 = vpack.c.b16 %v514, %v513
      %v521 = vpack.c.b16 %v516, %v515
      %v522 = vpack.c.b16 %v518, %v517
      %v528 = vsel %vm280, %v479, 0
      %v531 = vsel %vm280, %v480, 0
      %v534 = vsel %vm280, %v481, 0
      %v537 = vsel %vm280, %v482, 0
      %v540 = vsel %vm280, %v483, 0
      %v543 = vsel %vm280, %v484, 0
      %v546 = vsel %vm280, %v485, 0
      %v549 = vsel %vm280, %v486, 0
      %v552 = vsel %vm280, %v487, 0
      %v555 = vsel %vm280, %v488, 0
      %v558 = vsel %vm280, %v489, 0
      %v561 = vsel %vm280, %v490, 0
      %v564 = vsel %vm280, %v491, 0
      %v567 = vsel %vm280, %v492, 0
      %v570 = vsel %vm280, %v493, 0
      %v573 = vsel %vm280, %v494, 0
      %575 = vmatprep.subr.bf16.mxu0 0
      %576 = vmatpush1.bf16.msra.mxu0 %v519
      %577 = vmatprep.subr.bf16.mxu0 0
      %578 = vmatpush1.bf16.msra.mxu0 %v520
      %579 = vmatprep.subr.bf16.mxu0 0
      %580 = vmatpush1.bf16.msra.mxu0 %v521
      %581 = vmatprep.subr.bf16.mxu0 0
      %582 = vmatpush1.bf16.msra.mxu0 %v522
      %583 = vmatprep.subr.bf16.mxu0 0
      %584 = vmatpush1.bf16.msra.mxu0 0
      %585 = vmatprep.subr.bf16.mxu0 0
      %586 = vmatpush1.bf16.msra.mxu0 0
      %587 = vmatprep.subr.bf16.mxu0 0
      %588 = vmatpush1.bf16.msra.mxu0 0
      %589 = vmatprep.subr.bf16.mxu0 0
      %590 = vmatpush1.bf16.msra.mxu0 0
      %591 = vmatprep.subr.bf16.mxu0 0
      %592 = vmatpush1.bf16.msra.mxu0 0
      %593 = vmatprep.subr.bf16.mxu0 0
      %594 = vmatpush1.bf16.msra.mxu0 0
      %595 = vmatprep.subr.bf16.mxu0 0
      %596 = vmatpush1.bf16.msra.mxu0 0
      %597 = vmatprep.subr.bf16.mxu0 0
      %598 = vmatpush1.bf16.msra.mxu0 0
      %599 = vmatprep.subr.bf16.mxu0 0
      %600 = vmatpush1.bf16.msra.mxu0 0
      %601 = vmatprep.subr.bf16.mxu0 0
      %602 = vmatpush1.bf16.msra.mxu0 0
      %603 = vmatprep.subr.bf16.mxu0 0
      %604 = vmatpush1.bf16.msra.mxu0 0
      %605 = vmatprep.subr.bf16.mxu0 0
      %606 = vmatpush1.bf16.msra.mxu0 0
      %607 = vmatprep.mubr.bf16.mxu0 0
      %608 = vmatmul.mubr.bf16.gmra.mrb[0].mxu0 %v528
      %v609 = vpop.f32.mrb[0].mxu0
      %v610 = vadd.f32 0.0, %v609
      %v611 = vpop.f32.mrb[0].mxu0
      %v612 = vpop.f32.mrb[0].mxu0
      %v613 = vadd.f32 0.0, %v612
      %v614 = vpop.f32.mrb[0].mxu0
      %615 = vmatprep.mubr.bf16.mxu0 0
      %616 = vmatmul.mubr.bf16.gmra.mrb[0].mxu0 %v531
      %v617 = vpop.f32.mrb[0].mxu0
      %v618 = vadd.f32 0.0, %v617
      %v619 = vpop.f32.mrb[0].mxu0
      %v620 = vpop.f32.mrb[0].mxu0
      %v621 = vadd.f32 0.0, %v620
      %v622 = vpop.f32.mrb[0].mxu0
      %623 = vmatprep.mubr.bf16.mxu0 0
      %624 = vmatmul.mubr.bf16.gmra.mrb[0].mxu0 %v534
      %v625 = vpop.f32.mrb[0].mxu0
      %v626 = vadd.f32 0.0, %v625
      %v627 = vpop.f32.mrb[0].mxu0
      %v628 = vpop.f32.mrb[0].mxu0
      %v629 = vadd.f32 0.0, %v628
      %v630 = vpop.f32.mrb[0].mxu0
      %631 = vmatprep.mubr.bf16.mxu0 0
      %632 = vmatmul.mubr.bf16.gmra.mrb[0].mxu0 %v537
      %v633 = vpop.f32.mrb[0].mxu0
      %v634 = vadd.f32 0.0, %v633
      %v635 = vpop.f32.mrb[0].mxu0
      %v636 = vpop.f32.mrb[0].mxu0
      %v637 = vadd.f32 0.0, %v636
      %v638 = vpop.f32.mrb[0].mxu0
      %639 = vmatprep.mubr.bf16.mxu0 0
      %640 = vmatmul.mubr.bf16.gmra.mrb[0].mxu0 %v540
      %v641 = vpop.f32.mrb[0].mxu0
      %v642 = vadd.f32 0.0, %v641
      %v643 = vpop.f32.mrb[0].mxu0
      %v644 = vpop.f32.mrb[0].mxu0
      %v645 = vadd.f32 0.0, %v644
      %v646 = vpop.f32.mrb[0].mxu0
      %647 = vmatprep.mubr.bf16.mxu0 0
      %648 = vmatmul.mubr.bf16.gmra.mrb[0].mxu0 %v543
      %v649 = vpop.f32.mrb[0].mxu0
      %v650 = vadd.f32 0.0, %v649
      %v651 = vpop.f32.mrb[0].mxu0
      %v652 = vpop.f32.mrb[0].mxu0
      %v653 = vadd.f32 0.0, %v652
      %v654 = vpop.f32.mrb[0].mxu0
      %655 = vmatprep.mubr.bf16.mxu0 0
      %656 = vmatmul.mubr.bf16.gmra.mrb[0].mxu0 %v546
      %v657 = vpop.f32.mrb[0].mxu0
      %v658 = vadd.f32 0.0, %v657
      %v659 = vpop.f32.mrb[0].mxu0
      %v660 = vpop.f32.mrb[0].mxu0
      %v661 = vadd.f32 0.0, %v660
      %v662 = vpop.f32.mrb[0].mxu0
      %663 = vmatprep.mubr.bf16.mxu0 0
      %664 = vmatmul.mubr.bf16.gmra.mrb[0].mxu0 %v549
      %v665 = vpop.f32.mrb[0].mxu0
      %v666 = vadd.f32 0.0, %v665
      %v667 = vpop.f32.mrb[0].mxu0
      %v668 = vpop.f32.mrb[0].mxu0
      %v669 = vadd.f32 0.0, %v668
      %v670 = vpop.f32.mrb[0].mxu0
      %671 = vmatprep.mubr.bf16.mxu0 0
      %672 = vmatmul.mubr.bf16.gmra.mrb[0].mxu0 %v552
      %v673 = vpop.f32.mrb[0].mxu0
      %v674 = vadd.f32 0.0, %v673
      %v675 = vpop.f32.mrb[0].mxu0
      %v676 = vpop.f32.mrb[0].mxu0
      %v677 = vadd.f32 0.0, %v676
      %v678 = vpop.f32.mrb[0].mxu0
      %679 = vmatprep.mubr.bf16.mxu0 0
      %680 = vmatmul.mubr.bf16.gmra.mrb[0].mxu0 %v555
      %v681 = vpop.f32.mrb[0].mxu0
      %v682 = vadd.f32 0.0, %v681
      %v683 = vpop.f32.mrb[0].mxu0
      %v684 = vpop.f32.mrb[0].mxu0
      %v685 = vadd.f32 0.0, %v684
      %v686 = vpop.f32.mrb[0].mxu0
      %687 = vmatprep.mubr.bf16.mxu0 0
      %688 = vmatmul.mubr.bf16.gmra.mrb[0].mxu0 %v558
      %v689 = vpop.f32.mrb[0].mxu0
      %v690 = vadd.f32 0.0, %v689
      %v691 = vpop.f32.mrb[0].mxu0
      %v692 = vpop.f32.mrb[0].mxu0
      %v693 = vadd.f32 0.0, %v692
      %v694 = vpop.f32.mrb[0].mxu0
      %695 = vmatprep.mubr.bf16.mxu0 0
      %696 = vmatmul.mubr.bf16.gmra.mrb[0].mxu0 %v561
      %v697 = vpop.f32.mrb[0].mxu0
      %v698 = vadd.f32 0.0, %v697
      %v699 = vpop.f32.mrb[0].mxu0
      %v700 = vpop.f32.mrb[0].mxu0
      %v701 = vadd.f32 0.0, %v700
      %v702 = vpop.f32.mrb[0].mxu0
      %703 = vmatprep.mubr.bf16.mxu0 0
      %704 = vmatmul.mubr.bf16.gmra.mrb[0].mxu0 %v564
      %v705 = vpop.f32.mrb[0].mxu0
      %v706 = vadd.f32 0.0, %v705
      %v707 = vpop.f32.mrb[0].mxu0
      %v708 = vpop.f32.mrb[0].mxu0
      %v709 = vadd.f32 0.0, %v708
      %v710 = vpop.f32.mrb[0].mxu0
      %711 = vmatprep.mubr.bf16.mxu0 0
      %712 = vmatmul.mubr.bf16.gmra.mrb[0].mxu0 %v567
      %v713 = vpop.f32.mrb[0].mxu0
      %v714 = vadd.f32 0.0, %v713
      %v715 = vpop.f32.mrb[0].mxu0
      %v716 = vpop.f32.mrb[0].mxu0
      %v717 = vadd.f32 0.0, %v716
      %v718 = vpop.f32.mrb[0].mxu0
      %719 = vmatprep.mubr.bf16.mxu0 0
      %720 = vmatmul.mubr.bf16.gmra.mrb[0].mxu0 %v570
      %v721 = vpop.f32.mrb[0].mxu0
      %v722 = vadd.f32 0.0, %v721
      %v723 = vpop.f32.mrb[0].mxu0
      %v724 = vpop.f32.mrb[0].mxu0
      %v725 = vadd.f32 0.0, %v724
      %v726 = vpop.f32.mrb[0].mxu0
      %727 = vmatprep.mubr.bf16.mxu0 0
      %728 = vmatmul.mubr.bf16.gmra.mrb[0].mxu0 %v573
      %v729 = vpop.f32.mrb[0].mxu0
      %v730 = vadd.f32 0.0, %v729
      %v731 = vpop.f32.mrb[0].mxu0
      %v732 = vpop.f32.mrb[0].mxu0
      %v733 = vadd.f32 0.0, %v732
      %v734 = vpop.f32.mrb[0].mxu0
      %735 = vdwg.mxu0
      %v744 = vunpack.c.l.b16 %v439
      %v745 = vunpack.c.l.b16 %v440
      %v746 = vunpack.c.l.b16 %v441
      %v747 = vunpack.c.l.b16 %v442
      %v748 = vunpack.c.l.b16 %v443
      %v749 = vunpack.c.l.b16 %v444
      %v750 = vunpack.c.l.b16 %v445
      %v751 = vunpack.c.l.b16 %v446
      %v752 = vpack.c.b16 %v745, %v744
      %v753 = vpack.c.b16 %v747, %v746
      %v754 = vpack.c.b16 %v749, %v748
      %v755 = vpack.c.b16 %v751, %v750
      %v761 = vsel %vm280, %v423, 0
      %v764 = vsel %vm280, %v424, 0
      %v767 = vsel %vm280, %v425, 0
      %v770 = vsel %vm280, %v426, 0
      %v773 = vsel %vm280, %v427, 0
      %v776 = vsel %vm280, %v428, 0
      %v779 = vsel %vm280, %v429, 0
      %v782 = vsel %vm280, %v430, 0
      %v785 = vsel %vm280, %v431, 0
      %v788 = vsel %vm280, %v432, 0
      %v791 = vsel %vm280, %v433, 0
      %v794 = vsel %vm280, %v434, 0
      %v797 = vsel %vm280, %v435, 0
      %v800 = vsel %vm280, %v436, 0
      %v803 = vsel %vm280, %v437, 0
      %v806 = vsel %vm280, %v438, 0
      %808 = vmatprep.subr.bf16.mxu0 0
      %809 = vmatpush1.bf16.msra.mxu0 %v752
      %810 = vmatprep.subr.bf16.mxu0 0
      %811 = vmatpush1.bf16.msra.mxu0 %v753
      %812 = vmatprep.subr.bf16.mxu0 0
      %813 = vmatpush1.bf16.msra.mxu0 %v754
      %814 = vmatprep.subr.bf16.mxu0 0
      %815 = vmatpush1.bf16.msra.mxu0 %v755
      %816 = vmatprep.subr.bf16.mxu0 0
      %817 = vmatpush1.bf16.msra.mxu0 0
      %818 = vmatprep.subr.bf16.mxu0 0
      %819 = vmatpush1.bf16.msra.mxu0 0
      %820 = vmatprep.subr.bf16.mxu0 0
      %821 = vmatpush1.bf16.msra.mxu0 0
      %822 = vmatprep.subr.bf16.mxu0 0
      %823 = vmatpush1.bf16.msra.mxu0 0
      %824 = vmatprep.subr.bf16.mxu0 0
      %825 = vmatpush1.bf16.msra.mxu0 0
      %826 = vmatprep.subr.bf16.mxu0 0
      %827 = vmatpush1.bf16.msra.mxu0 0
      %828 = vmatprep.subr.bf16.mxu0 0
      %829 = vmatpush1.bf16.msra.mxu0 0
      %830 = vmatprep.subr.bf16.mxu0 0
      %831 = vmatpush1.bf16.msra.mxu0 0
      %832 = vmatprep.subr.bf16.mxu0 0
      %833 = vmatpush1.bf16.msra.mxu0 0
      %834 = vmatprep.subr.bf16.mxu0 0
      %835 = vmatpush1.bf16.msra.mxu0 0
      %836 = vmatprep.subr.bf16.mxu0 0
      %837 = vmatpush1.bf16.msra.mxu0 0
      %838 = vmatprep.subr.bf16.mxu0 0
      %839 = vmatpush1.bf16.msra.mxu0 0
      %840 = vmatprep.mubr.bf16.mxu0 0
      %841 = vmatmul.mubr.bf16.gmra.mrb[0].mxu0 %v761
      %v842 = vpop.f32.mrb[0].mxu0
      %v843 = vadd.f32 %v610, %v842
      %v844 = vpop.f32.mrb[0].mxu0
      %v845 = vpop.f32.mrb[0].mxu0
      %v846 = vadd.f32 %v613, %v845
      %v847 = vpop.f32.mrb[0].mxu0
      %848 = vmatprep.mubr.bf16.mxu0 0
      %849 = vmatmul.mubr.bf16.gmra.mrb[0].mxu0 %v764
      %v850 = vpop.f32.mrb[0].mxu0
      %v851 = vadd.f32 %v618, %v850
      %v852 = vpop.f32.mrb[0].mxu0
      %v853 = vpop.f32.mrb[0].mxu0
      %v854 = vadd.f32 %v621, %v853
      %v855 = vpop.f32.mrb[0].mxu0
      %856 = vmatprep.mubr.bf16.mxu0 0
      %857 = vmatmul.mubr.bf16.gmra.mrb[0].mxu0 %v767
      %v858 = vpop.f32.mrb[0].mxu0
      %v859 = vadd.f32 %v626, %v858
      %v860 = vpop.f32.mrb[0].mxu0
      %v861 = vpop.f32.mrb[0].mxu0
      %v862 = vadd.f32 %v629, %v861
      %v863 = vpop.f32.mrb[0].mxu0
      %864 = vmatprep.mubr.bf16.mxu0 0
      %865 = vmatmul.mubr.bf16.gmra.mrb[0].mxu0 %v770
      %v866 = vpop.f32.mrb[0].mxu0
      %v867 = vadd.f32 %v634, %v866
      %v868 = vpop.f32.mrb[0].mxu0
      %v869 = vpop.f32.mrb[0].mxu0
      %v870 = vadd.f32 %v637, %v869
      %v871 = vpop.f32.mrb[0].mxu0
      %872 = vmatprep.mubr.bf16.mxu0 0
      %873 = vmatmul.mubr.bf16.gmra.mrb[0].mxu0 %v773
      %v874 = vpop.f32.mrb[0].mxu0
      %v875 = vadd.f32 %v642, %v874
      %v876 = vpop.f32.mrb[0].mxu0
      %v877 = vpop.f32.mrb[0].mxu0
      %v878 = vadd.f32 %v645, %v877
      %v879 = vpop.f32.mrb[0].mxu0
      %880 = vmatprep.mubr.bf16.mxu0 0
      %881 = vmatmul.mubr.bf16.gmra.mrb[0].mxu0 %v776
      %v882 = vpop.f32.mrb[0].mxu0
      %v883 = vadd.f32 %v650, %v882
      %v884 = vpop.f32.mrb[0].mxu0
      %v885 = vpop.f32.mrb[0].mxu0
      %v886 = vadd.f32 %v653, %v885
      %v887 = vpop.f32.mrb[0].mxu0
      %888 = vmatprep.mubr.bf16.mxu0 0
      %889 = vmatmul.mubr.bf16.gmra.mrb[0].mxu0 %v779
      %v890 = vpop.f32.mrb[0].mxu0
      %v891 = vadd.f32 %v658, %v890
      %v892 = vpop.f32.mrb[0].mxu0
      %v893 = vpop.f32.mrb[0].mxu0
      %v894 = vadd.f32 %v661, %v893
      %v895 = vpop.f32.mrb[0].mxu0
      %896 = vmatprep.mubr.bf16.mxu0 0
      %897 = vmatmul.mubr.bf16.gmra.mrb[0].mxu0 %v782
      %v898 = vpop.f32.mrb[0].mxu0
      %v899 = vadd.f32 %v666, %v898
      %v900 = vpop.f32.mrb[0].mxu0
      %v901 = vpop.f32.mrb[0].mxu0
      %v902 = vadd.f32 %v669, %v901
      %v903 = vpop.f32.mrb[0].mxu0
      %904 = vmatprep.mubr.bf16.mxu0 0
      %905 = vmatmul.mubr.bf16.gmra.mrb[0].mxu0 %v785
      %v906 = vpop.f32.mrb[0].mxu0
      %v907 = vadd.f32 %v674, %v906
      %v908 = vpop.f32.mrb[0].mxu0
      %v909 = vpop.f32.mrb[0].mxu0
      %v910 = vadd.f32 %v677, %v909
      %v911 = vpop.f32.mrb[0].mxu0
      %912 = vmatprep.mubr.bf16.mxu0 0
      %913 = vmatmul.mubr.bf16.gmra.mrb[0].mxu0 %v788
      %v914 = vpop.f32.mrb[0].mxu0
      %v915 = vadd.f32 %v682, %v914
      %v916 = vpop.f32.mrb[0].mxu0
      %v917 = vpop.f32.mrb[0].mxu0
      %v918 = vadd.f32 %v685, %v917
      %v919 = vpop.f32.mrb[0].mxu0
      %920 = vmatprep.mubr.bf16.mxu0 0
      %921 = vmatmul.mubr.bf16.gmra.mrb[0].mxu0 %v791
      %v922 = vpop.f32.mrb[0].mxu0
      %v923 = vadd.f32 %v690, %v922
      %v924 = vpop.f32.mrb[0].mxu0
      %v925 = vpop.f32.mrb[0].mxu0
      %v926 = vadd.f32 %v693, %v925
      %v927 = vpop.f32.mrb[0].mxu0
      %928 = vmatprep.mubr.bf16.mxu0 0
      %929 = vmatmul.mubr.bf16.gmra.mrb[0].mxu0 %v794
      %v930 = vpop.f32.mrb[0].mxu0
      %v931 = vadd.f32 %v698, %v930
      %v932 = vpop.f32.mrb[0].mxu0
      %v933 = vpop.f32.mrb[0].mxu0
      %v934 = vadd.f32 %v701, %v933
      %v935 = vpop.f32.mrb[0].mxu0
      %936 = vmatprep.mubr.bf16.mxu0 0
      %937 = vmatmul.mubr.bf16.gmra.mrb[0].mxu0 %v797
      %v938 = vpop.f32.mrb[0].mxu0
      %v939 = vadd.f32 %v706, %v938
      %v940 = vpop.f32.mrb[0].mxu0
      %v941 = vpop.f32.mrb[0].mxu0
      %v942 = vadd.f32 %v709, %v941
      %v943 = vpop.f32.mrb[0].mxu0
      %944 = vmatprep.mubr.bf16.mxu0 0
      %945 = vmatmul.mubr.bf16.gmra.mrb[0].mxu0 %v800
      %v946 = vpop.f32.mrb[0].mxu0
      %v947 = vadd.f32 %v714, %v946
      %v948 = vpop.f32.mrb[0].mxu0
      %v949 = vpop.f32.mrb[0].mxu0
      %v950 = vadd.f32 %v717, %v949
      %v951 = vpop.f32.mrb[0].mxu0
      %952 = vmatprep.mubr.bf16.mxu0 0
      %953 = vmatmul.mubr.bf16.gmra.mrb[0].mxu0 %v803
      %v954 = vpop.f32.mrb[0].mxu0
      %v955 = vadd.f32 %v722, %v954
      %v956 = vpop.f32.mrb[0].mxu0
      %v957 = vpop.f32.mrb[0].mxu0
      %v958 = vadd.f32 %v725, %v957
      %v959 = vpop.f32.mrb[0].mxu0
      %960 = vmatprep.mubr.bf16.mxu0 0
      %961 = vmatmul.mubr.bf16.gmra.mrb[0].mxu0 %v806
      %v962 = vpop.f32.mrb[0].mxu0
      %v963 = vadd.f32 %v730, %v962
      %v964 = vpop.f32.mrb[0].mxu0
      %v965 = vpop.f32.mrb[0].mxu0
      %v966 = vadd.f32 %v733, %v965
      %v967 = vpop.f32.mrb[0].mxu0
      %968 = vdwg.mxu0
      %v969 = vld [vmem:[#allocation2 + $0x2] sm:$0xff]
      %v970 = vld [vmem:[#allocation2 + $0xa] sm:$0xff]
      %v971 = vld [vmem:[#allocation2 + $0x1a] sm:$0xff]
      %v972 = vld [vmem:[#allocation2 + $0x22] sm:$0xff]
      %v973 = vld [vmem:[#allocation2 + $0x32] sm:$0xff]
      %v974 = vld [vmem:[#allocation2 + $0x3a] sm:$0xff]
      %v975 = vld [vmem:[#allocation2 + $0x4a] sm:$0xff]
      %v976 = vld [vmem:[#allocation2 + $0x52] sm:$0xff]
      %v977 = vld [vmem:[#allocation2 + $0x62] sm:$0xff]
      %v978 = vld [vmem:[#allocation2 + $0x6a] sm:$0xff]
      %v979 = vld [vmem:[#allocation2 + $0x7a] sm:$0xff]
      %v980 = vld [vmem:[#allocation2 + $0x82] sm:$0xff]
      %v981 = vld [vmem:[#allocation2 + $0x92] sm:$0xff]
      %v982 = vld [vmem:[#allocation2 + $0x9a] sm:$0xff]
      %v983 = vld [vmem:[#allocation2 + $0xaa] sm:$0xff]
      %v984 = vld [vmem:[#allocation2 + $0xb2] sm:$0xff]
      %v985 = vld [vmem:[#allocation2 + $0xc2] sm:$0xff]
      %v986 = vld [vmem:[#allocation2 + $0xca] sm:$0xff]
      %v987 = vld [vmem:[#allocation2 + $0xda] sm:$0xff]
      %v988 = vld [vmem:[#allocation2 + $0xe2] sm:$0xff]
      %v989 = vld [vmem:[#allocation2 + $0xf2] sm:$0xff]
      %v990 = vld [vmem:[#allocation2 + $0xfa] sm:$0xff]
      %v991 = vld [vmem:[#allocation2 + $0x10a] sm:$0xff]
      %v992 = vld [vmem:[#allocation2 + $0x112] sm:$0xff]
      %v993 = vld [vmem:[#allocation2 + $0x122] sm:$0xff]
      %v994 = vld [vmem:[#allocation2 + $0x12a] sm:$0xff]
      %v995 = vld [vmem:[#allocation2 + $0x13a] sm:$0xff]
      %v996 = vld [vmem:[#allocation2 + $0x142] sm:$0xff]
      %v997 = vld [vmem:[#allocation2 + $0x152] sm:$0xff]
      %v998 = vld [vmem:[#allocation2 + $0x15a] sm:$0xff]
      %v999 = vld [vmem:[#allocation2 + $0x16a] sm:$0xff]
      %v1000 = vld [vmem:[#allocation2 + $0x172] sm:$0xff]
      %v1001 = vpack.c.bf16 %v970, %v969
      %v1002 = vpack.c.bf16 %v972, %v971
      %v1003 = vpack.c.bf16 %v974, %v973
      %v1004 = vpack.c.bf16 %v976, %v975
      %v1005 = vpack.c.bf16 %v978, %v977
      %v1006 = vpack.c.bf16 %v980, %v979
      %v1007 = vpack.c.bf16 %v982, %v981
      %v1008 = vpack.c.bf16 %v984, %v983
      %v1009 = vpack.c.bf16 %v986, %v985
      %v1010 = vpack.c.bf16 %v988, %v987
      %v1011 = vpack.c.bf16 %v990, %v989
      %v1012 = vpack.c.bf16 %v992, %v991
      %v1013 = vpack.c.bf16 %v994, %v993
      %v1014 = vpack.c.bf16 %v996, %v995
      %v1015 = vpack.c.bf16 %v998, %v997
      %v1016 = vpack.c.bf16 %v1000, %v999
      %v1017 = vld [vmem:[%s1 + $0x40] sm:$0xf]
      %v1018 = vld [vmem:[%s1 + $0x44] sm:$0xf]
      %v1019 = vld [vmem:[%s1 + $0x48] sm:$0xf]
      %v1020 = vld [vmem:[%s1 + $0x4c] sm:$0xf]
      %v1021 = vld [vmem:[%s1 + $0x50] sm:$0xf]
      %v1022 = vld [vmem:[%s1 + $0x54] sm:$0xf]
      %v1023 = vld [vmem:[%s1 + $0x58] sm:$0xf]
      %v1024 = vld [vmem:[%s1 + $0x5c] sm:$0xf]
      %v1033 = vunpack.c.l.b16 %v1017
      %v1034 = vunpack.c.l.b16 %v1018
      %v1035 = vunpack.c.l.b16 %v1019
      %v1036 = vunpack.c.l.b16 %v1020
      %v1037 = vunpack.c.l.b16 %v1021
      %v1038 = vunpack.c.l.b16 %v1022
      %v1039 = vunpack.c.l.b16 %v1023
      %v1040 = vunpack.c.l.b16 %v1024
      %v1041 = vpack.c.b16 %v1034, %v1033
      %v1042 = vpack.c.b16 %v1036, %v1035
      %v1043 = vpack.c.b16 %v1038, %v1037
      %v1044 = vpack.c.b16 %v1040, %v1039
      %v1050 = vsel %vm280, %v1001, 0
      %v1053 = vsel %vm280, %v1002, 0
      %v1056 = vsel %vm280, %v1003, 0
      %v1059 = vsel %vm280, %v1004, 0
      %v1062 = vsel %vm280, %v1005, 0
      %v1065 = vsel %vm280, %v1006, 0
      %v1068 = vsel %vm280, %v1007, 0
      %v1071 = vsel %vm280, %v1008, 0
      %v1074 = vsel %vm280, %v1009, 0
      %v1077 = vsel %vm280, %v1010, 0
      %v1080 = vsel %vm280, %v1011, 0
      %v1083 = vsel %vm280, %v1012, 0
      %v1086 = vsel %vm280, %v1013, 0
      %v1089 = vsel %vm280, %v1014, 0
      %v1092 = vsel %vm280, %v1015, 0
      %v1095 = vsel %vm280, %v1016, 0
      %1097 = vmatprep.subr.bf16.mxu0 0
      %1098 = vmatpush1.bf16.msra.mxu0 %v1041
      %1099 = vmatprep.subr.bf16.mxu0 0
      %1100 = vmatpush1.bf16.msra.mxu0 %v1042
      %1101 = vmatprep.subr.bf16.mxu0 0
      %1102 = vmatpush1.bf16.msra.mxu0 %v1043
      %1103 = vmatprep.subr.bf16.mxu0 0
      %1104 = vmatpush1.bf16.msra.mxu0 %v1044
      %1105 = vmatprep.subr.bf16.mxu0 0
      %1106 = vmatpush1.bf16.msra.mxu0 0
      %1107 = vmatprep.subr.bf16.mxu0 0
      %1108 = vmatpush1.bf16.msra.mxu0 0
      %1109 = vmatprep.subr.bf16.mxu0 0
      %1110 = vmatpush1.bf16.msra.mxu0 0
      %1111 = vmatprep.subr.bf16.mxu0 0
      %1112 = vmatpush1.bf16.msra.mxu0 0
      %1113 = vmatprep.subr.bf16.mxu0 0
      %1114 = vmatpush1.bf16.msra.mxu0 0
      %1115 = vmatprep.subr.bf16.mxu0 0
      %1116 = vmatpush1.bf16.msra.mxu0 0
      %1117 = vmatprep.subr.bf16.mxu0 0
      %1118 = vmatpush1.bf16.msra.mxu0 0
      %1119 = vmatprep.subr.bf16.mxu0 0
      %1120 = vmatpush1.bf16.msra.mxu0 0
      %1121 = vmatprep.subr.bf16.mxu0 0
      %1122 = vmatpush1.bf16.msra.mxu0 0
      %1123 = vmatprep.subr.bf16.mxu0 0
      %1124 = vmatpush1.bf16.msra.mxu0 0
      %1125 = vmatprep.subr.bf16.mxu0 0
      %1126 = vmatpush1.bf16.msra.mxu0 0
      %1127 = vmatprep.subr.bf16.mxu0 0
      %1128 = vmatpush1.bf16.msra.mxu0 0
      %1129 = vmatprep.mubr.bf16.mxu0 0
      %1130 = vmatmul.mubr.bf16.gmra.mrb[0].mxu0 %v1050
      %v1131 = vpop.f32.mrb[0].mxu0
      %v1132 = vadd.f32 0.0, %v1131
      %v1133 = vpop.f32.mrb[0].mxu0
      %v1134 = vpop.f32.mrb[0].mxu0
      %v1135 = vadd.f32 0.0, %v1134
      %v1136 = vpop.f32.mrb[0].mxu0
      %1137 = vmatprep.mubr.bf16.mxu0 0
      %1138 = vmatmul.mubr.bf16.gmra.mrb[0].mxu0 %v1053
      %v1139 = vpop.f32.mrb[0].mxu0
      %v1140 = vadd.f32 0.0, %v1139
      %v1141 = vpop.f32.mrb[0].mxu0
      %v1142 = vpop.f32.mrb[0].mxu0
      %v1143 = vadd.f32 0.0, %v1142
      %v1144 = vpop.f32.mrb[0].mxu0
      %1145 = vmatprep.mubr.bf16.mxu0 0
      %1146 = vmatmul.mubr.bf16.gmra.mrb[0].mxu0 %v1056
      %v1147 = vpop.f32.mrb[0].mxu0
      %v1148 = vadd.f32 0.0, %v1147
      %v1149 = vpop.f32.mrb[0].mxu0
      %v1150 = vpop.f32.mrb[0].mxu0
      %v1151 = vadd.f32 0.0, %v1150
      %v1152 = vpop.f32.mrb[0].mxu0
      %1153 = vmatprep.mubr.bf16.mxu0 0
      %1154 = vmatmul.mubr.bf16.gmra.mrb[0].mxu0 %v1059
      %v1155 = vpop.f32.mrb[0].mxu0
      %v1156 = vadd.f32 0.0, %v1155
      %v1157 = vpop.f32.mrb[0].mxu0
      %v1158 = vpop.f32.mrb[0].mxu0
      %v1159 = vadd.f32 0.0, %v1158
      %v1160 = vpop.f32.mrb[0].mxu0
      %1161 = vmatprep.mubr.bf16.mxu0 0
      %1162 = vmatmul.mubr.bf16.gmra.mrb[0].mxu0 %v1062
      %v1163 = vpop.f32.mrb[0].mxu0
      %v1164 = vadd.f32 0.0, %v1163
      %v1165 = vpop.f32.mrb[0].mxu0
      %v1166 = vpop.f32.mrb[0].mxu0
      %v1167 = vadd.f32 0.0, %v1166
      %v1168 = vpop.f32.mrb[0].mxu0
      %1169 = vmatprep.mubr.bf16.mxu0 0
      %1170 = vmatmul.mubr.bf16.gmra.mrb[0].mxu0 %v1065
      %v1171 = vpop.f32.mrb[0].mxu0
      %v1172 = vadd.f32 0.0, %v1171
      %v1173 = vpop.f32.mrb[0].mxu0
      %v1174 = vpop.f32.mrb[0].mxu0
      %v1175 = vadd.f32 0.0, %v1174
      %v1176 = vpop.f32.mrb[0].mxu0
      %1177 = vmatprep.mubr.bf16.mxu0 0
      %1178 = vmatmul.mubr.bf16.gmra.mrb[0].mxu0 %v1068
      %v1179 = vpop.f32.mrb[0].mxu0
      %v1180 = vadd.f32 0.0, %v1179
      %v1181 = vpop.f32.mrb[0].mxu0
      %v1182 = vpop.f32.mrb[0].mxu0
      %v1183 = vadd.f32 0.0, %v1182
      %v1184 = vpop.f32.mrb[0].mxu0
      %1185 = vmatprep.mubr.bf16.mxu0 0
      %1186 = vmatmul.mubr.bf16.gmra.mrb[0].mxu0 %v1071
      %v1187 = vpop.f32.mrb[0].mxu0
      %v1188 = vadd.f32 0.0, %v1187
      %v1189 = vpop.f32.mrb[0].mxu0
      %v1190 = vpop.f32.mrb[0].mxu0
      %v1191 = vadd.f32 0.0, %v1190
      %v1192 = vpop.f32.mrb[0].mxu0
      %1193 = vmatprep.mubr.bf16.mxu0 0
      %1194 = vmatmul.mubr.bf16.gmra.mrb[0].mxu0 %v1074
      %v1195 = vpop.f32.mrb[0].mxu0
      %v1196 = vadd.f32 0.0, %v1195
      %v1197 = vpop.f32.mrb[0].mxu0
      %v1198 = vpop.f32.mrb[0].mxu0
      %v1199 = vadd.f32 0.0, %v1198
      %v1200 = vpop.f32.mrb[0].mxu0
      %1201 = vmatprep.mubr.bf16.mxu0 0
      %1202 = vmatmul.mubr.bf16.gmra.mrb[0].mxu0 %v1077
      %v1203 = vpop.f32.mrb[0].mxu0
      %v1204 = vadd.f32 0.0, %v1203
      %v1205 = vpop.f32.mrb[0].mxu0
      %v1206 = vpop.f32.mrb[0].mxu0
      %v1207 = vadd.f32 0.0, %v1206
      %v1208 = vpop.f32.mrb[0].mxu0
      %1209 = vmatprep.mubr.bf16.mxu0 0
      %1210 = vmatmul.mubr.bf16.gmra.mrb[0].mxu0 %v1080
      %v1211 = vpop.f32.mrb[0].mxu0
      %v1212 = vadd.f32 0.0, %v1211
      %v1213 = vpop.f32.mrb[0].mxu0
      %v1214 = vpop.f32.mrb[0].mxu0
      %v1215 = vadd.f32 0.0, %v1214
      %v1216 = vpop.f32.mrb[0].mxu0
      %1217 = vmatprep.mubr.bf16.mxu0 0
      %1218 = vmatmul.mubr.bf16.gmra.mrb[0].mxu0 %v1083
      %v1219 = vpop.f32.mrb[0].mxu0
      %v1220 = vadd.f32 0.0, %v1219
      %v1221 = vpop.f32.mrb[0].mxu0
      %v1222 = vpop.f32.mrb[0].mxu0
      %v1223 = vadd.f32 0.0, %v1222
      %v1224 = vpop.f32.mrb[0].mxu0
      %1225 = vmatprep.mubr.bf16.mxu0 0
      %1226 = vmatmul.mubr.bf16.gmra.mrb[0].mxu0 %v1086
      %v1227 = vpop.f32.mrb[0].mxu0
      %v1228 = vadd.f32 0.0, %v1227
      %v1229 = vpop.f32.mrb[0].mxu0
      %v1230 = vpop.f32.mrb[0].mxu0
      %v1231 = vadd.f32 0.0, %v1230
      %v1232 = vpop.f32.mrb[0].mxu0
      %1233 = vmatprep.mubr.bf16.mxu0 0
      %1234 = vmatmul.mubr.bf16.gmra.mrb[0].mxu0 %v1089
      %v1235 = vpop.f32.mrb[0].mxu0
      %v1236 = vadd.f32 0.0, %v1235
      %v1237 = vpop.f32.mrb[0].mxu0
      %v1238 = vpop.f32.mrb[0].mxu0
      %v1239 = vadd.f32 0.0, %v1238
      %v1240 = vpop.f32.mrb[0].mxu0
      %1241 = vmatprep.mubr.bf16.mxu0 0
      %1242 = vmatmul.mubr.bf16.gmra.mrb[0].mxu0 %v1092
      %v1243 = vpop.f32.mrb[0].mxu0
      %v1244 = vadd.f32 0.0, %v1243
      %v1245 = vpop.f32.mrb[0].mxu0
      %v1246 = vpop.f32.mrb[0].mxu0
      %v1247 = vadd.f32 0.0, %v1246
      %v1248 = vpop.f32.mrb[0].mxu0
      %1249 = vmatprep.mubr.bf16.mxu0 0
      %1250 = vmatmul.mubr.bf16.gmra.mrb[0].mxu0 %v1095
      %v1251 = vpop.f32.mrb[0].mxu0
      %v1252 = vadd.f32 0.0, %v1251
      %v1253 = vpop.f32.mrb[0].mxu0
      %v1254 = vpop.f32.mrb[0].mxu0
      %v1255 = vadd.f32 0.0, %v1254
      %v1256 = vpop.f32.mrb[0].mxu0
      %1257 = vdwg.mxu0
      %v1258 = vadd.f32 %v843, %v1132
      %v1259 = vadd.f32 %v846, %v1135
      %v1260 = vadd.f32 %v851, %v1140
      %v1261 = vadd.f32 %v854, %v1143
      %v1262 = vadd.f32 %v859, %v1148
      %v1263 = vadd.f32 %v862, %v1151
      %v1264 = vadd.f32 %v867, %v1156
      %v1265 = vadd.f32 %v870, %v1159
      %v1266 = vadd.f32 %v875, %v1164
      %v1267 = vadd.f32 %v878, %v1167
      %v1268 = vadd.f32 %v883, %v1172
      %v1269 = vadd.f32 %v886, %v1175
      %v1270 = vadd.f32 %v891, %v1180
      %v1271 = vadd.f32 %v894, %v1183
      %v1272 = vadd.f32 %v899, %v1188
      %v1273 = vadd.f32 %v902, %v1191
      %v1274 = vadd.f32 %v907, %v1196
      %v1275 = vadd.f32 %v910, %v1199
      %v1276 = vadd.f32 %v915, %v1204
      %v1277 = vadd.f32 %v918, %v1207
      %v1278 = vadd.f32 %v923, %v1212
      %v1279 = vadd.f32 %v926, %v1215
      %v1280 = vadd.f32 %v931, %v1220
      %v1281 = vadd.f32 %v934, %v1223
      %v1282 = vadd.f32 %v939, %v1228
      %v1283 = vadd.f32 %v942, %v1231
      %v1284 = vadd.f32 %v947, %v1236
      %v1285 = vadd.f32 %v950, %v1239
      %v1286 = vadd.f32 %v955, %v1244
      %v1287 = vadd.f32 %v958, %v1247
      %v1288 = vadd.f32 %v963, %v1252
      %v1289 = vadd.f32 %v966, %v1255
      %v1290 = vld [vmem:[%s358] sm:$0xff]
      %v1291 = vld [vmem:[%s358 + $0x8] sm:$0xff]
      %v1292 = vld [vmem:[%s358 + $0x18] sm:$0xff]
      %v1293 = vld [vmem:[%s358 + $0x20] sm:$0xff]
      %v1294 = vld [vmem:[%s358 + $0x30] sm:$0xff]
      %v1295 = vld [vmem:[%s358 + $0x38] sm:$0xff]
      %v1296 = vld [vmem:[%s358 + $0x48] sm:$0xff]
      %v1297 = vld [vmem:[%s358 + $0x50] sm:$0xff]
      %v1298 = vld [vmem:[%s358 + $0x60] sm:$0xff]
      %v1299 = vld [vmem:[%s358 + $0x68] sm:$0xff]
      %v1300 = vld [vmem:[%s358 + $0x78] sm:$0xff]
      %v1301 = vld [vmem:[%s358 + $0x80] sm:$0xff]
      %v1302 = vld [vmem:[%s358 + $0x90] sm:$0xff]
      %v1303 = vld [vmem:[%s358 + $0x98] sm:$0xff]
      %v1304 = vld [vmem:[%s358 + $0xa8] sm:$0xff]
      %v1305 = vld [vmem:[%s358 + $0xb0] sm:$0xff]
      %v1306 = vld [vmem:[%s358 + $0xc0] sm:$0xff]
      %v1307 = vld [vmem:[%s358 + $0xc8] sm:$0xff]
      %v1308 = vld [vmem:[%s358 + $0xd8] sm:$0xff]
      %v1309 = vld [vmem:[%s358 + $0xe0] sm:$0xff]
      %v1310 = vld [vmem:[%s358 + $0xf0] sm:$0xff]
      %v1311 = vld [vmem:[%s358 + $0xf8] sm:$0xff]
      %v1312 = vld [vmem:[%s358 + $0x108] sm:$0xff]
      %v1313 = vld [vmem:[%s358 + $0x110] sm:$0xff]
      %v1314 = vld [vmem:[%s358 + $0x120] sm:$0xff]
      %v1315 = vld [vmem:[%s358 + $0x128] sm:$0xff]
      %v1316 = vld [vmem:[%s358 + $0x138] sm:$0xff]
      %v1317 = vld [vmem:[%s358 + $0x140] sm:$0xff]
      %v1318 = vld [vmem:[%s358 + $0x150] sm:$0xff]
      %v1319 = vld [vmem:[%s358 + $0x158] sm:$0xff]
      %v1320 = vld [vmem:[%s358 + $0x168] sm:$0xff]
      %v1321 = vld [vmem:[%s358 + $0x170] sm:$0xff]
      %v1322 = vpack.c.bf16 %v1291, %v1290
      %v1323 = vpack.c.bf16 %v1293, %v1292
      %v1324 = vpack.c.bf16 %v1295, %v1294
      %v1325 = vpack.c.bf16 %v1297, %v1296
      %v1326 = vpack.c.bf16 %v1299, %v1298
      %v1327 = vpack.c.bf16 %v1301, %v1300
      %v1328 = vpack.c.bf16 %v1303, %v1302
      %v1329 = vpack.c.bf16 %v1305, %v1304
      %v1330 = vpack.c.bf16 %v1307, %v1306
      %v1331 = vpack.c.bf16 %v1309, %v1308
      %v1332 = vpack.c.bf16 %v1311, %v1310
      %v1333 = vpack.c.bf16 %v1313, %v1312
      %v1334 = vpack.c.bf16 %v1315, %v1314
      %v1335 = vpack.c.bf16 %v1317, %v1316
      %v1336 = vpack.c.bf16 %v1319, %v1318
      %v1337 = vpack.c.bf16 %v1321, %v1320
      %v1338 = vld [vmem:[%s1 + $0x60] sm:$0xf]
      %v1339 = vld [vmem:[%s1 + $0x64] sm:$0xf]
      %v1340 = vld [vmem:[%s1 + $0x68] sm:$0xf]
      %v1341 = vld [vmem:[%s1 + $0x6c] sm:$0xf]
      %v1342 = vld [vmem:[%s1 + $0x70] sm:$0xf]
      %v1343 = vld [vmem:[%s1 + $0x74] sm:$0xf]
      %v1344 = vld [vmem:[%s1 + $0x78] sm:$0xf]
      %v1345 = vld [vmem:[%s1 + $0x7c] sm:$0xf]
      %v1354 = vunpack.c.l.b16 %v1338
      %v1355 = vunpack.c.l.b16 %v1339
      %v1356 = vunpack.c.l.b16 %v1340
      %v1357 = vunpack.c.l.b16 %v1341
      %v1358 = vunpack.c.l.b16 %v1342
      %v1359 = vunpack.c.l.b16 %v1343
      %v1360 = vunpack.c.l.b16 %v1344
      %v1361 = vunpack.c.l.b16 %v1345
      %v1362 = vpack.c.b16 %v1355, %v1354
      %v1363 = vpack.c.b16 %v1357, %v1356
      %v1364 = vpack.c.b16 %v1359, %v1358
      %v1365 = vpack.c.b16 %v1361, %v1360
      %v1371 = vsel %vm280, %v1322, 0
      %v1374 = vsel %vm280, %v1323, 0
      %v1377 = vsel %vm280, %v1324, 0
      %v1380 = vsel %vm280, %v1325, 0
      %v1383 = vsel %vm280, %v1326, 0
      %v1386 = vsel %vm280, %v1327, 0
      %v1389 = vsel %vm280, %v1328, 0
      %v1392 = vsel %vm280, %v1329, 0
      %v1395 = vsel %vm280, %v1330, 0
      %v1398 = vsel %vm280, %v1331, 0
      %v1401 = vsel %vm280, %v1332, 0
      %v1404 = vsel %vm280, %v1333, 0
      %v1407 = vsel %vm280, %v1334, 0
      %v1410 = vsel %vm280, %v1335, 0
      %v1413 = vsel %vm280, %v1336, 0
      %v1416 = vsel %vm280, %v1337, 0
      %1418 = vmatprep.subr.bf16.mxu0 0
      %1419 = vmatpush1.bf16.msra.mxu0 %v1362
      %1420 = vmatprep.subr.bf16.mxu0 0
      %1421 = vmatpush1.bf16.msra.mxu0 %v1363
      %1422 = vmatprep.subr.bf16.mxu0 0
      %1423 = vmatpush1.bf16.msra.mxu0 %v1364
      %1424 = vmatprep.subr.bf16.mxu0 0
      %1425 = vmatpush1.bf16.msra.mxu0 %v1365
      %1426 = vmatprep.subr.bf16.mxu0 0
      %1427 = vmatpush1.bf16.msra.mxu0 0
      %1428 = vmatprep.subr.bf16.mxu0 0
      %1429 = vmatpush1.bf16.msra.mxu0 0
      %1430 = vmatprep.subr.bf16.mxu0 0
      %1431 = vmatpush1.bf16.msra.mxu0 0
      %1432 = vmatprep.subr.bf16.mxu0 0
      %1433 = vmatpush1.bf16.msra.mxu0 0
      %1434 = vmatprep.subr.bf16.mxu0 0
      %1435 = vmatpush1.bf16.msra.mxu0 0
      %1436 = vmatprep.subr.bf16.mxu0 0
      %1437 = vmatpush1.bf16.msra.mxu0 0
      %1438 = vmatprep.subr.bf16.mxu0 0
      %1439 = vmatpush1.bf16.msra.mxu0 0
      %1440 = vmatprep.subr.bf16.mxu0 0
      %1441 = vmatpush1.bf16.msra.mxu0 0
      %1442 = vmatprep.subr.bf16.mxu0 0
      %1443 = vmatpush1.bf16.msra.mxu0 0
      %1444 = vmatprep.subr.bf16.mxu0 0
      %1445 = vmatpush1.bf16.msra.mxu0 0
      %1446 = vmatprep.subr.bf16.mxu0 0
      %1447 = vmatpush1.bf16.msra.mxu0 0
      %1448 = vmatprep.subr.bf16.mxu0 0
      %1449 = vmatpush1.bf16.msra.mxu0 0
      %1450 = vmatprep.mubr.bf16.mxu0 0
      %1451 = vmatmul.mubr.bf16.gmra.mrb[0].mxu0 %v1371
      %v1452 = vpop.f32.mrb[0].mxu0
      %v1453 = vadd.f32 0.0, %v1452
      %v1454 = vpop.f32.mrb[0].mxu0
      %v1455 = vpop.f32.mrb[0].mxu0
      %v1456 = vadd.f32 0.0, %v1455
      %v1457 = vpop.f32.mrb[0].mxu0
      %1458 = vmatprep.mubr.bf16.mxu0 0
      %1459 = vmatmul.mubr.bf16.gmra.mrb[0].mxu0 %v1374
      %v1460 = vpop.f32.mrb[0].mxu0
      %v1461 = vadd.f32 0.0, %v1460
      %v1462 = vpop.f32.mrb[0].mxu0
      %v1463 = vpop.f32.mrb[0].mxu0
      %v1464 = vadd.f32 0.0, %v1463
      %v1465 = vpop.f32.mrb[0].mxu0
      %1466 = vmatprep.mubr.bf16.mxu0 0
      %1467 = vmatmul.mubr.bf16.gmra.mrb[0].mxu0 %v1377
      %v1468 = vpop.f32.mrb[0].mxu0
      %v1469 = vadd.f32 0.0, %v1468
      %v1470 = vpop.f32.mrb[0].mxu0
      %v1471 = vpop.f32.mrb[0].mxu0
      %v1472 = vadd.f32 0.0, %v1471
      %v1473 = vpop.f32.mrb[0].mxu0
      %1474 = vmatprep.mubr.bf16.mxu0 0
      %1475 = vmatmul.mubr.bf16.gmra.mrb[0].mxu0 %v1380
      %v1476 = vpop.f32.mrb[0].mxu0
      %v1477 = vadd.f32 0.0, %v1476
      %v1478 = vpop.f32.mrb[0].mxu0
      %v1479 = vpop.f32.mrb[0].mxu0
      %v1480 = vadd.f32 0.0, %v1479
      %v1481 = vpop.f32.mrb[0].mxu0
      %1482 = vmatprep.mubr.bf16.mxu0 0
      %1483 = vmatmul.mubr.bf16.gmra.mrb[0].mxu0 %v1383
      %v1484 = vpop.f32.mrb[0].mxu0
      %v1485 = vadd.f32 0.0, %v1484
      %v1486 = vpop.f32.mrb[0].mxu0
      %v1487 = vpop.f32.mrb[0].mxu0
      %v1488 = vadd.f32 0.0, %v1487
      %v1489 = vpop.f32.mrb[0].mxu0
      %1490 = vmatprep.mubr.bf16.mxu0 0
      %1491 = vmatmul.mubr.bf16.gmra.mrb[0].mxu0 %v1386
      %v1492 = vpop.f32.mrb[0].mxu0
      %v1493 = vadd.f32 0.0, %v1492
      %v1494 = vpop.f32.mrb[0].mxu0
      %v1495 = vpop.f32.mrb[0].mxu0
      %v1496 = vadd.f32 0.0, %v1495
      %v1497 = vpop.f32.mrb[0].mxu0
      %1498 = vmatprep.mubr.bf16.mxu0 0
      %1499 = vmatmul.mubr.bf16.gmra.mrb[0].mxu0 %v1389
      %v1500 = vpop.f32.mrb[0].mxu0
      %v1501 = vadd.f32 0.0, %v1500
      %v1502 = vpop.f32.mrb[0].mxu0
      %v1503 = vpop.f32.mrb[0].mxu0
      %v1504 = vadd.f32 0.0, %v1503
      %v1505 = vpop.f32.mrb[0].mxu0
      %1506 = vmatprep.mubr.bf16.mxu0 0
      %1507 = vmatmul.mubr.bf16.gmra.mrb[0].mxu0 %v1392
      %v1508 = vpop.f32.mrb[0].mxu0
      %v1509 = vadd.f32 0.0, %v1508
      %v1510 = vpop.f32.mrb[0].mxu0
      %v1511 = vpop.f32.mrb[0].mxu0
      %v1512 = vadd.f32 0.0, %v1511
      %v1513 = vpop.f32.mrb[0].mxu0
      %1514 = vmatprep.mubr.bf16.mxu0 0
      %1515 = vmatmul.mubr.bf16.gmra.mrb[0].mxu0 %v1395
      %v1516 = vpop.f32.mrb[0].mxu0
      %v1517 = vadd.f32 0.0, %v1516
      %v1518 = vpop.f32.mrb[0].mxu0
      %v1519 = vpop.f32.mrb[0].mxu0
      %v1520 = vadd.f32 0.0, %v1519
      %v1521 = vpop.f32.mrb[0].mxu0
      %1522 = vmatprep.mubr.bf16.mxu0 0
      %1523 = vmatmul.mubr.bf16.gmra.mrb[0].mxu0 %v1398
      %v1524 = vpop.f32.mrb[0].mxu0
      %v1525 = vadd.f32 0.0, %v1524
      %v1526 = vpop.f32.mrb[0].mxu0
      %v1527 = vpop.f32.mrb[0].mxu0
      %v1528 = vadd.f32 0.0, %v1527
      %v1529 = vpop.f32.mrb[0].mxu0
      %1530 = vmatprep.mubr.bf16.mxu0 0
      %1531 = vmatmul.mubr.bf16.gmra.mrb[0].mxu0 %v1401
      %v1532 = vpop.f32.mrb[0].mxu0
      %v1533 = vadd.f32 0.0, %v1532
      %v1534 = vpop.f32.mrb[0].mxu0
      %v1535 = vpop.f32.mrb[0].mxu0
      %v1536 = vadd.f32 0.0, %v1535
      %v1537 = vpop.f32.mrb[0].mxu0
      %1538 = vmatprep.mubr.bf16.mxu0 0
      %1539 = vmatmul.mubr.bf16.gmra.mrb[0].mxu0 %v1404
      %v1540 = vpop.f32.mrb[0].mxu0
      %v1541 = vadd.f32 0.0, %v1540
      %v1542 = vpop.f32.mrb[0].mxu0
      %v1543 = vpop.f32.mrb[0].mxu0
      %v1544 = vadd.f32 0.0, %v1543
      %v1545 = vpop.f32.mrb[0].mxu0
      %1546 = vmatprep.mubr.bf16.mxu0 0
      %1547 = vmatmul.mubr.bf16.gmra.mrb[0].mxu0 %v1407
      %v1548 = vpop.f32.mrb[0].mxu0
      %v1549 = vadd.f32 0.0, %v1548
      %v1550 = vpop.f32.mrb[0].mxu0
      %v1551 = vpop.f32.mrb[0].mxu0
      %v1552 = vadd.f32 0.0, %v1551
      %v1553 = vpop.f32.mrb[0].mxu0
      %1554 = vmatprep.mubr.bf16.mxu0 0
      %1555 = vmatmul.mubr.bf16.gmra.mrb[0].mxu0 %v1410
      %v1556 = vpop.f32.mrb[0].mxu0
      %v1557 = vadd.f32 0.0, %v1556
      %v1558 = vpop.f32.mrb[0].mxu0
      %v1559 = vpop.f32.mrb[0].mxu0
      %v1560 = vadd.f32 0.0, %v1559
      %v1561 = vpop.f32.mrb[0].mxu0
      %1562 = vmatprep.mubr.bf16.mxu0 0
      %1563 = vmatmul.mubr.bf16.gmra.mrb[0].mxu0 %v1413
      %v1564 = vpop.f32.mrb[0].mxu0
      %v1565 = vadd.f32 0.0, %v1564
      %v1566 = vpop.f32.mrb[0].mxu0
      %v1567 = vpop.f32.mrb[0].mxu0
      %v1568 = vadd.f32 0.0, %v1567
      %v1569 = vpop.f32.mrb[0].mxu0
      %1570 = vmatprep.mubr.bf16.mxu0 0
      %1571 = vmatmul.mubr.bf16.gmra.mrb[0].mxu0 %v1416
      %v1572 = vpop.f32.mrb[0].mxu0
      %v1573 = vadd.f32 0.0, %v1572
      %v1574 = vpop.f32.mrb[0].mxu0
      %v1575 = vpop.f32.mrb[0].mxu0
      %v1576 = vadd.f32 0.0, %v1575
      %v1577 = vpop.f32.mrb[0].mxu0
      %1578 = vdwg.mxu0
      %v1579 = vadd.f32 %v1258, %v1453
      %v1580 = vadd.f32 %v1259, %v1456
      %v1581 = vadd.f32 %v1260, %v1461
      %v1582 = vadd.f32 %v1261, %v1464
      %v1583 = vadd.f32 %v1262, %v1469
      %v1584 = vadd.f32 %v1263, %v1472
      %v1585 = vadd.f32 %v1264, %v1477
      %v1586 = vadd.f32 %v1265, %v1480
      %v1587 = vadd.f32 %v1266, %v1485
      %v1588 = vadd.f32 %v1267, %v1488
      %v1589 = vadd.f32 %v1268, %v1493
      %v1590 = vadd.f32 %v1269, %v1496
      %v1591 = vadd.f32 %v1270, %v1501
      %v1592 = vadd.f32 %v1271, %v1504
      %v1593 = vadd.f32 %v1272, %v1509
      %v1594 = vadd.f32 %v1273, %v1512
      %v1595 = vadd.f32 %v1274, %v1517
      %v1596 = vadd.f32 %v1275, %v1520
      %v1597 = vadd.f32 %v1276, %v1525
      %v1598 = vadd.f32 %v1277, %v1528
      %v1599 = vadd.f32 %v1278, %v1533
      %v1600 = vadd.f32 %v1279, %v1536
      %v1601 = vadd.f32 %v1280, %v1541
      %v1602 = vadd.f32 %v1281, %v1544
      %v1603 = vadd.f32 %v1282, %v1549
      %v1604 = vadd.f32 %v1283, %v1552
      %v1605 = vadd.f32 %v1284, %v1557
      %v1606 = vadd.f32 %v1285, %v1560
      %v1607 = vadd.f32 %v1286, %v1565
      %v1608 = vadd.f32 %v1287, %v1568
      %v1609 = vadd.f32 %v1288, %v1573
      %v1610 = vadd.f32 %v1289, %v1576
      %v1611 = vld [vmem:[%s358 + $0x1] sm:$0xff]
      %v1612 = vld [vmem:[%s358 + $0x9] sm:$0xff]
      %v1613 = vld [vmem:[%s358 + $0x19] sm:$0xff]
      %v1614 = vld [vmem:[%s358 + $0x21] sm:$0xff]
      %v1615 = vld [vmem:[%s358 + $0x31] sm:$0xff]
      %v1616 = vld [vmem:[%s358 + $0x39] sm:$0xff]
      %v1617 = vld [vmem:[%s358 + $0x49] sm:$0xff]
      %v1618 = vld [vmem:[%s358 + $0x51] sm:$0xff]
      %v1619 = vld [vmem:[%s358 + $0x61] sm:$0xff]
      %v1620 = vld [vmem:[%s358 + $0x69] sm:$0xff]
      %v1621 = vld [vmem:[%s358 + $0x79] sm:$0xff]
      %v1622 = vld [vmem:[%s358 + $0x81] sm:$0xff]
      %v1623 = vld [vmem:[%s358 + $0x91] sm:$0xff]
      %v1624 = vld [vmem:[%s358 + $0x99] sm:$0xff]
      %v1625 = vld [vmem:[%s358 + $0xa9] sm:$0xff]
      %v1626 = vld [vmem:[%s358 + $0xb1] sm:$0xff]
      %v1627 = vld [vmem:[%s358 + $0xc1] sm:$0xff]
      %v1628 = vld [vmem:[%s358 + $0xc9] sm:$0xff]
      %v1629 = vld [vmem:[%s358 + $0xd9] sm:$0xff]
      %v1630 = vld [vmem:[%s358 + $0xe1] sm:$0xff]
      %v1631 = vld [vmem:[%s358 + $0xf1] sm:$0xff]
      %v1632 = vld [vmem:[%s358 + $0xf9] sm:$0xff]
      %v1633 = vld [vmem:[%s358 + $0x109] sm:$0xff]
      %v1634 = vld [vmem:[%s358 + $0x111] sm:$0xff]
      %v1635 = vld [vmem:[%s358 + $0x121] sm:$0xff]
      %v1636 = vld [vmem:[%s358 + $0x129] sm:$0xff]
      %v1637 = vld [vmem:[%s358 + $0x139] sm:$0xff]
      %v1638 = vld [vmem:[%s358 + $0x141] sm:$0xff]
      %v1639 = vld [vmem:[%s358 + $0x151] sm:$0xff]
      %v1640 = vld [vmem:[%s358 + $0x159] sm:$0xff]
      %v1641 = vld [vmem:[%s358 + $0x169] sm:$0xff]
      %v1642 = vld [vmem:[%s358 + $0x171] sm:$0xff]
      %v1643 = vpack.c.bf16 %v1612, %v1611
      %v1644 = vpack.c.bf16 %v1614, %v1613
      %v1645 = vpack.c.bf16 %v1616, %v1615
      %v1646 = vpack.c.bf16 %v1618, %v1617
      %v1647 = vpack.c.bf16 %v1620, %v1619
      %v1648 = vpack.c.bf16 %v1622, %v1621
      %v1649 = vpack.c.bf16 %v1624, %v1623
      %v1650 = vpack.c.bf16 %v1626, %v1625
      %v1651 = vpack.c.bf16 %v1628, %v1627
      %v1652 = vpack.c.bf16 %v1630, %v1629
      %v1653 = vpack.c.bf16 %v1632, %v1631
      %v1654 = vpack.c.bf16 %v1634, %v1633
      %v1655 = vpack.c.bf16 %v1636, %v1635
      %v1656 = vpack.c.bf16 %v1638, %v1637
      %v1657 = vpack.c.bf16 %v1640, %v1639
      %v1658 = vpack.c.bf16 %v1642, %v1641
      %v1659 = vld [vmem:[%s1 + $0x80] sm:$0xf]
      %v1660 = vld [vmem:[%s1 + $0x84] sm:$0xf]
      %v1661 = vld [vmem:[%s1 + $0x88] sm:$0xf]
      %v1662 = vld [vmem:[%s1 + $0x8c] sm:$0xf]
      %v1663 = vld [vmem:[%s1 + $0x90] sm:$0xf]
      %v1664 = vld [vmem:[%s1 + $0x94] sm:$0xf]
      %v1665 = vld [vmem:[%s1 + $0x98] sm:$0xf]
      %v1666 = vld [vmem:[%s1 + $0x9c] sm:$0xf]
      %v1675 = vunpack.c.l.b16 %v1659
      %v1676 = vunpack.c.l.b16 %v1660
      %v1677 = vunpack.c.l.b16 %v1661
      %v1678 = vunpack.c.l.b16 %v1662
      %v1679 = vunpack.c.l.b16 %v1663
      %v1680 = vunpack.c.l.b16 %v1664
      %v1681 = vunpack.c.l.b16 %v1665
      %v1682 = vunpack.c.l.b16 %v1666
      %v1683 = vpack.c.b16 %v1676, %v1675
      %v1684 = vpack.c.b16 %v1678, %v1677
      %v1685 = vpack.c.b16 %v1680, %v1679
      %v1686 = vpack.c.b16 %v1682, %v1681
      %v1692 = vsel %vm280, %v1643, 0
      %v1695 = vsel %vm280, %v1644, 0
      %v1698 = vsel %vm280, %v1645, 0
      %v1701 = vsel %vm280, %v1646, 0
      %v1704 = vsel %vm280, %v1647, 0
      %v1707 = vsel %vm280, %v1648, 0
      %v1710 = vsel %vm280, %v1649, 0
      %v1713 = vsel %vm280, %v1650, 0
      %v1716 = vsel %vm280, %v1651, 0
      %v1719 = vsel %vm280, %v1652, 0
      %v1722 = vsel %vm280, %v1653, 0
      %v1725 = vsel %vm280, %v1654, 0
      %v1728 = vsel %vm280, %v1655, 0
      %v1731 = vsel %vm280, %v1656, 0
      %v1734 = vsel %vm280, %v1657, 0
      %v1737 = vsel %vm280, %v1658, 0
      %1739 = vmatprep.subr.bf16.mxu0 0
      %1740 = vmatpush1.bf16.msra.mxu0 %v1683
      %1741 = vmatprep.subr.bf16.mxu0 0
      %1742 = vmatpush1.bf16.msra.mxu0 %v1684
      %1743 = vmatprep.subr.bf16.mxu0 0
      %1744 = vmatpush1.bf16.msra.mxu0 %v1685
      %1745 = vmatprep.subr.bf16.mxu0 0
      %1746 = vmatpush1.bf16.msra.mxu0 %v1686
      %1747 = vmatprep.subr.bf16.mxu0 0
      %1748 = vmatpush1.bf16.msra.mxu0 0
      %1749 = vmatprep.subr.bf16.mxu0 0
      %1750 = vmatpush1.bf16.msra.mxu0 0
      %1751 = vmatprep.subr.bf16.mxu0 0
      %1752 = vmatpush1.bf16.msra.mxu0 0
      %1753 = vmatprep.subr.bf16.mxu0 0
      %1754 = vmatpush1.bf16.msra.mxu0 0
      %1755 = vmatprep.subr.bf16.mxu0 0
      %1756 = vmatpush1.bf16.msra.mxu0 0
      %1757 = vmatprep.subr.bf16.mxu0 0
      %1758 = vmatpush1.bf16.msra.mxu0 0
      %1759 = vmatprep.subr.bf16.mxu0 0
      %1760 = vmatpush1.bf16.msra.mxu0 0
      %1761 = vmatprep.subr.bf16.mxu0 0
      %1762 = vmatpush1.bf16.msra.mxu0 0
      %1763 = vmatprep.subr.bf16.mxu0 0
      %1764 = vmatpush1.bf16.msra.mxu0 0
      %1765 = vmatprep.subr.bf16.mxu0 0
      %1766 = vmatpush1.bf16.msra.mxu0 0
      %1767 = vmatprep.subr.bf16.mxu0 0
      %1768 = vmatpush1.bf16.msra.mxu0 0
      %1769 = vmatprep.subr.bf16.mxu0 0
      %1770 = vmatpush1.bf16.msra.mxu0 0
      %1771 = vmatprep.mubr.bf16.mxu0 0
      %1772 = vmatmul.mubr.bf16.gmra.mrb[0].mxu0 %v1692
      %v1773 = vpop.f32.mrb[0].mxu0
      %v1774 = vadd.f32 0.0, %v1773
      %v1775 = vpop.f32.mrb[0].mxu0
      %v1776 = vpop.f32.mrb[0].mxu0
      %v1777 = vadd.f32 0.0, %v1776
      %v1778 = vpop.f32.mrb[0].mxu0
      %1779 = vmatprep.mubr.bf16.mxu0 0
      %1780 = vmatmul.mubr.bf16.gmra.mrb[0].mxu0 %v1695
      %v1781 = vpop.f32.mrb[0].mxu0
      %v1782 = vadd.f32 0.0, %v1781
      %v1783 = vpop.f32.mrb[0].mxu0
      %v1784 = vpop.f32.mrb[0].mxu0
      %v1785 = vadd.f32 0.0, %v1784
      %v1786 = vpop.f32.mrb[0].mxu0
      %1787 = vmatprep.mubr.bf16.mxu0 0
      %1788 = vmatmul.mubr.bf16.gmra.mrb[0].mxu0 %v1698
      %v1789 = vpop.f32.mrb[0].mxu0
      %v1790 = vadd.f32 0.0, %v1789
      %v1791 = vpop.f32.mrb[0].mxu0
      %v1792 = vpop.f32.mrb[0].mxu0
      %v1793 = vadd.f32 0.0, %v1792
      %v1794 = vpop.f32.mrb[0].mxu0
      %1795 = vmatprep.mubr.bf16.mxu0 0
      %1796 = vmatmul.mubr.bf16.gmra.mrb[0].mxu0 %v1701
      %v1797 = vpop.f32.mrb[0].mxu0
      %v1798 = vadd.f32 0.0, %v1797
      %v1799 = vpop.f32.mrb[0].mxu0
      %v1800 = vpop.f32.mrb[0].mxu0
      %v1801 = vadd.f32 0.0, %v1800
      %v1802 = vpop.f32.mrb[0].mxu0
      %1803 = vmatprep.mubr.bf16.mxu0 0
      %1804 = vmatmul.mubr.bf16.gmra.mrb[0].mxu0 %v1704
      %v1805 = vpop.f32.mrb[0].mxu0
      %v1806 = vadd.f32 0.0, %v1805
      %v1807 = vpop.f32.mrb[0].mxu0
      %v1808 = vpop.f32.mrb[0].mxu0
      %v1809 = vadd.f32 0.0, %v1808
      %v1810 = vpop.f32.mrb[0].mxu0
      %1811 = vmatprep.mubr.bf16.mxu0 0
      %1812 = vmatmul.mubr.bf16.gmra.mrb[0].mxu0 %v1707
      %v1813 = vpop.f32.mrb[0].mxu0
      %v1814 = vadd.f32 0.0, %v1813
      %v1815 = vpop.f32.mrb[0].mxu0
      %v1816 = vpop.f32.mrb[0].mxu0
      %v1817 = vadd.f32 0.0, %v1816
      %v1818 = vpop.f32.mrb[0].mxu0
      %1819 = vmatprep.mubr.bf16.mxu0 0
      %1820 = vmatmul.mubr.bf16.gmra.mrb[0].mxu0 %v1710
      %v1821 = vpop.f32.mrb[0].mxu0
      %v1822 = vadd.f32 0.0, %v1821
      %v1823 = vpop.f32.mrb[0].mxu0
      %v1824 = vpop.f32.mrb[0].mxu0
      %v1825 = vadd.f32 0.0, %v1824
      %v1826 = vpop.f32.mrb[0].mxu0
      %1827 = vmatprep.mubr.bf16.mxu0 0
      %1828 = vmatmul.mubr.bf16.gmra.mrb[0].mxu0 %v1713
      %v1829 = vpop.f32.mrb[0].mxu0
      %v1830 = vadd.f32 0.0, %v1829
      %v1831 = vpop.f32.mrb[0].mxu0
      %v1832 = vpop.f32.mrb[0].mxu0
      %v1833 = vadd.f32 0.0, %v1832
      %v1834 = vpop.f32.mrb[0].mxu0
      %1835 = vmatprep.mubr.bf16.mxu0 0
      %1836 = vmatmul.mubr.bf16.gmra.mrb[0].mxu0 %v1716
      %v1837 = vpop.f32.mrb[0].mxu0
      %v1838 = vadd.f32 0.0, %v1837
      %v1839 = vpop.f32.mrb[0].mxu0
      %v1840 = vpop.f32.mrb[0].mxu0
      %v1841 = vadd.f32 0.0, %v1840
      %v1842 = vpop.f32.mrb[0].mxu0
      %1843 = vmatprep.mubr.bf16.mxu0 0
      %1844 = vmatmul.mubr.bf16.gmra.mrb[0].mxu0 %v1719
      %v1845 = vpop.f32.mrb[0].mxu0
      %v1846 = vadd.f32 0.0, %v1845
      %v1847 = vpop.f32.mrb[0].mxu0
      %v1848 = vpop.f32.mrb[0].mxu0
      %v1849 = vadd.f32 0.0, %v1848
      %v1850 = vpop.f32.mrb[0].mxu0
      %1851 = vmatprep.mubr.bf16.mxu0 0
      %1852 = vmatmul.mubr.bf16.gmra.mrb[0].mxu0 %v1722
      %v1853 = vpop.f32.mrb[0].mxu0
      %v1854 = vadd.f32 0.0, %v1853
      %v1855 = vpop.f32.mrb[0].mxu0
      %v1856 = vpop.f32.mrb[0].mxu0
      %v1857 = vadd.f32 0.0, %v1856
      %v1858 = vpop.f32.mrb[0].mxu0
      %1859 = vmatprep.mubr.bf16.mxu0 0
      %1860 = vmatmul.mubr.bf16.gmra.mrb[0].mxu0 %v1725
      %v1861 = vpop.f32.mrb[0].mxu0
      %v1862 = vadd.f32 0.0, %v1861
      %v1863 = vpop.f32.mrb[0].mxu0
      %v1864 = vpop.f32.mrb[0].mxu0
      %v1865 = vadd.f32 0.0, %v1864
      %v1866 = vpop.f32.mrb[0].mxu0
      %1867 = vmatprep.mubr.bf16.mxu0 0
      %1868 = vmatmul.mubr.bf16.gmra.mrb[0].mxu0 %v1728
      %v1869 = vpop.f32.mrb[0].mxu0
      %v1870 = vadd.f32 0.0, %v1869
      %v1871 = vpop.f32.mrb[0].mxu0
      %v1872 = vpop.f32.mrb[0].mxu0
      %v1873 = vadd.f32 0.0, %v1872
      %v1874 = vpop.f32.mrb[0].mxu0
      %1875 = vmatprep.mubr.bf16.mxu0 0
      %1876 = vmatmul.mubr.bf16.gmra.mrb[0].mxu0 %v1731
      %v1877 = vpop.f32.mrb[0].mxu0
      %v1878 = vadd.f32 0.0, %v1877
      %v1879 = vpop.f32.mrb[0].mxu0
      %v1880 = vpop.f32.mrb[0].mxu0
      %v1881 = vadd.f32 0.0, %v1880
      %v1882 = vpop.f32.mrb[0].mxu0
      %1883 = vmatprep.mubr.bf16.mxu0 0
      %1884 = vmatmul.mubr.bf16.gmra.mrb[0].mxu0 %v1734
      %v1885 = vpop.f32.mrb[0].mxu0
      %v1886 = vadd.f32 0.0, %v1885
      %v1887 = vpop.f32.mrb[0].mxu0
      %v1888 = vpop.f32.mrb[0].mxu0
      %v1889 = vadd.f32 0.0, %v1888
      %v1890 = vpop.f32.mrb[0].mxu0
      %1891 = vmatprep.mubr.bf16.mxu0 0
      %1892 = vmatmul.mubr.bf16.gmra.mrb[0].mxu0 %v1737
      %v1893 = vpop.f32.mrb[0].mxu0
      %v1894 = vadd.f32 0.0, %v1893
      %v1895 = vpop.f32.mrb[0].mxu0
      %v1896 = vpop.f32.mrb[0].mxu0
      %v1897 = vadd.f32 0.0, %v1896
      %v1898 = vpop.f32.mrb[0].mxu0
      %1899 = vdwg.mxu0
      %v1900 = vadd.f32 %v1579, %v1774
      %v1901 = vadd.f32 %v1580, %v1777
      %v1902 = vadd.f32 %v1581, %v1782
      %v1903 = vadd.f32 %v1582, %v1785
      %v1904 = vadd.f32 %v1583, %v1790
      %v1905 = vadd.f32 %v1584, %v1793
      %v1906 = vadd.f32 %v1585, %v1798
      %v1907 = vadd.f32 %v1586, %v1801
      %v1908 = vadd.f32 %v1587, %v1806
      %v1909 = vadd.f32 %v1588, %v1809
      %v1910 = vadd.f32 %v1589, %v1814
      %v1911 = vadd.f32 %v1590, %v1817
      %v1912 = vadd.f32 %v1591, %v1822
      %v1913 = vadd.f32 %v1592, %v1825
      %v1914 = vadd.f32 %v1593, %v1830
      %v1915 = vadd.f32 %v1594, %v1833
      %v1916 = vadd.f32 %v1595, %v1838
      %v1917 = vadd.f32 %v1596, %v1841
      %v1918 = vadd.f32 %v1597, %v1846
      %v1919 = vadd.f32 %v1598, %v1849
      %v1920 = vadd.f32 %v1599, %v1854
      %v1921 = vadd.f32 %v1600, %v1857
      %v1922 = vadd.f32 %v1601, %v1862
      %v1923 = vadd.f32 %v1602, %v1865
      %v1924 = vadd.f32 %v1603, %v1870
      %v1925 = vadd.f32 %v1604, %v1873
      %v1926 = vadd.f32 %v1605, %v1878
      %v1927 = vadd.f32 %v1606, %v1881
      %v1928 = vadd.f32 %v1607, %v1886
      %v1929 = vadd.f32 %v1608, %v1889
      %v1930 = vadd.f32 %v1609, %v1894
      %v1931 = vadd.f32 %v1610, %v1897
      %v1932 = vld [vmem:[%s358 + $0x2] sm:$0xff]
      %v1933 = vld [vmem:[%s358 + $0xa] sm:$0xff]
      %v1934 = vld [vmem:[%s358 + $0x1a] sm:$0xff]
      %v1935 = vld [vmem:[%s358 + $0x22] sm:$0xff]
      %v1936 = vld [vmem:[%s358 + $0x32] sm:$0xff]
      %v1937 = vld [vmem:[%s358 + $0x3a] sm:$0xff]
      %v1938 = vld [vmem:[%s358 + $0x4a] sm:$0xff]
      %v1939 = vld [vmem:[%s358 + $0x52] sm:$0xff]
      %v1940 = vld [vmem:[%s358 + $0x62] sm:$0xff]
      %v1941 = vld [vmem:[%s358 + $0x6a] sm:$0xff]
      %v1942 = vld [vmem:[%s358 + $0x7a] sm:$0xff]
      %v1943 = vld [vmem:[%s358 + $0x82] sm:$0xff]
      %v1944 = vld [vmem:[%s358 + $0x92] sm:$0xff]
      %v1945 = vld [vmem:[%s358 + $0x9a] sm:$0xff]
      %v1946 = vld [vmem:[%s358 + $0xaa] sm:$0xff]
      %v1947 = vld [vmem:[%s358 + $0xb2] sm:$0xff]
      %v1948 = vld [vmem:[%s358 + $0xc2] sm:$0xff]
      %v1949 = vld [vmem:[%s358 + $0xca] sm:$0xff]
      %v1950 = vld [vmem:[%s358 + $0xda] sm:$0xff]
      %v1951 = vld [vmem:[%s358 + $0xe2] sm:$0xff]
      %v1952 = vld [vmem:[%s358 + $0xf2] sm:$0xff]
      %v1953 = vld [vmem:[%s358 + $0xfa] sm:$0xff]
      %v1954 = vld [vmem:[%s358 + $0x10a] sm:$0xff]
      %v1955 = vld [vmem:[%s358 + $0x112] sm:$0xff]
      %v1956 = vld [vmem:[%s358 + $0x122] sm:$0xff]
      %v1957 = vld [vmem:[%s358 + $0x12a] sm:$0xff]
      %v1958 = vld [vmem:[%s358 + $0x13a] sm:$0xff]
      %v1959 = vld [vmem:[%s358 + $0x142] sm:$0xff]
      %v1960 = vld [vmem:[%s358 + $0x152] sm:$0xff]
      %v1961 = vld [vmem:[%s358 + $0x15a] sm:$0xff]
      %v1962 = vld [vmem:[%s358 + $0x16a] sm:$0xff]
      %v1963 = vld [vmem:[%s358 + $0x172] sm:$0xff]
      %v1964 = vpack.c.bf16 %v1933, %v1932
      %v1965 = vpack.c.bf16 %v1935, %v1934
      %v1966 = vpack.c.bf16 %v1937, %v1936
      %v1967 = vpack.c.bf16 %v1939, %v1938
      %v1968 = vpack.c.bf16 %v1941, %v1940
      %v1969 = vpack.c.bf16 %v1943, %v1942
      %v1970 = vpack.c.bf16 %v1945, %v1944
      %v1971 = vpack.c.bf16 %v1947, %v1946
      %v1972 = vpack.c.bf16 %v1949, %v1948
      %v1973 = vpack.c.bf16 %v1951, %v1950
      %v1974 = vpack.c.bf16 %v1953, %v1952
      %v1975 = vpack.c.bf16 %v1955, %v1954
      %v1976 = vpack.c.bf16 %v1957, %v1956
      %v1977 = vpack.c.bf16 %v1959, %v1958
      %v1978 = vpack.c.bf16 %v1961, %v1960
      %v1979 = vpack.c.bf16 %v1963, %v1962
      %v1980 = vld [vmem:[%s1 + $0xa0] sm:$0xf]
      %v1981 = vld [vmem:[%s1 + $0xa4] sm:$0xf]
      %v1982 = vld [vmem:[%s1 + $0xa8] sm:$0xf]
      %v1983 = vld [vmem:[%s1 + $0xac] sm:$0xf]
      %v1984 = vld [vmem:[%s1 + $0xb0] sm:$0xf]
      %v1985 = vld [vmem:[%s1 + $0xb4] sm:$0xf]
      %v1986 = vld [vmem:[%s1 + $0xb8] sm:$0xf]
      %v1987 = vld [vmem:[%s1 + $0xbc] sm:$0xf]
      %v1996 = vunpack.c.l.b16 %v1980
      %v1997 = vunpack.c.l.b16 %v1981
      %v1998 = vunpack.c.l.b16 %v1982
      %v1999 = vunpack.c.l.b16 %v1983
      %v2000 = vunpack.c.l.b16 %v1984
      %v2001 = vunpack.c.l.b16 %v1985
      %v2002 = vunpack.c.l.b16 %v1986
      %v2003 = vunpack.c.l.b16 %v1987
      %v2004 = vpack.c.b16 %v1997, %v1996
      %v2005 = vpack.c.b16 %v1999, %v1998
      %v2006 = vpack.c.b16 %v2001, %v2000
      %v2007 = vpack.c.b16 %v2003, %v2002
      %v2013 = vsel %vm280, %v1964, 0
      %v2016 = vsel %vm280, %v1965, 0
      %v2019 = vsel %vm280, %v1966, 0
      %v2022 = vsel %vm280, %v1967, 0
      %v2025 = vsel %vm280, %v1968, 0
      %v2028 = vsel %vm280, %v1969, 0
      %v2031 = vsel %vm280, %v1970, 0
      %v2034 = vsel %vm280, %v1971, 0
      %v2037 = vsel %vm280, %v1972, 0
      %v2040 = vsel %vm280, %v1973, 0
      %v2043 = vsel %vm280, %v1974, 0
      %v2046 = vsel %vm280, %v1975, 0
      %v2049 = vsel %vm280, %v1976, 0
      %v2052 = vsel %vm280, %v1977, 0
      %v2055 = vsel %vm280, %v1978, 0
      %v2058 = vsel %vm280, %v1979, 0
      %2060 = vmatprep.subr.bf16.mxu0 0
      %2061 = vmatpush1.bf16.msra.mxu0 %v2004
      %2062 = vmatprep.subr.bf16.mxu0 0
      %2063 = vmatpush1.bf16.msra.mxu0 %v2005
      %2064 = vmatprep.subr.bf16.mxu0 0
      %2065 = vmatpush1.bf16.msra.mxu0 %v2006
      %2066 = vmatprep.subr.bf16.mxu0 0
      %2067 = vmatpush1.bf16.msra.mxu0 %v2007
      %2068 = vmatprep.subr.bf16.mxu0 0
      %2069 = vmatpush1.bf16.msra.mxu0 0
      %2070 = vmatprep.subr.bf16.mxu0 0
      %2071 = vmatpush1.bf16.msra.mxu0 0
      %2072 = vmatprep.subr.bf16.mxu0 0
      %2073 = vmatpush1.bf16.msra.mxu0 0
      %2074 = vmatprep.subr.bf16.mxu0 0
      %2075 = vmatpush1.bf16.msra.mxu0 0
      %2076 = vmatprep.subr.bf16.mxu0 0
      %2077 = vmatpush1.bf16.msra.mxu0 0
      %2078 = vmatprep.subr.bf16.mxu0 0
      %2079 = vmatpush1.bf16.msra.mxu0 0
      %2080 = vmatprep.subr.bf16.mxu0 0
      %2081 = vmatpush1.bf16.msra.mxu0 0
      %2082 = vmatprep.subr.bf16.mxu0 0
      %2083 = vmatpush1.bf16.msra.mxu0 0
      %2084 = vmatprep.subr.bf16.mxu0 0
      %2085 = vmatpush1.bf16.msra.mxu0 0
      %2086 = vmatprep.subr.bf16.mxu0 0
      %2087 = vmatpush1.bf16.msra.mxu0 0
      %2088 = vmatprep.subr.bf16.mxu0 0
      %2089 = vmatpush1.bf16.msra.mxu0 0
      %2090 = vmatprep.subr.bf16.mxu0 0
      %2091 = vmatpush1.bf16.msra.mxu0 0
      %2092 = vmatprep.mubr.bf16.mxu0 0
      %2093 = vmatmul.mubr.bf16.gmra.mrb[0].mxu0 %v2013
      %v2094 = vpop.f32.mrb[0].mxu0
      %v2095 = vadd.f32 0.0, %v2094
      %v2096 = vpop.f32.mrb[0].mxu0
      %v2097 = vpop.f32.mrb[0].mxu0
      %v2098 = vadd.f32 0.0, %v2097
      %v2099 = vpop.f32.mrb[0].mxu0
      %2100 = vmatprep.mubr.bf16.mxu0 0
      %2101 = vmatmul.mubr.bf16.gmra.mrb[0].mxu0 %v2016
      %v2102 = vpop.f32.mrb[0].mxu0
      %v2103 = vadd.f32 0.0, %v2102
      %v2104 = vpop.f32.mrb[0].mxu0
      %v2105 = vpop.f32.mrb[0].mxu0
      %v2106 = vadd.f32 0.0, %v2105
      %v2107 = vpop.f32.mrb[0].mxu0
      %2108 = vmatprep.mubr.bf16.mxu0 0
      %2109 = vmatmul.mubr.bf16.gmra.mrb[0].mxu0 %v2019
      %v2110 = vpop.f32.mrb[0].mxu0
      %v2111 = vadd.f32 0.0, %v2110
      %v2112 = vpop.f32.mrb[0].mxu0
      %v2113 = vpop.f32.mrb[0].mxu0
      %v2114 = vadd.f32 0.0, %v2113
      %v2115 = vpop.f32.mrb[0].mxu0
      %2116 = vmatprep.mubr.bf16.mxu0 0
      %2117 = vmatmul.mubr.bf16.gmra.mrb[0].mxu0 %v2022
      %v2118 = vpop.f32.mrb[0].mxu0
      %v2119 = vadd.f32 0.0, %v2118
      %v2120 = vpop.f32.mrb[0].mxu0
      %v2121 = vpop.f32.mrb[0].mxu0
      %v2122 = vadd.f32 0.0, %v2121
      %v2123 = vpop.f32.mrb[0].mxu0
      %2124 = vmatprep.mubr.bf16.mxu0 0
      %2125 = vmatmul.mubr.bf16.gmra.mrb[0].mxu0 %v2025
      %v2126 = vpop.f32.mrb[0].mxu0
      %v2127 = vadd.f32 0.0, %v2126
      %v2128 = vpop.f32.mrb[0].mxu0
      %v2129 = vpop.f32.mrb[0].mxu0
      %v2130 = vadd.f32 0.0, %v2129
      %v2131 = vpop.f32.mrb[0].mxu0
      %2132 = vmatprep.mubr.bf16.mxu0 0
      %2133 = vmatmul.mubr.bf16.gmra.mrb[0].mxu0 %v2028
      %v2134 = vpop.f32.mrb[0].mxu0
      %v2135 = vadd.f32 0.0, %v2134
      %v2136 = vpop.f32.mrb[0].mxu0
      %v2137 = vpop.f32.mrb[0].mxu0
      %v2138 = vadd.f32 0.0, %v2137
      %v2139 = vpop.f32.mrb[0].mxu0
      %2140 = vmatprep.mubr.bf16.mxu0 0
      %2141 = vmatmul.mubr.bf16.gmra.mrb[0].mxu0 %v2031
      %v2142 = vpop.f32.mrb[0].mxu0
      %v2143 = vadd.f32 0.0, %v2142
      %v2144 = vpop.f32.mrb[0].mxu0
      %v2145 = vpop.f32.mrb[0].mxu0
      %v2146 = vadd.f32 0.0, %v2145
      %v2147 = vpop.f32.mrb[0].mxu0
      %2148 = vmatprep.mubr.bf16.mxu0 0
      %2149 = vmatmul.mubr.bf16.gmra.mrb[0].mxu0 %v2034
      %v2150 = vpop.f32.mrb[0].mxu0
      %v2151 = vadd.f32 0.0, %v2150
      %v2152 = vpop.f32.mrb[0].mxu0
      %v2153 = vpop.f32.mrb[0].mxu0
      %v2154 = vadd.f32 0.0, %v2153
      %v2155 = vpop.f32.mrb[0].mxu0
      %2156 = vmatprep.mubr.bf16.mxu0 0
      %2157 = vmatmul.mubr.bf16.gmra.mrb[0].mxu0 %v2037
      %v2158 = vpop.f32.mrb[0].mxu0
      %v2159 = vadd.f32 0.0, %v2158
      %v2160 = vpop.f32.mrb[0].mxu0
      %v2161 = vpop.f32.mrb[0].mxu0
      %v2162 = vadd.f32 0.0, %v2161
      %v2163 = vpop.f32.mrb[0].mxu0
      %2164 = vmatprep.mubr.bf16.mxu0 0
      %2165 = vmatmul.mubr.bf16.gmra.mrb[0].mxu0 %v2040
      %v2166 = vpop.f32.mrb[0].mxu0
      %v2167 = vadd.f32 0.0, %v2166
      %v2168 = vpop.f32.mrb[0].mxu0
      %v2169 = vpop.f32.mrb[0].mxu0
      %v2170 = vadd.f32 0.0, %v2169
      %v2171 = vpop.f32.mrb[0].mxu0
      %2172 = vmatprep.mubr.bf16.mxu0 0
      %2173 = vmatmul.mubr.bf16.gmra.mrb[0].mxu0 %v2043
      %v2174 = vpop.f32.mrb[0].mxu0
      %v2175 = vadd.f32 0.0, %v2174
      %v2176 = vpop.f32.mrb[0].mxu0
      %v2177 = vpop.f32.mrb[0].mxu0
      %v2178 = vadd.f32 0.0, %v2177
      %v2179 = vpop.f32.mrb[0].mxu0
      %2180 = vmatprep.mubr.bf16.mxu0 0
      %2181 = vmatmul.mubr.bf16.gmra.mrb[0].mxu0 %v2046
      %v2182 = vpop.f32.mrb[0].mxu0
      %v2183 = vadd.f32 0.0, %v2182
      %v2184 = vpop.f32.mrb[0].mxu0
      %v2185 = vpop.f32.mrb[0].mxu0
      %v2186 = vadd.f32 0.0, %v2185
      %v2187 = vpop.f32.mrb[0].mxu0
      %2188 = vmatprep.mubr.bf16.mxu0 0
      %2189 = vmatmul.mubr.bf16.gmra.mrb[0].mxu0 %v2049
      %v2190 = vpop.f32.mrb[0].mxu0
      %v2191 = vadd.f32 0.0, %v2190
      %v2192 = vpop.f32.mrb[0].mxu0
      %v2193 = vpop.f32.mrb[0].mxu0
      %v2194 = vadd.f32 0.0, %v2193
      %v2195 = vpop.f32.mrb[0].mxu0
      %2196 = vmatprep.mubr.bf16.mxu0 0
      %2197 = vmatmul.mubr.bf16.gmra.mrb[0].mxu0 %v2052
      %v2198 = vpop.f32.mrb[0].mxu0
      %v2199 = vadd.f32 0.0, %v2198
      %v2200 = vpop.f32.mrb[0].mxu0
      %v2201 = vpop.f32.mrb[0].mxu0
      %v2202 = vadd.f32 0.0, %v2201
      %v2203 = vpop.f32.mrb[0].mxu0
      %2204 = vmatprep.mubr.bf16.mxu0 0
      %2205 = vmatmul.mubr.bf16.gmra.mrb[0].mxu0 %v2055
      %v2206 = vpop.f32.mrb[0].mxu0
      %v2207 = vadd.f32 0.0, %v2206
      %v2208 = vpop.f32.mrb[0].mxu0
      %v2209 = vpop.f32.mrb[0].mxu0
      %v2210 = vadd.f32 0.0, %v2209
      %v2211 = vpop.f32.mrb[0].mxu0
      %2212 = vmatprep.mubr.bf16.mxu0 0
      %2213 = vmatmul.mubr.bf16.gmra.mrb[0].mxu0 %v2058
      %v2214 = vpop.f32.mrb[0].mxu0
      %v2215 = vadd.f32 0.0, %v2214
      %v2216 = vpop.f32.mrb[0].mxu0
      %v2217 = vpop.f32.mrb[0].mxu0
      %v2218 = vadd.f32 0.0, %v2217
      %v2219 = vpop.f32.mrb[0].mxu0
      %2220 = vdwg.mxu0
      %v2221 = vadd.f32 %v1900, %v2095
      %v2222 = vadd.f32 %v1901, %v2098
      %v2223 = vadd.f32 %v1902, %v2103
      %v2224 = vadd.f32 %v1903, %v2106
      %v2225 = vadd.f32 %v1904, %v2111
      %v2226 = vadd.f32 %v1905, %v2114
      %v2227 = vadd.f32 %v1906, %v2119
      %v2228 = vadd.f32 %v1907, %v2122
      %v2229 = vadd.f32 %v1908, %v2127
      %v2230 = vadd.f32 %v1909, %v2130
      %v2231 = vadd.f32 %v1910, %v2135
      %v2232 = vadd.f32 %v1911, %v2138
      %v2233 = vadd.f32 %v1912, %v2143
      %v2234 = vadd.f32 %v1913, %v2146
      %v2235 = vadd.f32 %v1914, %v2151
      %v2236 = vadd.f32 %v1915, %v2154
      %v2237 = vadd.f32 %v1916, %v2159
      %v2238 = vadd.f32 %v1917, %v2162
      %v2239 = vadd.f32 %v1918, %v2167
      %v2240 = vadd.f32 %v1919, %v2170
      %v2241 = vadd.f32 %v1920, %v2175
      %v2242 = vadd.f32 %v1921, %v2178
      %v2243 = vadd.f32 %v1922, %v2183
      %v2244 = vadd.f32 %v1923, %v2186
      %v2245 = vadd.f32 %v1924, %v2191
      %v2246 = vadd.f32 %v1925, %v2194
      %v2247 = vadd.f32 %v1926, %v2199
      %v2248 = vadd.f32 %v1927, %v2202
      %v2249 = vadd.f32 %v1928, %v2207
      %v2250 = vadd.f32 %v1929, %v2210
      %v2251 = vadd.f32 %v1930, %v2215
      %v2252 = vadd.f32 %v1931, %v2218
      %s2253 = scalar_lea.vmem [#allocation2], 48
      %v2254 = vld [vmem:[%s2253] sm:$0xff]
      %v2255 = vld [vmem:[%s2253 + $0x8] sm:$0xff]
      %v2256 = vld [vmem:[%s2253 + $0x18] sm:$0xff]
      %v2257 = vld [vmem:[%s2253 + $0x20] sm:$0xff]
      %v2258 = vld [vmem:[%s2253 + $0x30] sm:$0xff]
      %v2259 = vld [vmem:[%s2253 + $0x38] sm:$0xff]
      %v2260 = vld [vmem:[%s2253 + $0x48] sm:$0xff]
      %v2261 = vld [vmem:[%s2253 + $0x50] sm:$0xff]
      %v2262 = vld [vmem:[%s2253 + $0x60] sm:$0xff]
      %v2263 = vld [vmem:[%s2253 + $0x68] sm:$0xff]
      %v2264 = vld [vmem:[%s2253 + $0x78] sm:$0xff]
      %v2265 = vld [vmem:[%s2253 + $0x80] sm:$0xff]
      %v2266 = vld [vmem:[%s2253 + $0x90] sm:$0xff]
      %v2267 = vld [vmem:[%s2253 + $0x98] sm:$0xff]
      %v2268 = vld [vmem:[%s2253 + $0xa8] sm:$0xff]
      %v2269 = vld [vmem:[%s2253 + $0xb0] sm:$0xff]
      %v2270 = vld [vmem:[%s2253 + $0xc0] sm:$0xff]
      %v2271 = vld [vmem:[%s2253 + $0xc8] sm:$0xff]
      %v2272 = vld [vmem:[%s2253 + $0xd8] sm:$0xff]
      %v2273 = vld [vmem:[%s2253 + $0xe0] sm:$0xff]
      %v2274 = vld [vmem:[%s2253 + $0xf0] sm:$0xff]
      %v2275 = vld [vmem:[%s2253 + $0xf8] sm:$0xff]
      %v2276 = vld [vmem:[%s2253 + $0x108] sm:$0xff]
      %v2277 = vld [vmem:[%s2253 + $0x110] sm:$0xff]
      %v2278 = vld [vmem:[%s2253 + $0x120] sm:$0xff]
      %v2279 = vld [vmem:[%s2253 + $0x128] sm:$0xff]
      %v2280 = vld [vmem:[%s2253 + $0x138] sm:$0xff]
      %v2281 = vld [vmem:[%s2253 + $0x140] sm:$0xff]
      %v2282 = vld [vmem:[%s2253 + $0x150] sm:$0xff]
      %v2283 = vld [vmem:[%s2253 + $0x158] sm:$0xff]
      %v2284 = vld [vmem:[%s2253 + $0x168] sm:$0xff]
      %v2285 = vld [vmem:[%s2253 + $0x170] sm:$0xff]
      %v2286 = vpack.c.bf16 %v2255, %v2254
      %v2287 = vpack.c.bf16 %v2257, %v2256
      %v2288 = vpack.c.bf16 %v2259, %v2258
      %v2289 = vpack.c.bf16 %v2261, %v2260
      %v2290 = vpack.c.bf16 %v2263, %v2262
      %v2291 = vpack.c.bf16 %v2265, %v2264
      %v2292 = vpack.c.bf16 %v2267, %v2266
      %v2293 = vpack.c.bf16 %v2269, %v2268
      %v2294 = vpack.c.bf16 %v2271, %v2270
      %v2295 = vpack.c.bf16 %v2273, %v2272
      %v2296 = vpack.c.bf16 %v2275, %v2274
      %v2297 = vpack.c.bf16 %v2277, %v2276
      %v2298 = vpack.c.bf16 %v2279, %v2278
      %v2299 = vpack.c.bf16 %v2281, %v2280
      %v2300 = vpack.c.bf16 %v2283, %v2282
      %v2301 = vpack.c.bf16 %v2285, %v2284
      %v2302 = vld [vmem:[%s1 + $0xc0] sm:$0xf]
      %v2303 = vld [vmem:[%s1 + $0xc4] sm:$0xf]
      %v2304 = vld [vmem:[%s1 + $0xc8] sm:$0xf]
      %v2305 = vld [vmem:[%s1 + $0xcc] sm:$0xf]
      %v2306 = vld [vmem:[%s1 + $0xd0] sm:$0xf]
      %v2307 = vld [vmem:[%s1 + $0xd4] sm:$0xf]
      %v2308 = vld [vmem:[%s1 + $0xd8] sm:$0xf]
      %v2309 = vld [vmem:[%s1 + $0xdc] sm:$0xf]
      %v2318 = vunpack.c.l.b16 %v2302
      %v2319 = vunpack.c.l.b16 %v2303
      %v2320 = vunpack.c.l.b16 %v2304
      %v2321 = vunpack.c.l.b16 %v2305
      %v2322 = vunpack.c.l.b16 %v2306
      %v2323 = vunpack.c.l.b16 %v2307
      %v2324 = vunpack.c.l.b16 %v2308
      %v2325 = vunpack.c.l.b16 %v2309
      %v2326 = vpack.c.b16 %v2319, %v2318
      %v2327 = vpack.c.b16 %v2321, %v2320
      %v2328 = vpack.c.b16 %v2323, %v2322
      %v2329 = vpack.c.b16 %v2325, %v2324
      %v2335 = vsel %vm280, %v2286, 0
      %v2338 = vsel %vm280, %v2287, 0
      %v2341 = vsel %vm280, %v2288, 0
      %v2344 = vsel %vm280, %v2289, 0
      %v2347 = vsel %vm280, %v2290, 0
      %v2350 = vsel %vm280, %v2291, 0
      %v2353 = vsel %vm280, %v2292, 0
      %v2356 = vsel %vm280, %v2293, 0
      %v2359 = vsel %vm280, %v2294, 0
      %v2362 = vsel %vm280, %v2295, 0
      %v2365 = vsel %vm280, %v2296, 0
      %v2368 = vsel %vm280, %v2297, 0
      %v2371 = vsel %vm280, %v2298, 0
      %v2374 = vsel %vm280, %v2299, 0
      %v2377 = vsel %vm280, %v2300, 0
      %v2380 = vsel %vm280, %v2301, 0
      %2382 = vmatprep.subr.bf16.mxu0 0
      %2383 = vmatpush1.bf16.msra.mxu0 %v2326
      %2384 = vmatprep.subr.bf16.mxu0 0
      %2385 = vmatpush1.bf16.msra.mxu0 %v2327
      %2386 = vmatprep.subr.bf16.mxu0 0
      %2387 = vmatpush1.bf16.msra.mxu0 %v2328
      %2388 = vmatprep.subr.bf16.mxu0 0
      %2389 = vmatpush1.bf16.msra.mxu0 %v2329
      %2390 = vmatprep.subr.bf16.mxu0 0
      %2391 = vmatpush1.bf16.msra.mxu0 0
      %2392 = vmatprep.subr.bf16.mxu0 0
      %2393 = vmatpush1.bf16.msra.mxu0 0
      %2394 = vmatprep.subr.bf16.mxu0 0
      %2395 = vmatpush1.bf16.msra.mxu0 0
      %2396 = vmatprep.subr.bf16.mxu0 0
      %2397 = vmatpush1.bf16.msra.mxu0 0
      %2398 = vmatprep.subr.bf16.mxu0 0
      %2399 = vmatpush1.bf16.msra.mxu0 0
      %2400 = vmatprep.subr.bf16.mxu0 0
      %2401 = vmatpush1.bf16.msra.mxu0 0
      %2402 = vmatprep.subr.bf16.mxu0 0
      %2403 = vmatpush1.bf16.msra.mxu0 0
      %2404 = vmatprep.subr.bf16.mxu0 0
      %2405 = vmatpush1.bf16.msra.mxu0 0
      %2406 = vmatprep.subr.bf16.mxu0 0
      %2407 = vmatpush1.bf16.msra.mxu0 0
      %2408 = vmatprep.subr.bf16.mxu0 0
      %2409 = vmatpush1.bf16.msra.mxu0 0
      %2410 = vmatprep.subr.bf16.mxu0 0
      %2411 = vmatpush1.bf16.msra.mxu0 0
      %2412 = vmatprep.subr.bf16.mxu0 0
      %2413 = vmatpush1.bf16.msra.mxu0 0
      %2414 = vmatprep.mubr.bf16.mxu0 0
      %2415 = vmatmul.mubr.bf16.gmra.mrb[0].mxu0 %v2335
      %v2416 = vpop.f32.mrb[0].mxu0
      %v2417 = vadd.f32 0.0, %v2416
      %v2418 = vpop.f32.mrb[0].mxu0
      %v2419 = vpop.f32.mrb[0].mxu0
      %v2420 = vadd.f32 0.0, %v2419
      %v2421 = vpop.f32.mrb[0].mxu0
      %2422 = vmatprep.mubr.bf16.mxu0 0
      %2423 = vmatmul.mubr.bf16.gmra.mrb[0].mxu0 %v2338
      %v2424 = vpop.f32.mrb[0].mxu0
      %v2425 = vadd.f32 0.0, %v2424
      %v2426 = vpop.f32.mrb[0].mxu0
      %v2427 = vpop.f32.mrb[0].mxu0
      %v2428 = vadd.f32 0.0, %v2427
      %v2429 = vpop.f32.mrb[0].mxu0
      %2430 = vmatprep.mubr.bf16.mxu0 0
      %2431 = vmatmul.mubr.bf16.gmra.mrb[0].mxu0 %v2341
      %v2432 = vpop.f32.mrb[0].mxu0
      %v2433 = vadd.f32 0.0, %v2432
      %v2434 = vpop.f32.mrb[0].mxu0
      %v2435 = vpop.f32.mrb[0].mxu0
      %v2436 = vadd.f32 0.0, %v2435
      %v2437 = vpop.f32.mrb[0].mxu0
      %2438 = vmatprep.mubr.bf16.mxu0 0
      %2439 = vmatmul.mubr.bf16.gmra.mrb[0].mxu0 %v2344
      %v2440 = vpop.f32.mrb[0].mxu0
      %v2441 = vadd.f32 0.0, %v2440
      %v2442 = vpop.f32.mrb[0].mxu0
      %v2443 = vpop.f32.mrb[0].mxu0
      %v2444 = vadd.f32 0.0, %v2443
      %v2445 = vpop.f32.mrb[0].mxu0
      %2446 = vmatprep.mubr.bf16.mxu0 0
      %2447 = vmatmul.mubr.bf16.gmra.mrb[0].mxu0 %v2347
      %v2448 = vpop.f32.mrb[0].mxu0
      %v2449 = vadd.f32 0.0, %v2448
      %v2450 = vpop.f32.mrb[0].mxu0
      %v2451 = vpop.f32.mrb[0].mxu0
      %v2452 = vadd.f32 0.0, %v2451
      %v2453 = vpop.f32.mrb[0].mxu0
      %2454 = vmatprep.mubr.bf16.mxu0 0
      %2455 = vmatmul.mubr.bf16.gmra.mrb[0].mxu0 %v2350
      %v2456 = vpop.f32.mrb[0].mxu0
      %v2457 = vadd.f32 0.0, %v2456
      %v2458 = vpop.f32.mrb[0].mxu0
      %v2459 = vpop.f32.mrb[0].mxu0
      %v2460 = vadd.f32 0.0, %v2459
      %v2461 = vpop.f32.mrb[0].mxu0
      %2462 = vmatprep.mubr.bf16.mxu0 0
      %2463 = vmatmul.mubr.bf16.gmra.mrb[0].mxu0 %v2353
      %v2464 = vpop.f32.mrb[0].mxu0
      %v2465 = vadd.f32 0.0, %v2464
      %v2466 = vpop.f32.mrb[0].mxu0
      %v2467 = vpop.f32.mrb[0].mxu0
      %v2468 = vadd.f32 0.0, %v2467
      %v2469 = vpop.f32.mrb[0].mxu0
      %2470 = vmatprep.mubr.bf16.mxu0 0
      %2471 = vmatmul.mubr.bf16.gmra.mrb[0].mxu0 %v2356
      %v2472 = vpop.f32.mrb[0].mxu0
      %v2473 = vadd.f32 0.0, %v2472
      %v2474 = vpop.f32.mrb[0].mxu0
      %v2475 = vpop.f32.mrb[0].mxu0
      %v2476 = vadd.f32 0.0, %v2475
      %v2477 = vpop.f32.mrb[0].mxu0
      %2478 = vmatprep.mubr.bf16.mxu0 0
      %2479 = vmatmul.mubr.bf16.gmra.mrb[0].mxu0 %v2359
      %v2480 = vpop.f32.mrb[0].mxu0
      %v2481 = vadd.f32 0.0, %v2480
      %v2482 = vpop.f32.mrb[0].mxu0
      %v2483 = vpop.f32.mrb[0].mxu0
      %v2484 = vadd.f32 0.0, %v2483
      %v2485 = vpop.f32.mrb[0].mxu0
      %2486 = vmatprep.mubr.bf16.mxu0 0
      %2487 = vmatmul.mubr.bf16.gmra.mrb[0].mxu0 %v2362
      %v2488 = vpop.f32.mrb[0].mxu0
      %v2489 = vadd.f32 0.0, %v2488
      %v2490 = vpop.f32.mrb[0].mxu0
      %v2491 = vpop.f32.mrb[0].mxu0
      %v2492 = vadd.f32 0.0, %v2491
      %v2493 = vpop.f32.mrb[0].mxu0
      %2494 = vmatprep.mubr.bf16.mxu0 0
      %2495 = vmatmul.mubr.bf16.gmra.mrb[0].mxu0 %v2365
      %v2496 = vpop.f32.mrb[0].mxu0
      %v2497 = vadd.f32 0.0, %v2496
      %v2498 = vpop.f32.mrb[0].mxu0
      %v2499 = vpop.f32.mrb[0].mxu0
      %v2500 = vadd.f32 0.0, %v2499
      %v2501 = vpop.f32.mrb[0].mxu0
      %2502 = vmatprep.mubr.bf16.mxu0 0
      %2503 = vmatmul.mubr.bf16.gmra.mrb[0].mxu0 %v2368
      %v2504 = vpop.f32.mrb[0].mxu0
      %v2505 = vadd.f32 0.0, %v2504
      %v2506 = vpop.f32.mrb[0].mxu0
      %v2507 = vpop.f32.mrb[0].mxu0
      %v2508 = vadd.f32 0.0, %v2507
      %v2509 = vpop.f32.mrb[0].mxu0
      %2510 = vmatprep.mubr.bf16.mxu0 0
      %2511 = vmatmul.mubr.bf16.gmra.mrb[0].mxu0 %v2371
      %v2512 = vpop.f32.mrb[0].mxu0
      %v2513 = vadd.f32 0.0, %v2512
      %v2514 = vpop.f32.mrb[0].mxu0
      %v2515 = vpop.f32.mrb[0].mxu0
      %v2516 = vadd.f32 0.0, %v2515
      %v2517 = vpop.f32.mrb[0].mxu0
      %2518 = vmatprep.mubr.bf16.mxu0 0
      %2519 = vmatmul.mubr.bf16.gmra.mrb[0].mxu0 %v2374
      %v2520 = vpop.f32.mrb[0].mxu0
      %v2521 = vadd.f32 0.0, %v2520
      %v2522 = vpop.f32.mrb[0].mxu0
      %v2523 = vpop.f32.mrb[0].mxu0
      %v2524 = vadd.f32 0.0, %v2523
      %v2525 = vpop.f32.mrb[0].mxu0
      %2526 = vmatprep.mubr.bf16.mxu0 0
      %2527 = vmatmul.mubr.bf16.gmra.mrb[0].mxu0 %v2377
      %v2528 = vpop.f32.mrb[0].mxu0
      %v2529 = vadd.f32 0.0, %v2528
      %v2530 = vpop.f32.mrb[0].mxu0
      %v2531 = vpop.f32.mrb[0].mxu0
      %v2532 = vadd.f32 0.0, %v2531
      %v2533 = vpop.f32.mrb[0].mxu0
      %2534 = vmatprep.mubr.bf16.mxu0 0
      %2535 = vmatmul.mubr.bf16.gmra.mrb[0].mxu0 %v2380
      %v2536 = vpop.f32.mrb[0].mxu0
      %v2537 = vadd.f32 0.0, %v2536
      %v2538 = vpop.f32.mrb[0].mxu0
      %v2539 = vpop.f32.mrb[0].mxu0
      %v2540 = vadd.f32 0.0, %v2539
      %v2541 = vpop.f32.mrb[0].mxu0
      %2542 = vdwg.mxu0
      %v2543 = vadd.f32 %v2221, %v2417
      %v2544 = vadd.f32 %v2222, %v2420
      %v2545 = vadd.f32 %v2223, %v2425
      %v2546 = vadd.f32 %v2224, %v2428
      %v2547 = vadd.f32 %v2225, %v2433
      %v2548 = vadd.f32 %v2226, %v2436
      %v2549 = vadd.f32 %v2227, %v2441
      %v2550 = vadd.f32 %v2228, %v2444
      %v2551 = vadd.f32 %v2229, %v2449
      %v2552 = vadd.f32 %v2230, %v2452
      %v2553 = vadd.f32 %v2231, %v2457
      %v2554 = vadd.f32 %v2232, %v2460
      %v2555 = vadd.f32 %v2233, %v2465
      %v2556 = vadd.f32 %v2234, %v2468
      %v2557 = vadd.f32 %v2235, %v2473
      %v2558 = vadd.f32 %v2236, %v2476
      %v2559 = vadd.f32 %v2237, %v2481
      %v2560 = vadd.f32 %v2238, %v2484
      %v2561 = vadd.f32 %v2239, %v2489
      %v2562 = vadd.f32 %v2240, %v2492
      %v2563 = vadd.f32 %v2241, %v2497
      %v2564 = vadd.f32 %v2242, %v2500
      %v2565 = vadd.f32 %v2243, %v2505
      %v2566 = vadd.f32 %v2244, %v2508
      %v2567 = vadd.f32 %v2245, %v2513
      %v2568 = vadd.f32 %v2246, %v2516
      %v2569 = vadd.f32 %v2247, %v2521
      %v2570 = vadd.f32 %v2248, %v2524
      %v2571 = vadd.f32 %v2249, %v2529
      %v2572 = vadd.f32 %v2250, %v2532
      %v2573 = vadd.f32 %v2251, %v2537
      %v2574 = vadd.f32 %v2252, %v2540
      %v2575 = vld [vmem:[%s2253 + $0x1] sm:$0xff]
      %v2576 = vld [vmem:[%s2253 + $0x9] sm:$0xff]
      %v2577 = vld [vmem:[%s2253 + $0x19] sm:$0xff]
      %v2578 = vld [vmem:[%s2253 + $0x21] sm:$0xff]
      %v2579 = vld [vmem:[%s2253 + $0x31] sm:$0xff]
      %v2580 = vld [vmem:[%s2253 + $0x39] sm:$0xff]
      %v2581 = vld [vmem:[%s2253 + $0x49] sm:$0xff]
      %v2582 = vld [vmem:[%s2253 + $0x51] sm:$0xff]
      %v2583 = vld [vmem:[%s2253 + $0x61] sm:$0xff]
      %v2584 = vld [vmem:[%s2253 + $0x69] sm:$0xff]
      %v2585 = vld [vmem:[%s2253 + $0x79] sm:$0xff]
      %v2586 = vld [vmem:[%s2253 + $0x81] sm:$0xff]
      %v2587 = vld [vmem:[%s2253 + $0x91] sm:$0xff]
      %v2588 = vld [vmem:[%s2253 + $0x99] sm:$0xff]
      %v2589 = vld [vmem:[%s2253 + $0xa9] sm:$0xff]
      %v2590 = vld [vmem:[%s2253 + $0xb1] sm:$0xff]
      %v2591 = vld [vmem:[%s2253 + $0xc1] sm:$0xff]
      %v2592 = vld [vmem:[%s2253 + $0xc9] sm:$0xff]
      %v2593 = vld [vmem:[%s2253 + $0xd9] sm:$0xff]
      %v2594 = vld [vmem:[%s2253 + $0xe1] sm:$0xff]
      %v2595 = vld [vmem:[%s2253 + $0xf1] sm:$0xff]
      %v2596 = vld [vmem:[%s2253 + $0xf9] sm:$0xff]
      %v2597 = vld [vmem:[%s2253 + $0x109] sm:$0xff]
      %v2598 = vld [vmem:[%s2253 + $0x111] sm:$0xff]
      %v2599 = vld [vmem:[%s2253 + $0x121] sm:$0xff]
      %v2600 = vld [vmem:[%s2253 + $0x129] sm:$0xff]
      %v2601 = vld [vmem:[%s2253 + $0x139] sm:$0xff]
      %v2602 = vld [vmem:[%s2253 + $0x141] sm:$0xff]
      %v2603 = vld [vmem:[%s2253 + $0x151] sm:$0xff]
      %v2604 = vld [vmem:[%s2253 + $0x159] sm:$0xff]
      %v2605 = vld [vmem:[%s2253 + $0x169] sm:$0xff]
      %v2606 = vld [vmem:[%s2253 + $0x171] sm:$0xff]
      %v2607 = vpack.c.bf16 %v2576, %v2575
      %v2608 = vpack.c.bf16 %v2578, %v2577
      %v2609 = vpack.c.bf16 %v2580, %v2579
      %v2610 = vpack.c.bf16 %v2582, %v2581
      %v2611 = vpack.c.bf16 %v2584, %v2583
      %v2612 = vpack.c.bf16 %v2586, %v2585
      %v2613 = vpack.c.bf16 %v2588, %v2587
      %v2614 = vpack.c.bf16 %v2590, %v2589
      %v2615 = vpack.c.bf16 %v2592, %v2591
      %v2616 = vpack.c.bf16 %v2594, %v2593
      %v2617 = vpack.c.bf16 %v2596, %v2595
      %v2618 = vpack.c.bf16 %v2598, %v2597
      %v2619 = vpack.c.bf16 %v2600, %v2599
      %v2620 = vpack.c.bf16 %v2602, %v2601
      %v2621 = vpack.c.bf16 %v2604, %v2603
      %v2622 = vpack.c.bf16 %v2606, %v2605
      %v2623 = vld [vmem:[%s1 + $0xe0] sm:$0xf]
      %v2624 = vld [vmem:[%s1 + $0xe4] sm:$0xf]
      %v2625 = vld [vmem:[%s1 + $0xe8] sm:$0xf]
      %v2626 = vld [vmem:[%s1 + $0xec] sm:$0xf]
      %v2627 = vld [vmem:[%s1 + $0xf0] sm:$0xf]
      %v2628 = vld [vmem:[%s1 + $0xf4] sm:$0xf]
      %v2629 = vld [vmem:[%s1 + $0xf8] sm:$0xf]
      %v2630 = vld [vmem:[%s1 + $0xfc] sm:$0xf]
      %v2639 = vunpack.c.l.b16 %v2623
      %v2640 = vunpack.c.l.b16 %v2624
      %v2641 = vunpack.c.l.b16 %v2625
      %v2642 = vunpack.c.l.b16 %v2626
      %v2643 = vunpack.c.l.b16 %v2627
      %v2644 = vunpack.c.l.b16 %v2628
      %v2645 = vunpack.c.l.b16 %v2629
      %v2646 = vunpack.c.l.b16 %v2630
      %v2647 = vpack.c.b16 %v2640, %v2639
      %v2648 = vpack.c.b16 %v2642, %v2641
      %v2649 = vpack.c.b16 %v2644, %v2643
      %v2650 = vpack.c.b16 %v2646, %v2645
      %v2656 = vsel %vm280, %v2607, 0
      %v2659 = vsel %vm280, %v2608, 0
      %v2662 = vsel %vm280, %v2609, 0
      %v2665 = vsel %vm280, %v2610, 0
      %v2668 = vsel %vm280, %v2611, 0
      %v2671 = vsel %vm280, %v2612, 0
      %v2674 = vsel %vm280, %v2613, 0
      %v2677 = vsel %vm280, %v2614, 0
      %v2680 = vsel %vm280, %v2615, 0
      %v2683 = vsel %vm280, %v2616, 0
      %v2686 = vsel %vm280, %v2617, 0
      %v2689 = vsel %vm280, %v2618, 0
      %v2692 = vsel %vm280, %v2619, 0
      %v2695 = vsel %vm280, %v2620, 0
      %v2698 = vsel %vm280, %v2621, 0
      %v2701 = vsel %vm280, %v2622, 0
      %2703 = vmatprep.subr.bf16.mxu0 0
      %2704 = vmatpush1.bf16.msra.mxu0 %v2647
      %2705 = vmatprep.subr.bf16.mxu0 0
      %2706 = vmatpush1.bf16.msra.mxu0 %v2648
      %2707 = vmatprep.subr.bf16.mxu0 0
      %2708 = vmatpush1.bf16.msra.mxu0 %v2649
      %2709 = vmatprep.subr.bf16.mxu0 0
      %2710 = vmatpush1.bf16.msra.mxu0 %v2650
      %2711 = vmatprep.subr.bf16.mxu0 0
      %2712 = vmatpush1.bf16.msra.mxu0 0
      %2713 = vmatprep.subr.bf16.mxu0 0
      %2714 = vmatpush1.bf16.msra.mxu0 0
      %2715 = vmatprep.subr.bf16.mxu0 0
      %2716 = vmatpush1.bf16.msra.mxu0 0
      %2717 = vmatprep.subr.bf16.mxu0 0
      %2718 = vmatpush1.bf16.msra.mxu0 0
      %2719 = vmatprep.subr.bf16.mxu0 0
      %2720 = vmatpush1.bf16.msra.mxu0 0
      %2721 = vmatprep.subr.bf16.mxu0 0
      %2722 = vmatpush1.bf16.msra.mxu0 0
      %2723 = vmatprep.subr.bf16.mxu0 0
      %2724 = vmatpush1.bf16.msra.mxu0 0
      %2725 = vmatprep.subr.bf16.mxu0 0
      %2726 = vmatpush1.bf16.msra.mxu0 0
      %2727 = vmatprep.subr.bf16.mxu0 0
      %2728 = vmatpush1.bf16.msra.mxu0 0
      %2729 = vmatprep.subr.bf16.mxu0 0
      %2730 = vmatpush1.bf16.msra.mxu0 0
      %2731 = vmatprep.subr.bf16.mxu0 0
      %2732 = vmatpush1.bf16.msra.mxu0 0
      %2733 = vmatprep.subr.bf16.mxu0 0
      %2734 = vmatpush1.bf16.msra.mxu0 0
      %2735 = vmatprep.mubr.bf16.mxu0 0
      %2736 = vmatmul.mubr.bf16.gmra.mrb[0].mxu0 %v2656
      %v2737 = vpop.f32.mrb[0].mxu0
      %v2738 = vadd.f32 0.0, %v2737
      %v2739 = vpop.f32.mrb[0].mxu0
      %v2740 = vpop.f32.mrb[0].mxu0
      %v2741 = vadd.f32 0.0, %v2740
      %v2742 = vpop.f32.mrb[0].mxu0
      %2743 = vmatprep.mubr.bf16.mxu0 0
      %2744 = vmatmul.mubr.bf16.gmra.mrb[0].mxu0 %v2659
      %v2745 = vpop.f32.mrb[0].mxu0
      %v2746 = vadd.f32 0.0, %v2745
      %v2747 = vpop.f32.mrb[0].mxu0
      %v2748 = vpop.f32.mrb[0].mxu0
      %v2749 = vadd.f32 0.0, %v2748
      %v2750 = vpop.f32.mrb[0].mxu0
      %2751 = vmatprep.mubr.bf16.mxu0 0
      %2752 = vmatmul.mubr.bf16.gmra.mrb[0].mxu0 %v2662
      %v2753 = vpop.f32.mrb[0].mxu0
      %v2754 = vadd.f32 0.0, %v2753
      %v2755 = vpop.f32.mrb[0].mxu0
      %v2756 = vpop.f32.mrb[0].mxu0
      %v2757 = vadd.f32 0.0, %v2756
      %v2758 = vpop.f32.mrb[0].mxu0
      %2759 = vmatprep.mubr.bf16.mxu0 0
      %2760 = vmatmul.mubr.bf16.gmra.mrb[0].mxu0 %v2665
      %v2761 = vpop.f32.mrb[0].mxu0
      %v2762 = vadd.f32 0.0, %v2761
      %v2763 = vpop.f32.mrb[0].mxu0
      %v2764 = vpop.f32.mrb[0].mxu0
      %v2765 = vadd.f32 0.0, %v2764
      %v2766 = vpop.f32.mrb[0].mxu0
      %2767 = vmatprep.mubr.bf16.mxu0 0
      %2768 = vmatmul.mubr.bf16.gmra.mrb[0].mxu0 %v2668
      %v2769 = vpop.f32.mrb[0].mxu0
      %v2770 = vadd.f32 0.0, %v2769
      %v2771 = vpop.f32.mrb[0].mxu0
      %v2772 = vpop.f32.mrb[0].mxu0
      %v2773 = vadd.f32 0.0, %v2772
      %v2774 = vpop.f32.mrb[0].mxu0
      %2775 = vmatprep.mubr.bf16.mxu0 0
      %2776 = vmatmul.mubr.bf16.gmra.mrb[0].mxu0 %v2671
      %v2777 = vpop.f32.mrb[0].mxu0
      %v2778 = vadd.f32 0.0, %v2777
      %v2779 = vpop.f32.mrb[0].mxu0
      %v2780 = vpop.f32.mrb[0].mxu0
      %v2781 = vadd.f32 0.0, %v2780
      %v2782 = vpop.f32.mrb[0].mxu0
      %2783 = vmatprep.mubr.bf16.mxu0 0
      %2784 = vmatmul.mubr.bf16.gmra.mrb[0].mxu0 %v2674
      %v2785 = vpop.f32.mrb[0].mxu0
      %v2786 = vadd.f32 0.0, %v2785
      %v2787 = vpop.f32.mrb[0].mxu0
      %v2788 = vpop.f32.mrb[0].mxu0
      %v2789 = vadd.f32 0.0, %v2788
      %v2790 = vpop.f32.mrb[0].mxu0
      %2791 = vmatprep.mubr.bf16.mxu0 0
      %2792 = vmatmul.mubr.bf16.gmra.mrb[0].mxu0 %v2677
      %v2793 = vpop.f32.mrb[0].mxu0
      %v2794 = vadd.f32 0.0, %v2793
      %v2795 = vpop.f32.mrb[0].mxu0
      %v2796 = vpop.f32.mrb[0].mxu0
      %v2797 = vadd.f32 0.0, %v2796
      %v2798 = vpop.f32.mrb[0].mxu0
      %2799 = vmatprep.mubr.bf16.mxu0 0
      %2800 = vmatmul.mubr.bf16.gmra.mrb[0].mxu0 %v2680
      %v2801 = vpop.f32.mrb[0].mxu0
      %v2802 = vadd.f32 0.0, %v2801
      %v2803 = vpop.f32.mrb[0].mxu0
      %v2804 = vpop.f32.mrb[0].mxu0
      %v2805 = vadd.f32 0.0, %v2804
      %v2806 = vpop.f32.mrb[0].mxu0
      %2807 = vmatprep.mubr.bf16.mxu0 0
      %2808 = vmatmul.mubr.bf16.gmra.mrb[0].mxu0 %v2683
      %v2809 = vpop.f32.mrb[0].mxu0
      %v2810 = vadd.f32 0.0, %v2809
      %v2811 = vpop.f32.mrb[0].mxu0
      %v2812 = vpop.f32.mrb[0].mxu0
      %v2813 = vadd.f32 0.0, %v2812
      %v2814 = vpop.f32.mrb[0].mxu0
      %2815 = vmatprep.mubr.bf16.mxu0 0
      %2816 = vmatmul.mubr.bf16.gmra.mrb[0].mxu0 %v2686
      %v2817 = vpop.f32.mrb[0].mxu0
      %v2818 = vadd.f32 0.0, %v2817
      %v2819 = vpop.f32.mrb[0].mxu0
      %v2820 = vpop.f32.mrb[0].mxu0
      %v2821 = vadd.f32 0.0, %v2820
      %v2822 = vpop.f32.mrb[0].mxu0
      %2823 = vmatprep.mubr.bf16.mxu0 0
      %2824 = vmatmul.mubr.bf16.gmra.mrb[0].mxu0 %v2689
      %v2825 = vpop.f32.mrb[0].mxu0
      %v2826 = vadd.f32 0.0, %v2825
      %v2827 = vpop.f32.mrb[0].mxu0
      %v2828 = vpop.f32.mrb[0].mxu0
      %v2829 = vadd.f32 0.0, %v2828
      %v2830 = vpop.f32.mrb[0].mxu0
      %2831 = vmatprep.mubr.bf16.mxu0 0
      %2832 = vmatmul.mubr.bf16.gmra.mrb[0].mxu0 %v2692
      %v2833 = vpop.f32.mrb[0].mxu0
      %v2834 = vadd.f32 0.0, %v2833
      %v2835 = vpop.f32.mrb[0].mxu0
      %v2836 = vpop.f32.mrb[0].mxu0
      %v2837 = vadd.f32 0.0, %v2836
      %v2838 = vpop.f32.mrb[0].mxu0
      %2839 = vmatprep.mubr.bf16.mxu0 0
      %2840 = vmatmul.mubr.bf16.gmra.mrb[0].mxu0 %v2695
      %v2841 = vpop.f32.mrb[0].mxu0
      %v2842 = vadd.f32 0.0, %v2841
      %v2843 = vpop.f32.mrb[0].mxu0
      %v2844 = vpop.f32.mrb[0].mxu0
      %v2845 = vadd.f32 0.0, %v2844
      %v2846 = vpop.f32.mrb[0].mxu0
      %2847 = vmatprep.mubr.bf16.mxu0 0
      %2848 = vmatmul.mubr.bf16.gmra.mrb[0].mxu0 %v2698
      %v2849 = vpop.f32.mrb[0].mxu0
      %v2850 = vadd.f32 0.0, %v2849
      %v2851 = vpop.f32.mrb[0].mxu0
      %v2852 = vpop.f32.mrb[0].mxu0
      %v2853 = vadd.f32 0.0, %v2852
      %v2854 = vpop.f32.mrb[0].mxu0
      %2855 = vmatprep.mubr.bf16.mxu0 0
      %2856 = vmatmul.mubr.bf16.gmra.mrb[0].mxu0 %v2701
      %v2857 = vpop.f32.mrb[0].mxu0
      %v2858 = vadd.f32 0.0, %v2857
      %v2859 = vpop.f32.mrb[0].mxu0
      %v2860 = vpop.f32.mrb[0].mxu0
      %v2861 = vadd.f32 0.0, %v2860
      %v2862 = vpop.f32.mrb[0].mxu0
      %2863 = vdwg.mxu0
      %v2864 = vadd.f32 %v2543, %v2738
      %v2865 = vadd.f32 %v2544, %v2741
      %v2866 = vadd.f32 %v2545, %v2746
      %v2867 = vadd.f32 %v2546, %v2749
      %v2868 = vadd.f32 %v2547, %v2754
      %v2869 = vadd.f32 %v2548, %v2757
      %v2870 = vadd.f32 %v2549, %v2762
      %v2871 = vadd.f32 %v2550, %v2765
      %v2872 = vadd.f32 %v2551, %v2770
      %v2873 = vadd.f32 %v2552, %v2773
      %v2874 = vadd.f32 %v2553, %v2778
      %v2875 = vadd.f32 %v2554, %v2781
      %v2876 = vadd.f32 %v2555, %v2786
      %v2877 = vadd.f32 %v2556, %v2789
      %v2878 = vadd.f32 %v2557, %v2794
      %v2879 = vadd.f32 %v2558, %v2797
      %v2880 = vadd.f32 %v2559, %v2802
      %v2881 = vadd.f32 %v2560, %v2805
      %v2882 = vadd.f32 %v2561, %v2810
      %v2883 = vadd.f32 %v2562, %v2813
      %v2884 = vadd.f32 %v2563, %v2818
      %v2885 = vadd.f32 %v2564, %v2821
      %v2886 = vadd.f32 %v2565, %v2826
      %v2887 = vadd.f32 %v2566, %v2829
      %v2888 = vadd.f32 %v2567, %v2834
      %v2889 = vadd.f32 %v2568, %v2837
      %v2890 = vadd.f32 %v2569, %v2842
      %v2891 = vadd.f32 %v2570, %v2845
      %v2892 = vadd.f32 %v2571, %v2850
      %v2893 = vadd.f32 %v2572, %v2853
      %v2894 = vadd.f32 %v2573, %v2858
      %v2895 = vadd.f32 %v2574, %v2861
      %v2896 = vld [vmem:[%s2253 + $0x2] sm:$0xff]
      %v2897 = vld [vmem:[%s2253 + $0xa] sm:$0xff]
      %v2898 = vld [vmem:[%s2253 + $0x1a] sm:$0xff]
      %v2899 = vld [vmem:[%s2253 + $0x22] sm:$0xff]
      %v2900 = vld [vmem:[%s2253 + $0x32] sm:$0xff]
      %v2901 = vld [vmem:[%s2253 + $0x3a] sm:$0xff]
      %v2902 = vld [vmem:[%s2253 + $0x4a] sm:$0xff]
      %v2903 = vld [vmem:[%s2253 + $0x52] sm:$0xff]
      %v2904 = vld [vmem:[%s2253 + $0x62] sm:$0xff]
      %v2905 = vld [vmem:[%s2253 + $0x6a] sm:$0xff]
      %v2906 = vld [vmem:[%s2253 + $0x7a] sm:$0xff]
      %v2907 = vld [vmem:[%s2253 + $0x82] sm:$0xff]
      %v2908 = vld [vmem:[%s2253 + $0x92] sm:$0xff]
      %v2909 = vld [vmem:[%s2253 + $0x9a] sm:$0xff]
      %v2910 = vld [vmem:[%s2253 + $0xaa] sm:$0xff]
      %v2911 = vld [vmem:[%s2253 + $0xb2] sm:$0xff]
      %v2912 = vld [vmem:[%s2253 + $0xc2] sm:$0xff]
      %v2913 = vld [vmem:[%s2253 + $0xca] sm:$0xff]
      %v2914 = vld [vmem:[%s2253 + $0xda] sm:$0xff]
      %v2915 = vld [vmem:[%s2253 + $0xe2] sm:$0xff]
      %v2916 = vld [vmem:[%s2253 + $0xf2] sm:$0xff]
      %v2917 = vld [vmem:[%s2253 + $0xfa] sm:$0xff]
      %v2918 = vld [vmem:[%s2253 + $0x10a] sm:$0xff]
      %v2919 = vld [vmem:[%s2253 + $0x112] sm:$0xff]
      %v2920 = vld [vmem:[%s2253 + $0x122] sm:$0xff]
      %v2921 = vld [vmem:[%s2253 + $0x12a] sm:$0xff]
      %v2922 = vld [vmem:[%s2253 + $0x13a] sm:$0xff]
      %v2923 = vld [vmem:[%s2253 + $0x142] sm:$0xff]
      %v2924 = vld [vmem:[%s2253 + $0x152] sm:$0xff]
      %v2925 = vld [vmem:[%s2253 + $0x15a] sm:$0xff]
      %v2926 = vld [vmem:[%s2253 + $0x16a] sm:$0xff]
      %v2927 = vld [vmem:[%s2253 + $0x172] sm:$0xff]
      %v2928 = vpack.c.bf16 %v2897, %v2896
      %v2929 = vpack.c.bf16 %v2899, %v2898
      %v2930 = vpack.c.bf16 %v2901, %v2900
      %v2931 = vpack.c.bf16 %v2903, %v2902
      %v2932 = vpack.c.bf16 %v2905, %v2904
      %v2933 = vpack.c.bf16 %v2907, %v2906
      %v2934 = vpack.c.bf16 %v2909, %v2908
      %v2935 = vpack.c.bf16 %v2911, %v2910
      %v2936 = vpack.c.bf16 %v2913, %v2912
      %v2937 = vpack.c.bf16 %v2915, %v2914
      %v2938 = vpack.c.bf16 %v2917, %v2916
      %v2939 = vpack.c.bf16 %v2919, %v2918
      %v2940 = vpack.c.bf16 %v2921, %v2920
      %v2941 = vpack.c.bf16 %v2923, %v2922
      %v2942 = vpack.c.bf16 %v2925, %v2924
      %v2943 = vpack.c.bf16 %v2927, %v2926
      %v2944 = vld [vmem:[%s1 + $0x100] sm:$0xf]
      %v2945 = vld [vmem:[%s1 + $0x104] sm:$0xf]
      %v2946 = vld [vmem:[%s1 + $0x108] sm:$0xf]
      %v2947 = vld [vmem:[%s1 + $0x10c] sm:$0xf]
      %v2948 = vld [vmem:[%s1 + $0x110] sm:$0xf]
      %v2949 = vld [vmem:[%s1 + $0x114] sm:$0xf]
      %v2950 = vld [vmem:[%s1 + $0x118] sm:$0xf]
      %v2951 = vld [vmem:[%s1 + $0x11c] sm:$0xf]
      %v2960 = vunpack.c.l.b16 %v2944
      %v2961 = vunpack.c.l.b16 %v2945
      %v2962 = vunpack.c.l.b16 %v2946
      %v2963 = vunpack.c.l.b16 %v2947
      %v2964 = vunpack.c.l.b16 %v2948
      %v2965 = vunpack.c.l.b16 %v2949
      %v2966 = vunpack.c.l.b16 %v2950
      %v2967 = vunpack.c.l.b16 %v2951
      %v2968 = vpack.c.b16 %v2961, %v2960
      %v2969 = vpack.c.b16 %v2963, %v2962
      %v2970 = vpack.c.b16 %v2965, %v2964
      %v2971 = vpack.c.b16 %v2967, %v2966
      %v2977 = vsel %vm280, %v2928, 0
      %v2980 = vsel %vm280, %v2929, 0
      %v2983 = vsel %vm280, %v2930, 0
      %v2986 = vsel %vm280, %v2931, 0
      %v2989 = vsel %vm280, %v2932, 0
      %v2992 = vsel %vm280, %v2933, 0
      %v2995 = vsel %vm280, %v2934, 0
      %v2998 = vsel %vm280, %v2935, 0
      %v3001 = vsel %vm280, %v2936, 0
      %v3004 = vsel %vm280, %v2937, 0
      %v3007 = vsel %vm280, %v2938, 0
      %v3010 = vsel %vm280, %v2939, 0
      %v3013 = vsel %vm280, %v2940, 0
      %v3016 = vsel %vm280, %v2941, 0
      %v3019 = vsel %vm280, %v2942, 0
      %v3022 = vsel %vm280, %v2943, 0
      %3024 = vmatprep.subr.bf16.mxu0 0
      %3025 = vmatpush1.bf16.msra.mxu0 %v2968
      %3026 = vmatprep.subr.bf16.mxu0 0
      %3027 = vmatpush1.bf16.msra.mxu0 %v2969
      %3028 = vmatprep.subr.bf16.mxu0 0
      %3029 = vmatpush1.bf16.msra.mxu0 %v2970
      %3030 = vmatprep.subr.bf16.mxu0 0
      %3031 = vmatpush1.bf16.msra.mxu0 %v2971
      %3032 = vmatprep.subr.bf16.mxu0 0
      %3033 = vmatpush1.bf16.msra.mxu0 0
      %3034 = vmatprep.subr.bf16.mxu0 0
      %3035 = vmatpush1.bf16.msra.mxu0 0
      %3036 = vmatprep.subr.bf16.mxu0 0
      %3037 = vmatpush1.bf16.msra.mxu0 0
      %3038 = vmatprep.subr.bf16.mxu0 0
      %3039 = vmatpush1.bf16.msra.mxu0 0
      %3040 = vmatprep.subr.bf16.mxu0 0
      %3041 = vmatpush1.bf16.msra.mxu0 0
      %3042 = vmatprep.subr.bf16.mxu0 0
      %3043 = vmatpush1.bf16.msra.mxu0 0
      %3044 = vmatprep.subr.bf16.mxu0 0
      %3045 = vmatpush1.bf16.msra.mxu0 0
      %3046 = vmatprep.subr.bf16.mxu0 0
      %3047 = vmatpush1.bf16.msra.mxu0 0
      %3048 = vmatprep.subr.bf16.mxu0 0
      %3049 = vmatpush1.bf16.msra.mxu0 0
      %3050 = vmatprep.subr.bf16.mxu0 0
      %3051 = vmatpush1.bf16.msra.mxu0 0
      %3052 = vmatprep.subr.bf16.mxu0 0
      %3053 = vmatpush1.bf16.msra.mxu0 0
      %3054 = vmatprep.subr.bf16.mxu0 0
      %3055 = vmatpush1.bf16.msra.mxu0 0
      %3056 = vmatprep.mubr.bf16.mxu0 0
      %3057 = vmatmul.mubr.bf16.gmra.mrb[0].mxu0 %v2977
      %v3058 = vpop.f32.mrb[0].mxu0
      %v3059 = vadd.f32 0.0, %v3058
      %v3060 = vpop.f32.mrb[0].mxu0
      %v3061 = vpop.f32.mrb[0].mxu0
      %v3062 = vadd.f32 0.0, %v3061
      %v3063 = vpop.f32.mrb[0].mxu0
      %3064 = vmatprep.mubr.bf16.mxu0 0
      %3065 = vmatmul.mubr.bf16.gmra.mrb[0].mxu0 %v2980
      %v3066 = vpop.f32.mrb[0].mxu0
      %v3067 = vadd.f32 0.0, %v3066
      %v3068 = vpop.f32.mrb[0].mxu0
      %v3069 = vpop.f32.mrb[0].mxu0
      %v3070 = vadd.f32 0.0, %v3069
      %v3071 = vpop.f32.mrb[0].mxu0
      %3072 = vmatprep.mubr.bf16.mxu0 0
      %3073 = vmatmul.mubr.bf16.gmra.mrb[0].mxu0 %v2983
      %v3074 = vpop.f32.mrb[0].mxu0
      %v3075 = vadd.f32 0.0, %v3074
      %v3076 = vpop.f32.mrb[0].mxu0
      %v3077 = vpop.f32.mrb[0].mxu0
      %v3078 = vadd.f32 0.0, %v3077
      %v3079 = vpop.f32.mrb[0].mxu0
      %3080 = vmatprep.mubr.bf16.mxu0 0
      %3081 = vmatmul.mubr.bf16.gmra.mrb[0].mxu0 %v2986
      %v3082 = vpop.f32.mrb[0].mxu0
      %v3083 = vadd.f32 0.0, %v3082
      %v3084 = vpop.f32.mrb[0].mxu0
      %v3085 = vpop.f32.mrb[0].mxu0
      %v3086 = vadd.f32 0.0, %v3085
      %v3087 = vpop.f32.mrb[0].mxu0
      %3088 = vmatprep.mubr.bf16.mxu0 0
      %3089 = vmatmul.mubr.bf16.gmra.mrb[0].mxu0 %v2989
      %v3090 = vpop.f32.mrb[0].mxu0
      %v3091 = vadd.f32 0.0, %v3090
      %v3092 = vpop.f32.mrb[0].mxu0
      %v3093 = vpop.f32.mrb[0].mxu0
      %v3094 = vadd.f32 0.0, %v3093
      %v3095 = vpop.f32.mrb[0].mxu0
      %3096 = vmatprep.mubr.bf16.mxu0 0
      %3097 = vmatmul.mubr.bf16.gmra.mrb[0].mxu0 %v2992
      %v3098 = vpop.f32.mrb[0].mxu0
      %v3099 = vadd.f32 0.0, %v3098
      %v3100 = vpop.f32.mrb[0].mxu0
      %v3101 = vpop.f32.mrb[0].mxu0
      %v3102 = vadd.f32 0.0, %v3101
      %v3103 = vpop.f32.mrb[0].mxu0
      %3104 = vmatprep.mubr.bf16.mxu0 0
      %3105 = vmatmul.mubr.bf16.gmra.mrb[0].mxu0 %v2995
      %v3106 = vpop.f32.mrb[0].mxu0
      %v3107 = vadd.f32 0.0, %v3106
      %v3108 = vpop.f32.mrb[0].mxu0
      %v3109 = vpop.f32.mrb[0].mxu0
      %v3110 = vadd.f32 0.0, %v3109
      %v3111 = vpop.f32.mrb[0].mxu0
      %3112 = vmatprep.mubr.bf16.mxu0 0
      %3113 = vmatmul.mubr.bf16.gmra.mrb[0].mxu0 %v2998
      %v3114 = vpop.f32.mrb[0].mxu0
      %v3115 = vadd.f32 0.0, %v3114
      %v3116 = vpop.f32.mrb[0].mxu0
      %v3117 = vpop.f32.mrb[0].mxu0
      %v3118 = vadd.f32 0.0, %v3117
      %v3119 = vpop.f32.mrb[0].mxu0
      %3120 = vmatprep.mubr.bf16.mxu0 0
      %3121 = vmatmul.mubr.bf16.gmra.mrb[0].mxu0 %v3001
      %v3122 = vpop.f32.mrb[0].mxu0
      %v3123 = vadd.f32 0.0, %v3122
      %v3124 = vpop.f32.mrb[0].mxu0
      %v3125 = vpop.f32.mrb[0].mxu0
      %v3126 = vadd.f32 0.0, %v3125
      %v3127 = vpop.f32.mrb[0].mxu0
      %3128 = vmatprep.mubr.bf16.mxu0 0
      %3129 = vmatmul.mubr.bf16.gmra.mrb[0].mxu0 %v3004
      %v3130 = vpop.f32.mrb[0].mxu0
      %v3131 = vadd.f32 0.0, %v3130
      %v3132 = vpop.f32.mrb[0].mxu0
      %v3133 = vpop.f32.mrb[0].mxu0
      %v3134 = vadd.f32 0.0, %v3133
      %v3135 = vpop.f32.mrb[0].mxu0
      %3136 = vmatprep.mubr.bf16.mxu0 0
      %3137 = vmatmul.mubr.bf16.gmra.mrb[0].mxu0 %v3007
      %v3138 = vpop.f32.mrb[0].mxu0
      %v3139 = vadd.f32 0.0, %v3138
      %v3140 = vpop.f32.mrb[0].mxu0
      %v3141 = vpop.f32.mrb[0].mxu0
      %v3142 = vadd.f32 0.0, %v3141
      %v3143 = vpop.f32.mrb[0].mxu0
      %3144 = vmatprep.mubr.bf16.mxu0 0
      %3145 = vmatmul.mubr.bf16.gmra.mrb[0].mxu0 %v3010
      %v3146 = vpop.f32.mrb[0].mxu0
      %v3147 = vadd.f32 0.0, %v3146
      %v3148 = vpop.f32.mrb[0].mxu0
      %v3149 = vpop.f32.mrb[0].mxu0
      %v3150 = vadd.f32 0.0, %v3149
      %v3151 = vpop.f32.mrb[0].mxu0
      %3152 = vmatprep.mubr.bf16.mxu0 0
      %3153 = vmatmul.mubr.bf16.gmra.mrb[0].mxu0 %v3013
      %v3154 = vpop.f32.mrb[0].mxu0
      %v3155 = vadd.f32 0.0, %v3154
      %v3156 = vpop.f32.mrb[0].mxu0
      %v3157 = vpop.f32.mrb[0].mxu0
      %v3158 = vadd.f32 0.0, %v3157
      %v3159 = vpop.f32.mrb[0].mxu0
      %3160 = vmatprep.mubr.bf16.mxu0 0
      %3161 = vmatmul.mubr.bf16.gmra.mrb[0].mxu0 %v3016
      %v3162 = vpop.f32.mrb[0].mxu0
      %v3163 = vadd.f32 0.0, %v3162
      %v3164 = vpop.f32.mrb[0].mxu0
      %v3165 = vpop.f32.mrb[0].mxu0
      %v3166 = vadd.f32 0.0, %v3165
      %v3167 = vpop.f32.mrb[0].mxu0
      %3168 = vmatprep.mubr.bf16.mxu0 0
      %3169 = vmatmul.mubr.bf16.gmra.mrb[0].mxu0 %v3019
      %v3170 = vpop.f32.mrb[0].mxu0
      %v3171 = vadd.f32 0.0, %v3170
      %v3172 = vpop.f32.mrb[0].mxu0
      %v3173 = vpop.f32.mrb[0].mxu0
      %v3174 = vadd.f32 0.0, %v3173
      %v3175 = vpop.f32.mrb[0].mxu0
      %3176 = vmatprep.mubr.bf16.mxu0 0
      %3177 = vmatmul.mubr.bf16.gmra.mrb[0].mxu0 %v3022
      %v3178 = vpop.f32.mrb[0].mxu0
      %v3179 = vadd.f32 0.0, %v3178
      %v3180 = vpop.f32.mrb[0].mxu0
      %v3181 = vpop.f32.mrb[0].mxu0
      %v3182 = vadd.f32 0.0, %v3181
      %v3183 = vpop.f32.mrb[0].mxu0
      %3184 = vdwg.mxu0
      %v3185 = vadd.f32 %v2864, %v3059
      %v3186 = vadd.f32 %v2865, %v3062
      %v3187 = vadd.f32 %v2866, %v3067
      %v3188 = vadd.f32 %v2867, %v3070
      %v3189 = vadd.f32 %v2868, %v3075
      %v3190 = vadd.f32 %v2869, %v3078
      %v3191 = vadd.f32 %v2870, %v3083
      %v3192 = vadd.f32 %v2871, %v3086
      %v3193 = vadd.f32 %v2872, %v3091
      %v3194 = vadd.f32 %v2873, %v3094
      %v3195 = vadd.f32 %v2874, %v3099
      %v3196 = vadd.f32 %v2875, %v3102
      %v3197 = vadd.f32 %v2876, %v3107
      %v3198 = vadd.f32 %v2877, %v3110
      %v3199 = vadd.f32 %v2878, %v3115
      %v3200 = vadd.f32 %v2879, %v3118
      %v3201 = vadd.f32 %v2880, %v3123
      %v3202 = vadd.f32 %v2881, %v3126
      %v3203 = vadd.f32 %v2882, %v3131
      %v3204 = vadd.f32 %v2883, %v3134
      %v3205 = vadd.f32 %v2884, %v3139
      %v3206 = vadd.f32 %v2885, %v3142
      %v3207 = vadd.f32 %v2886, %v3147
      %v3208 = vadd.f32 %v2887, %v3150
      %v3209 = vadd.f32 %v2888, %v3155
      %v3210 = vadd.f32 %v2889, %v3158
      %v3211 = vadd.f32 %v2890, %v3163
      %v3212 = vadd.f32 %v2891, %v3166
      %v3213 = vadd.f32 %v2892, %v3171
      %v3214 = vadd.f32 %v2893, %v3174
      %v3215 = vadd.f32 %v2894, %v3179
      %v3216 = vadd.f32 %v2895, %v3182
      %v3217 = vld [vmem:[%s2] sm:$0x1]
      %v3219 = vlaneseq
      %v3220 = vshrl.u32 %v3219, 7
      %v3221 = vsub.s32 0, %v3220
      %v3222 = vrot.slane %v3217, %v3221
      %v3224 = vmul.f32 %v3185, %v3222
      %v3225 = vmul.f32 %v3186, %v3222
      %v3226 = vmul.f32 %v3187, %v3222
      %v3227 = vmul.f32 %v3188, %v3222
      %v3228 = vmul.f32 %v3189, %v3222
      %v3229 = vmul.f32 %v3190, %v3222
      %v3230 = vmul.f32 %v3191, %v3222
      %v3231 = vmul.f32 %v3192, %v3222
      %v3232 = vmul.f32 %v3193, %v3222
      %v3233 = vmul.f32 %v3194, %v3222
      %v3234 = vmul.f32 %v3195, %v3222
      %v3235 = vmul.f32 %v3196, %v3222
      %v3236 = vmul.f32 %v3197, %v3222
      %v3237 = vmul.f32 %v3198, %v3222
      %v3238 = vmul.f32 %v3199, %v3222
      %v3239 = vmul.f32 %v3200, %v3222
      %v3240 = vmul.f32 %v3201, %v3222
      %v3241 = vmul.f32 %v3202, %v3222
      %v3242 = vmul.f32 %v3203, %v3222
      %v3243 = vmul.f32 %v3204, %v3222
      %v3244 = vmul.f32 %v3205, %v3222
      %v3245 = vmul.f32 %v3206, %v3222
      %v3246 = vmul.f32 %v3207, %v3222
      %v3247 = vmul.f32 %v3208, %v3222
      %v3248 = vmul.f32 %v3209, %v3222
      %v3249 = vmul.f32 %v3210, %v3222
      %v3250 = vmul.f32 %v3211, %v3222
      %v3251 = vmul.f32 %v3212, %v3222
      %v3252 = vmul.f32 %v3213, %v3222
      %v3253 = vmul.f32 %v3214, %v3222
      %v3254 = vmul.f32 %v3215, %v3222
      %v3255 = vmul.f32 %v3216, %v3222
      %v3256 = vld [vmem:[%s3] sm:$0x1]
      %v3258 = vlaneseq
      %v3259 = vshrl.u32 %v3258, 7
      %v3260 = vsub.s32 0, %v3259
      %v3261 = vrot.slane %v3256, %v3260
      %v3263 = vadd.f32 %v3224, %v3261
      %v3264 = vadd.f32 %v3225, %v3261
      %v3265 = vadd.f32 %v3226, %v3261
      %v3266 = vadd.f32 %v3227, %v3261
      %v3267 = vadd.f32 %v3228, %v3261
      %v3268 = vadd.f32 %v3229, %v3261
      %v3269 = vadd.f32 %v3230, %v3261
      %v3270 = vadd.f32 %v3231, %v3261
      %v3271 = vadd.f32 %v3232, %v3261
      %v3272 = vadd.f32 %v3233, %v3261
      %v3273 = vadd.f32 %v3234, %v3261
      %v3274 = vadd.f32 %v3235, %v3261
      %v3275 = vadd.f32 %v3236, %v3261
      %v3276 = vadd.f32 %v3237, %v3261
      %v3277 = vadd.f32 %v3238, %v3261
      %v3278 = vadd.f32 %v3239, %v3261
      %v3279 = vadd.f32 %v3240, %v3261
      %v3280 = vadd.f32 %v3241, %v3261
      %v3281 = vadd.f32 %v3242, %v3261
      %v3282 = vadd.f32 %v3243, %v3261
      %v3283 = vadd.f32 %v3244, %v3261
      %v3284 = vadd.f32 %v3245, %v3261
      %v3285 = vadd.f32 %v3246, %v3261
      %v3286 = vadd.f32 %v3247, %v3261
      %v3287 = vadd.f32 %v3248, %v3261
      %v3288 = vadd.f32 %v3249, %v3261
      %v3289 = vadd.f32 %v3250, %v3261
      %v3290 = vadd.f32 %v3251, %v3261
      %v3291 = vadd.f32 %v3252, %v3261
      %v3292 = vadd.f32 %v3253, %v3261
      %v3293 = vadd.f32 %v3254, %v3261
      %v3294 = vadd.f32 %v3255, %v3261
      %v3295 = vmax.f32 %v3263, 0.0
      %v3296 = vmax.f32 %v3264, 0.0
      %v3297 = vmax.f32 %v3265, 0.0
      %v3298 = vmax.f32 %v3266, 0.0
      %v3299 = vmax.f32 %v3267, 0.0
      %v3300 = vmax.f32 %v3268, 0.0
      %v3301 = vmax.f32 %v3269, 0.0
      %v3302 = vmax.f32 %v3270, 0.0
      %v3303 = vmax.f32 %v3271, 0.0
      %v3304 = vmax.f32 %v3272, 0.0
      %v3305 = vmax.f32 %v3273, 0.0
      %v3306 = vmax.f32 %v3274, 0.0
      %v3307 = vmax.f32 %v3275, 0.0
      %v3308 = vmax.f32 %v3276, 0.0
      %v3309 = vmax.f32 %v3277, 0.0
      %v3310 = vmax.f32 %v3278, 0.0
      %v3311 = vmax.f32 %v3279, 0.0
      %v3312 = vmax.f32 %v3280, 0.0
      %v3313 = vmax.f32 %v3281, 0.0
      %v3314 = vmax.f32 %v3282, 0.0
      %v3315 = vmax.f32 %v3283, 0.0
      %v3316 = vmax.f32 %v3284, 0.0
      %v3317 = vmax.f32 %v3285, 0.0
      %v3318 = vmax.f32 %v3286, 0.0
      %v3319 = vmax.f32 %v3287, 0.0
      %v3320 = vmax.f32 %v3288, 0.0
      %v3321 = vmax.f32 %v3289, 0.0
      %v3322 = vmax.f32 %v3290, 0.0
      %v3323 = vmax.f32 %v3291, 0.0
      %v3324 = vmax.f32 %v3292, 0.0
      %v3325 = vmax.f32 %v3293, 0.0
      %v3326 = vmax.f32 %v3294, 0.0
      %v3327 = vld [vmem:[%s4] sm:$0x1]
      %v3329 = vlaneseq
      %v3330 = vshrl.u32 %v3329, 7
      %v3331 = vsub.s32 0, %v3330
      %v3332 = vrot.slane %v3327, %v3331
      %v3334 = vmul.f32 %v3295, %v3332
      %v3335 = vmul.f32 %v3296, %v3332
      %v3336 = vmul.f32 %v3297, %v3332
      %v3337 = vmul.f32 %v3298, %v3332
      %v3338 = vmul.f32 %v3299, %v3332
      %v3339 = vmul.f32 %v3300, %v3332
      %v3340 = vmul.f32 %v3301, %v3332
      %v3341 = vmul.f32 %v3302, %v3332
      %v3342 = vmul.f32 %v3303, %v3332
      %v3343 = vmul.f32 %v3304, %v3332
      %v3344 = vmul.f32 %v3305, %v3332
      %v3345 = vmul.f32 %v3306, %v3332
      %v3346 = vmul.f32 %v3307, %v3332
      %v3347 = vmul.f32 %v3308, %v3332
      %v3348 = vmul.f32 %v3309, %v3332
      %v3349 = vmul.f32 %v3310, %v3332
      %v3350 = vmul.f32 %v3311, %v3332
      %v3351 = vmul.f32 %v3312, %v3332
      %v3352 = vmul.f32 %v3313, %v3332
      %v3353 = vmul.f32 %v3314, %v3332
      %v3354 = vmul.f32 %v3315, %v3332
      %v3355 = vmul.f32 %v3316, %v3332
      %v3356 = vmul.f32 %v3317, %v3332
      %v3357 = vmul.f32 %v3318, %v3332
      %v3358 = vmul.f32 %v3319, %v3332
      %v3359 = vmul.f32 %v3320, %v3332
      %v3360 = vmul.f32 %v3321, %v3332
      %v3361 = vmul.f32 %v3322, %v3332
      %v3362 = vmul.f32 %v3323, %v3332
      %v3363 = vmul.f32 %v3324, %v3332
      %v3364 = vmul.f32 %v3325, %v3332
      %v3365 = vmul.f32 %v3326, %v3332
      %3366 = vadd.xlane.f32.xlu0 %v3334
      %v3367 = vpop.xlane.xlu0 %3366
      %3368 = vadd.xlane.f32.xlu0 %v3335
      %v3369 = vpop.xlane.xlu0 %3368
      %3370 = vadd.xlane.f32.xlu0 %v3336
      %v3371 = vpop.xlane.xlu0 %3370
      %3372 = vadd.xlane.f32.xlu0 %v3337
      %v3373 = vpop.xlane.xlu0 %3372
      %3374 = vadd.xlane.f32.xlu0 %v3338
      %v3375 = vpop.xlane.xlu0 %3374
      %3376 = vadd.xlane.f32.xlu0 %v3339
      %v3377 = vpop.xlane.xlu0 %3376
      %3378 = vadd.xlane.f32.xlu0 %v3340
      %v3379 = vpop.xlane.xlu0 %3378
      %3380 = vadd.xlane.f32.xlu0 %v3341
      %v3381 = vpop.xlane.xlu0 %3380
      %3382 = vadd.xlane.f32.xlu0 %v3342
      %v3383 = vpop.xlane.xlu0 %3382
      %3384 = vadd.xlane.f32.xlu0 %v3343
      %v3385 = vpop.xlane.xlu0 %3384
      %3386 = vadd.xlane.f32.xlu0 %v3344
      %v3387 = vpop.xlane.xlu0 %3386
      %3388 = vadd.xlane.f32.xlu0 %v3345
      %v3389 = vpop.xlane.xlu0 %3388
      %3390 = vadd.xlane.f32.xlu0 %v3346
      %v3391 = vpop.xlane.xlu0 %3390
      %3392 = vadd.xlane.f32.xlu0 %v3347
      %v3393 = vpop.xlane.xlu0 %3392
      %3394 = vadd.xlane.f32.xlu0 %v3348
      %v3395 = vpop.xlane.xlu0 %3394
      %3396 = vadd.xlane.f32.xlu0 %v3349
      %v3397 = vpop.xlane.xlu0 %3396
      %3398 = vadd.xlane.f32.xlu0 %v3350
      %v3399 = vpop.xlane.xlu0 %3398
      %3400 = vadd.xlane.f32.xlu0 %v3351
      %v3401 = vpop.xlane.xlu0 %3400
      %3402 = vadd.xlane.f32.xlu0 %v3352
      %v3403 = vpop.xlane.xlu0 %3402
      %3404 = vadd.xlane.f32.xlu0 %v3353
      %v3405 = vpop.xlane.xlu0 %3404
      %3406 = vadd.xlane.f32.xlu0 %v3354
      %v3407 = vpop.xlane.xlu0 %3406
      %3408 = vadd.xlane.f32.xlu0 %v3355
      %v3409 = vpop.xlane.xlu0 %3408
      %3410 = vadd.xlane.f32.xlu0 %v3356
      %v3411 = vpop.xlane.xlu0 %3410
      %3412 = vadd.xlane.f32.xlu0 %v3357
      %v3413 = vpop.xlane.xlu0 %3412
      %3414 = vadd.xlane.f32.xlu0 %v3358
      %v3415 = vpop.xlane.xlu0 %3414
      %3416 = vadd.xlane.f32.xlu0 %v3359
      %v3417 = vpop.xlane.xlu0 %3416
      %3418 = vadd.xlane.f32.xlu0 %v3360
      %v3419 = vpop.xlane.xlu0 %3418
      %3420 = vadd.xlane.f32.xlu0 %v3361
      %v3421 = vpop.xlane.xlu0 %3420
      %3422 = vadd.xlane.f32.xlu0 %v3362
      %v3423 = vpop.xlane.xlu0 %3422
      %3424 = vadd.xlane.f32.xlu0 %v3363
      %v3425 = vpop.xlane.xlu0 %3424
      %3426 = vadd.xlane.f32.xlu0 %v3364
      %v3427 = vpop.xlane.xlu0 %3426
      %3428 = vadd.xlane.f32.xlu0 %v3365
      %v3429 = vpop.xlane.xlu0 %3428
      %v3430 = vld [vmem:[%s6] sm:$0xff]
      %v3431 = vld [vmem:[%s6 + $0x8] sm:$0xff]
      %v3432 = vld [vmem:[%s6 + $0x10] sm:$0xff]
      %v3433 = vld [vmem:[%s6 + $0x18] sm:$0xff]
      %v3434 = vld [vmem:[%s6 + $0x20] sm:$0xff]
      %v3435 = vld [vmem:[%s6 + $0x28] sm:$0xff]
      %v3436 = vld [vmem:[%s6 + $0x30] sm:$0xff]
      %v3437 = vld [vmem:[%s6 + $0x38] sm:$0xff]
      %v3438 = vld [vmem:[%s6 + $0x40] sm:$0xff]
      %v3439 = vld [vmem:[%s6 + $0x48] sm:$0xff]
      %v3440 = vld [vmem:[%s6 + $0x50] sm:$0xff]
      %v3441 = vld [vmem:[%s6 + $0x58] sm:$0xff]
      %v3442 = vld [vmem:[%s6 + $0x60] sm:$0xff]
      %v3443 = vld [vmem:[%s6 + $0x68] sm:$0xff]
      %v3444 = vld [vmem:[%s6 + $0x70] sm:$0xff]
      %v3445 = vld [vmem:[%s6 + $0x78] sm:$0xff]
      %v3446 = vld [vmem:[%s6 + $0x80] sm:$0xff]
      %v3447 = vld [vmem:[%s6 + $0x88] sm:$0xff]
      %v3448 = vld [vmem:[%s6 + $0x90] sm:$0xff]
      %v3449 = vld [vmem:[%s6 + $0x98] sm:$0xff]
      %v3450 = vld [vmem:[%s6 + $0xa0] sm:$0xff]
      %v3451 = vld [vmem:[%s6 + $0xa8] sm:$0xff]
      %v3452 = vld [vmem:[%s6 + $0xb0] sm:$0xff]
      %v3453 = vld [vmem:[%s6 + $0xb8] sm:$0xff]
      %v3454 = vld [vmem:[%s6 + $0xc0] sm:$0xff]
      %v3455 = vld [vmem:[%s6 + $0xc8] sm:$0xff]
      %v3456 = vld [vmem:[%s6 + $0xd0] sm:$0xff]
      %v3457 = vld [vmem:[%s6 + $0xd8] sm:$0xff]
      %v3458 = vld [vmem:[%s6 + $0xe0] sm:$0xff]
      %v3459 = vld [vmem:[%s6 + $0xe8] sm:$0xff]
      %v3460 = vld [vmem:[%s6 + $0xf0] sm:$0xff]
      %v3461 = vld [vmem:[%s6 + $0xf8] sm:$0xff]
      %v3462 = vld [vmem:[%s6 + $0x100] sm:$0xff]
      %v3463 = vld [vmem:[%s6 + $0x108] sm:$0xff]
      %v3464 = vld [vmem:[%s6 + $0x110] sm:$0xff]
      %v3465 = vld [vmem:[%s6 + $0x118] sm:$0xff]
      %v3466 = vld [vmem:[%s6 + $0x120] sm:$0xff]
      %v3467 = vld [vmem:[%s6 + $0x128] sm:$0xff]
      %v3468 = vld [vmem:[%s6 + $0x130] sm:$0xff]
      %v3469 = vld [vmem:[%s6 + $0x138] sm:$0xff]
      %v3470 = vld [vmem:[%s6 + $0x140] sm:$0xff]
      %v3471 = vld [vmem:[%s6 + $0x148] sm:$0xff]
      %v3472 = vld [vmem:[%s6 + $0x150] sm:$0xff]
      %v3473 = vld [vmem:[%s6 + $0x158] sm:$0xff]
      %v3474 = vld [vmem:[%s6 + $0x160] sm:$0xff]
      %v3475 = vld [vmem:[%s6 + $0x168] sm:$0xff]
      %v3476 = vld [vmem:[%s6 + $0x170] sm:$0xff]
      %v3477 = vld [vmem:[%s6 + $0x178] sm:$0xff]
      %v3478 = vld [vmem:[%s6 + $0x180] sm:$0xff]
      %v3479 = vld [vmem:[%s6 + $0x188] sm:$0xff]
      %v3480 = vld [vmem:[%s6 + $0x190] sm:$0xff]
      %v3481 = vld [vmem:[%s6 + $0x198] sm:$0xff]
      %v3482 = vld [vmem:[%s6 + $0x1a0] sm:$0xff]
      %v3483 = vld [vmem:[%s6 + $0x1a8] sm:$0xff]
      %v3484 = vld [vmem:[%s6 + $0x1b0] sm:$0xff]
      %v3485 = vld [vmem:[%s6 + $0x1b8] sm:$0xff]
      %v3486 = vld [vmem:[%s6 + $0x1c0] sm:$0xff]
      %v3487 = vld [vmem:[%s6 + $0x1c8] sm:$0xff]
      %v3488 = vld [vmem:[%s6 + $0x1d0] sm:$0xff]
      %v3489 = vld [vmem:[%s6 + $0x1d8] sm:$0xff]
      %v3490 = vld [vmem:[%s6 + $0x1e0] sm:$0xff]
      %v3491 = vld [vmem:[%s6 + $0x1e8] sm:$0xff]
      %v3492 = vld [vmem:[%s6 + $0x1f0] sm:$0xff]
      %v3493 = vld [vmem:[%s6 + $0x1f8] sm:$0xff]
      %v3494 = vld [vmem:[%s6 + $0x200] sm:$0xff]
      %v3495 = vld [vmem:[%s6 + $0x208] sm:$0xff]
      %v3496 = vld [vmem:[%s6 + $0x210] sm:$0xff]
      %v3497 = vld [vmem:[%s6 + $0x218] sm:$0xff]
      %v3498 = vld [vmem:[%s6 + $0x220] sm:$0xff]
      %v3499 = vld [vmem:[%s6 + $0x228] sm:$0xff]
      %v3500 = vld [vmem:[%s6 + $0x230] sm:$0xff]
      %v3501 = vld [vmem:[%s6 + $0x238] sm:$0xff]
      %v3502 = vld [vmem:[%s6 + $0x240] sm:$0xff]
      %v3503 = vld [vmem:[%s6 + $0x248] sm:$0xff]
      %v3504 = vld [vmem:[%s6 + $0x250] sm:$0xff]
      %v3505 = vld [vmem:[%s6 + $0x258] sm:$0xff]
      %v3506 = vld [vmem:[%s6 + $0x260] sm:$0xff]
      %v3507 = vld [vmem:[%s6 + $0x268] sm:$0xff]
      %v3508 = vld [vmem:[%s6 + $0x270] sm:$0xff]
      %v3509 = vld [vmem:[%s6 + $0x278] sm:$0xff]
      %v3510 = vld [vmem:[%s6 + $0x280] sm:$0xff]
      %v3511 = vld [vmem:[%s6 + $0x288] sm:$0xff]
      %v3512 = vld [vmem:[%s6 + $0x290] sm:$0xff]
      %v3513 = vld [vmem:[%s6 + $0x298] sm:$0xff]
      %v3514 = vld [vmem:[%s6 + $0x2a0] sm:$0xff]
      %v3515 = vld [vmem:[%s6 + $0x2a8] sm:$0xff]
      %v3516 = vld [vmem:[%s6 + $0x2b0] sm:$0xff]
      %v3517 = vld [vmem:[%s6 + $0x2b8] sm:$0xff]
      %v3518 = vld [vmem:[%s6 + $0x2c0] sm:$0xff]
      %v3519 = vld [vmem:[%s6 + $0x2c8] sm:$0xff]
      %v3520 = vld [vmem:[%s6 + $0x2d0] sm:$0xff]
      %v3521 = vld [vmem:[%s6 + $0x2d8] sm:$0xff]
      %v3522 = vld [vmem:[%s6 + $0x2e0] sm:$0xff]
      %v3523 = vld [vmem:[%s6 + $0x2e8] sm:$0xff]
      %v3524 = vld [vmem:[%s6 + $0x2f0] sm:$0xff]
      %v3525 = vld [vmem:[%s6 + $0x2f8] sm:$0xff]
      %v3526 = vld [vmem:[%s6 + $0x300] sm:$0xff]
      %v3527 = vld [vmem:[%s6 + $0x308] sm:$0xff]
      %v3528 = vld [vmem:[%s6 + $0x310] sm:$0xff]
      %v3529 = vld [vmem:[%s6 + $0x318] sm:$0xff]
      %v3530 = vld [vmem:[%s6 + $0x320] sm:$0xff]
      %v3531 = vld [vmem:[%s6 + $0x328] sm:$0xff]
      %v3532 = vld [vmem:[%s6 + $0x330] sm:$0xff]
      %v3533 = vld [vmem:[%s6 + $0x338] sm:$0xff]
      %v3534 = vld [vmem:[%s6 + $0x340] sm:$0xff]
      %v3535 = vld [vmem:[%s6 + $0x348] sm:$0xff]
      %v3536 = vld [vmem:[%s6 + $0x350] sm:$0xff]
      %v3537 = vld [vmem:[%s6 + $0x358] sm:$0xff]
      %v3538 = vld [vmem:[%s6 + $0x360] sm:$0xff]
      %v3539 = vld [vmem:[%s6 + $0x368] sm:$0xff]
      %v3540 = vld [vmem:[%s6 + $0x370] sm:$0xff]
      %v3541 = vld [vmem:[%s6 + $0x378] sm:$0xff]
      %v3542 = vld [vmem:[%s6 + $0x380] sm:$0xff]
      %v3543 = vld [vmem:[%s6 + $0x388] sm:$0xff]
      %v3544 = vld [vmem:[%s6 + $0x390] sm:$0xff]
      %v3545 = vld [vmem:[%s6 + $0x398] sm:$0xff]
      %v3546 = vld [vmem:[%s6 + $0x3a0] sm:$0xff]
      %v3547 = vld [vmem:[%s6 + $0x3a8] sm:$0xff]
      %v3548 = vld [vmem:[%s6 + $0x3b0] sm:$0xff]
      %v3549 = vld [vmem:[%s6 + $0x3b8] sm:$0xff]
      %v3550 = vld [vmem:[%s6 + $0x3c0] sm:$0xff]
      %v3551 = vld [vmem:[%s6 + $0x3c8] sm:$0xff]
      %v3552 = vld [vmem:[%s6 + $0x3d0] sm:$0xff]
      %v3553 = vld [vmem:[%s6 + $0x3d8] sm:$0xff]
      %v3554 = vld [vmem:[%s6 + $0x3e0] sm:$0xff]
      %v3555 = vld [vmem:[%s6 + $0x3e8] sm:$0xff]
      %v3556 = vld [vmem:[%s6 + $0x3f0] sm:$0xff]
      %v3557 = vld [vmem:[%s6 + $0x3f8] sm:$0xff]
      %v3558 = vld [vmem:[%s6 + $0x400] sm:$0xff]
      %v3559 = vld [vmem:[%s6 + $0x408] sm:$0xff]
      %v3560 = vld [vmem:[%s6 + $0x410] sm:$0xff]
      %v3561 = vld [vmem:[%s6 + $0x418] sm:$0xff]
      %v3562 = vld [vmem:[%s6 + $0x420] sm:$0xff]
      %v3563 = vld [vmem:[%s6 + $0x428] sm:$0xff]
      %v3564 = vld [vmem:[%s6 + $0x430] sm:$0xff]
      %v3565 = vld [vmem:[%s6 + $0x438] sm:$0xff]
      %v3566 = vld [vmem:[%s6 + $0x440] sm:$0xff]
      %v3567 = vld [vmem:[%s6 + $0x448] sm:$0xff]
      %v3568 = vld [vmem:[%s6 + $0x450] sm:$0xff]
      %v3569 = vld [vmem:[%s6 + $0x458] sm:$0xff]
      %v3570 = vld [vmem:[%s6 + $0x460] sm:$0xff]
      %v3571 = vld [vmem:[%s6 + $0x468] sm:$0xff]
      %v3572 = vld [vmem:[%s6 + $0x470] sm:$0xff]
      %v3573 = vld [vmem:[%s6 + $0x478] sm:$0xff]
      %v3574 = vld [vmem:[%s6 + $0x480] sm:$0xff]
      %v3575 = vld [vmem:[%s6 + $0x488] sm:$0xff]
      %v3576 = vld [vmem:[%s6 + $0x490] sm:$0xff]
      %v3577 = vld [vmem:[%s6 + $0x498] sm:$0xff]
      %v3578 = vld [vmem:[%s6 + $0x4a0] sm:$0xff]
      %v3579 = vld [vmem:[%s6 + $0x4a8] sm:$0xff]
      %v3580 = vld [vmem:[%s6 + $0x4b0] sm:$0xff]
      %v3581 = vld [vmem:[%s6 + $0x4b8] sm:$0xff]
      %v3582 = vld [vmem:[%s6 + $0x4c0] sm:$0xff]
      %v3583 = vld [vmem:[%s6 + $0x4c8] sm:$0xff]
      %v3584 = vld [vmem:[%s6 + $0x4d0] sm:$0xff]
      %v3585 = vld [vmem:[%s6 + $0x4d8] sm:$0xff]
      %v3586 = vld [vmem:[%s6 + $0x4e0] sm:$0xff]
      %v3587 = vld [vmem:[%s6 + $0x4e8] sm:$0xff]
      %v3588 = vld [vmem:[%s6 + $0x4f0] sm:$0xff]
      %v3589 = vld [vmem:[%s6 + $0x4f8] sm:$0xff]
      %v3590 = vld [vmem:[%s6 + $0x500] sm:$0xff]
      %v3591 = vld [vmem:[%s6 + $0x508] sm:$0xff]
      %v3592 = vld [vmem:[%s6 + $0x510] sm:$0xff]
      %v3593 = vld [vmem:[%s6 + $0x518] sm:$0xff]
      %v3594 = vld [vmem:[%s6 + $0x520] sm:$0xff]
      %v3595 = vld [vmem:[%s6 + $0x528] sm:$0xff]
      %v3596 = vld [vmem:[%s6 + $0x530] sm:$0xff]
      %v3597 = vld [vmem:[%s6 + $0x538] sm:$0xff]
      %v3598 = vld [vmem:[%s6 + $0x540] sm:$0xff]
      %v3599 = vld [vmem:[%s6 + $0x548] sm:$0xff]
      %v3600 = vld [vmem:[%s6 + $0x550] sm:$0xff]
      %v3601 = vld [vmem:[%s6 + $0x558] sm:$0xff]
      %v3602 = vld [vmem:[%s6 + $0x560] sm:$0xff]
      %v3603 = vld [vmem:[%s6 + $0x568] sm:$0xff]
      %v3604 = vld [vmem:[%s6 + $0x570] sm:$0xff]
      %v3605 = vld [vmem:[%s6 + $0x578] sm:$0xff]
      %v3606 = vld [vmem:[%s6 + $0x580] sm:$0xff]
      %v3607 = vld [vmem:[%s6 + $0x588] sm:$0xff]
      %v3608 = vld [vmem:[%s6 + $0x590] sm:$0xff]
      %v3609 = vld [vmem:[%s6 + $0x598] sm:$0xff]
      %v3610 = vld [vmem:[%s6 + $0x5a0] sm:$0xff]
      %v3611 = vld [vmem:[%s6 + $0x5a8] sm:$0xff]
      %v3612 = vld [vmem:[%s6 + $0x5b0] sm:$0xff]
      %v3613 = vld [vmem:[%s6 + $0x5b8] sm:$0xff]
      %v3614 = vld [vmem:[%s6 + $0x5c0] sm:$0xff]
      %v3615 = vld [vmem:[%s6 + $0x5c8] sm:$0xff]
      %v3616 = vld [vmem:[%s6 + $0x5d0] sm:$0xff]
      %v3617 = vld [vmem:[%s6 + $0x5d8] sm:$0xff]
      %v3618 = vld [vmem:[%s6 + $0x5e0] sm:$0xff]
      %v3619 = vld [vmem:[%s6 + $0x5e8] sm:$0xff]
      %v3620 = vld [vmem:[%s6 + $0x5f0] sm:$0xff]
      %v3621 = vld [vmem:[%s6 + $0x5f8] sm:$0xff]
      %v3622 = vld [vmem:[%s6 + $0x600] sm:$0xff]
      %v3623 = vld [vmem:[%s6 + $0x608] sm:$0xff]
      %v3624 = vld [vmem:[%s6 + $0x610] sm:$0xff]
      %v3625 = vld [vmem:[%s6 + $0x618] sm:$0xff]
      %v3626 = vld [vmem:[%s6 + $0x620] sm:$0xff]
      %v3627 = vld [vmem:[%s6 + $0x628] sm:$0xff]
      %v3628 = vld [vmem:[%s6 + $0x630] sm:$0xff]
      %v3629 = vld [vmem:[%s6 + $0x638] sm:$0xff]
      %v3630 = vld [vmem:[%s6 + $0x640] sm:$0xff]
      %v3631 = vld [vmem:[%s6 + $0x648] sm:$0xff]
      %v3632 = vld [vmem:[%s6 + $0x650] sm:$0xff]
      %v3633 = vld [vmem:[%s6 + $0x658] sm:$0xff]
      %v3634 = vld [vmem:[%s6 + $0x660] sm:$0xff]
      %v3635 = vld [vmem:[%s6 + $0x668] sm:$0xff]
      %v3636 = vld [vmem:[%s6 + $0x670] sm:$0xff]
      %v3637 = vld [vmem:[%s6 + $0x678] sm:$0xff]
      %v3638 = vld [vmem:[%s6 + $0x680] sm:$0xff]
      %v3639 = vld [vmem:[%s6 + $0x688] sm:$0xff]
      %v3640 = vld [vmem:[%s6 + $0x690] sm:$0xff]
      %v3641 = vld [vmem:[%s6 + $0x698] sm:$0xff]
      %v3642 = vld [vmem:[%s6 + $0x6a0] sm:$0xff]
      %v3643 = vld [vmem:[%s6 + $0x6a8] sm:$0xff]
      %v3644 = vld [vmem:[%s6 + $0x6b0] sm:$0xff]
      %v3645 = vld [vmem:[%s6 + $0x6b8] sm:$0xff]
      %v3646 = vld [vmem:[%s6 + $0x6c0] sm:$0xff]
      %v3647 = vld [vmem:[%s6 + $0x6c8] sm:$0xff]
      %v3648 = vld [vmem:[%s6 + $0x6d0] sm:$0xff]
      %v3649 = vld [vmem:[%s6 + $0x6d8] sm:$0xff]
      %v3650 = vld [vmem:[%s6 + $0x6e0] sm:$0xff]
      %v3651 = vld [vmem:[%s6 + $0x6e8] sm:$0xff]
      %v3652 = vld [vmem:[%s6 + $0x6f0] sm:$0xff]
      %v3653 = vld [vmem:[%s6 + $0x6f8] sm:$0xff]
      %v3654 = vld [vmem:[%s6 + $0x700] sm:$0xff]
      %v3655 = vld [vmem:[%s6 + $0x708] sm:$0xff]
      %v3656 = vld [vmem:[%s6 + $0x710] sm:$0xff]
      %v3657 = vld [vmem:[%s6 + $0x718] sm:$0xff]
      %v3658 = vld [vmem:[%s6 + $0x720] sm:$0xff]
      %v3659 = vld [vmem:[%s6 + $0x728] sm:$0xff]
      %v3660 = vld [vmem:[%s6 + $0x730] sm:$0xff]
      %v3661 = vld [vmem:[%s6 + $0x738] sm:$0xff]
      %v3662 = vld [vmem:[%s6 + $0x740] sm:$0xff]
      %v3663 = vld [vmem:[%s6 + $0x748] sm:$0xff]
      %v3664 = vld [vmem:[%s6 + $0x750] sm:$0xff]
      %v3665 = vld [vmem:[%s6 + $0x758] sm:$0xff]
      %v3666 = vld [vmem:[%s6 + $0x760] sm:$0xff]
      %v3667 = vld [vmem:[%s6 + $0x768] sm:$0xff]
      %v3668 = vld [vmem:[%s6 + $0x770] sm:$0xff]
      %v3669 = vld [vmem:[%s6 + $0x778] sm:$0xff]
      %v3670 = vld [vmem:[%s6 + $0x780] sm:$0xff]
      %v3671 = vld [vmem:[%s6 + $0x788] sm:$0xff]
      %v3672 = vld [vmem:[%s6 + $0x790] sm:$0xff]
      %v3673 = vld [vmem:[%s6 + $0x798] sm:$0xff]
      %v3674 = vld [vmem:[%s6 + $0x7a0] sm:$0xff]
      %v3675 = vld [vmem:[%s6 + $0x7a8] sm:$0xff]
      %v3676 = vld [vmem:[%s6 + $0x7b0] sm:$0xff]
      %v3677 = vld [vmem:[%s6 + $0x7b8] sm:$0xff]
      %v3678 = vld [vmem:[%s6 + $0x7c0] sm:$0xff]
      %v3679 = vld [vmem:[%s6 + $0x7c8] sm:$0xff]
      %v3680 = vld [vmem:[%s6 + $0x7d0] sm:$0xff]
      %v3681 = vld [vmem:[%s6 + $0x7d8] sm:$0xff]
      %v3682 = vld [vmem:[%s6 + $0x7e0] sm:$0xff]
      %v3683 = vld [vmem:[%s6 + $0x7e8] sm:$0xff]
      %v3684 = vld [vmem:[%s6 + $0x7f0] sm:$0xff]
      %v3685 = vld [vmem:[%s6 + $0x7f8] sm:$0xff]
      %v3686 = vld [vmem:[#allocation3] sm:$0x1]
      %3688 = vset.pattern.permute.xlu0 0
      %3689 = vperm.xlu0 %3688, %v3686
      %v3690 = vpop.permute.xlu0 %3689
      %v3692 = vlaneseq
      %v3693 = vshrl.u32 %v3692, 7
      %v3694 = vsub.s32 0, %v3693
      %v3695 = vrot.slane %v3690, %v3694
      %v3728 = vlaneseq
      %v3729 = vand.u32 %v3728, 127
      %v3730 = vlaneseq
      %v3731 = vshrl.u32 %v3730, 7
      %v3732 = vsub.s32 %v3729, %v3731
      %v3733 = vrot.slane %v3367, %v3732
      %v3734 = vadd.s32 %v3729, 4294967288
      %v3735 = vlaneseq
      %v3736 = vshrl.u32 %v3735, 7
      %v3737 = vsub.s32 %v3734, %v3736
      %v3738 = vrot.slane %v3369, %v3737
      %vm3739 = vcmask 130112
      %v3740 = vsel %vm3739, %v3738, %v3733
      %v3741 = vadd.s32 %v3729, 4294967280
      %v3742 = vlaneseq
      %v3743 = vshrl.u32 %v3742, 7
      %v3744 = vsub.s32 %v3741, %v3743
      %v3745 = vrot.slane %v3371, %v3744
      %vm3746 = vcmask 195712
      %v3747 = vsel %vm3746, %v3745, %v3740
      %v3748 = vadd.s32 %v3729, 4294967272
      %v3749 = vlaneseq
      %v3750 = vshrl.u32 %v3749, 7
      %v3751 = vsub.s32 %v3748, %v3750
      %v3752 = vrot.slane %v3373, %v3751
      %vm3753 = vcmask 261312
      %v3754 = vsel %vm3753, %v3752, %v3747
      %v3755 = vadd.s32 %v3729, 4294967264
      %v3756 = vlaneseq
      %v3757 = vshrl.u32 %v3756, 7
      %v3758 = vsub.s32 %v3755, %v3757
      %v3759 = vrot.slane %v3375, %v3758
      %vm3760 = vcmask 326912
      %v3761 = vsel %vm3760, %v3759, %v3754
      %v3762 = vadd.s32 %v3729, 4294967256
      %v3763 = vlaneseq
      %v3764 = vshrl.u32 %v3763, 7
      %v3765 = vsub.s32 %v3762, %v3764
      %v3766 = vrot.slane %v3377, %v3765
      %vm3767 = vcmask 392512
      %v3768 = vsel %vm3767, %v3766, %v3761
      %v3769 = vadd.s32 %v3729, 4294967248
      %v3770 = vlaneseq
      %v3771 = vshrl.u32 %v3770, 7
      %v3772 = vsub.s32 %v3769, %v3771
      %v3773 = vrot.slane %v3379, %v3772
      %vm3774 = vcmask 458112
      %v3775 = vsel %vm3774, %v3773, %v3768
      %v3776 = vadd.s32 %v3729, 4294967240
      %v3777 = vlaneseq
      %v3778 = vshrl.u32 %v3777, 7
      %v3779 = vsub.s32 %v3776, %v3778
      %v3780 = vrot.slane %v3381, %v3779
      %vm3781 = vcmask 523712
      %v3782 = vsel %vm3781, %v3780, %v3775
      %v3783 = vadd.s32 %v3729, 4294967232
      %v3784 = vlaneseq
      %v3785 = vshrl.u32 %v3784, 7
      %v3786 = vsub.s32 %v3783, %v3785
      %v3787 = vrot.slane %v3383, %v3786
      %vm3788 = vcmask 589312
      %v3789 = vsel %vm3788, %v3787, %v3782
      %v3790 = vadd.s32 %v3729, 4294967224
      %v3791 = vlaneseq
      %v3792 = vshrl.u32 %v3791, 7
      %v3793 = vsub.s32 %v3790, %v3792
      %v3794 = vrot.slane %v3385, %v3793
      %vm3795 = vcmask 654912
      %v3796 = vsel %vm3795, %v3794, %v3789
      %v3797 = vadd.s32 %v3729, 4294967216
      %v3798 = vlaneseq
      %v3799 = vshrl.u32 %v3798, 7
      %v3800 = vsub.s32 %v3797, %v3799
      %v3801 = vrot.slane %v3387, %v3800
      %vm3802 = vcmask 720512
      %v3803 = vsel %vm3802, %v3801, %v3796
      %v3804 = vadd.s32 %v3729, 4294967208
      %v3805 = vlaneseq
      %v3806 = vshrl.u32 %v3805, 7
      %v3807 = vsub.s32 %v3804, %v3806
      %v3808 = vrot.slane %v3389, %v3807
      %vm3809 = vcmask 786112
      %v3810 = vsel %vm3809, %v3808, %v3803
      %v3811 = vadd.s32 %v3729, 4294967200
      %v3812 = vlaneseq
      %v3813 = vshrl.u32 %v3812, 7
      %v3814 = vsub.s32 %v3811, %v3813
      %v3815 = vrot.slane %v3391, %v3814
      %vm3816 = vcmask 851712
      %v3817 = vsel %vm3816, %v3815, %v3810
      %v3818 = vadd.s32 %v3729, 4294967192
      %v3819 = vlaneseq
      %v3820 = vshrl.u32 %v3819, 7
      %v3821 = vsub.s32 %v3818, %v3820
      %v3822 = vrot.slane %v3393, %v3821
      %vm3823 = vcmask 917312
      %v3824 = vsel %vm3823, %v3822, %v3817
      %v3825 = vadd.s32 %v3729, 4294967184
      %v3826 = vlaneseq
      %v3827 = vshrl.u32 %v3826, 7
      %v3828 = vsub.s32 %v3825, %v3827
      %v3829 = vrot.slane %v3395, %v3828
      %vm3830 = vcmask 982912
      %v3831 = vsel %vm3830, %v3829, %v3824
      %v3832 = vadd.s32 %v3729, 4294967176
      %v3833 = vlaneseq
      %v3834 = vshrl.u32 %v3833, 7
      %v3835 = vsub.s32 %v3832, %v3834
      %v3836 = vrot.slane %v3397, %v3835
      %vm3837 = vcmask 1048512
      %v3838 = vsel %vm3837, %v3836, %v3831
      %v3839 = vlaneseq
      %v3840 = vshrl.u32 %v3839, 7
      %v3841 = vsub.s32 %v3729, %v3840
      %v3842 = vrot.slane %v3399, %v3841
      %v3843 = vlaneseq
      %v3844 = vshrl.u32 %v3843, 7
      %v3845 = vsub.s32 %v3734, %v3844
      %v3846 = vrot.slane %v3401, %v3845
      %v3847 = vsel %vm3739, %v3846, %v3842
      %v3848 = vlaneseq
      %v3849 = vshrl.u32 %v3848, 7
      %v3850 = vsub.s32 %v3741, %v3849
      %v3851 = vrot.slane %v3403, %v3850
      %v3852 = vsel %vm3746, %v3851, %v3847
      %v3853 = vlaneseq
      %v3854 = vshrl.u32 %v3853, 7
      %v3855 = vsub.s32 %v3748, %v3854
      %v3856 = vrot.slane %v3405, %v3855
      %v3857 = vsel %vm3753, %v3856, %v3852
      %v3858 = vlaneseq
      %v3859 = vshrl.u32 %v3858, 7
      %v3860 = vsub.s32 %v3755, %v3859
      %v3861 = vrot.slane %v3407, %v3860
      %v3862 = vsel %vm3760, %v3861, %v3857
      %v3863 = vlaneseq
      %v3864 = vshrl.u32 %v3863, 7
      %v3865 = vsub.s32 %v3762, %v3864
      %v3866 = vrot.slane %v3409, %v3865
      %v3867 = vsel %vm3767, %v3866, %v3862
      %v3868 = vlaneseq
      %v3869 = vshrl.u32 %v3868, 7
      %v3870 = vsub.s32 %v3769, %v3869
      %v3871 = vrot.slane %v3411, %v3870
      %v3872 = vsel %vm3774, %v3871, %v3867
      %v3873 = vlaneseq
      %v3874 = vshrl.u32 %v3873, 7
      %v3875 = vsub.s32 %v3776, %v3874
      %v3876 = vrot.slane %v3413, %v3875
      %v3877 = vsel %vm3781, %v3876, %v3872
      %v3878 = vlaneseq
      %v3879 = vshrl.u32 %v3878, 7
      %v3880 = vsub.s32 %v3783, %v3879
      %v3881 = vrot.slane %v3415, %v3880
      %v3882 = vsel %vm3788, %v3881, %v3877
      %v3883 = vlaneseq
      %v3884 = vshrl.u32 %v3883, 7
      %v3885 = vsub.s32 %v3790, %v3884
      %v3886 = vrot.slane %v3417, %v3885
      %v3887 = vsel %vm3795, %v3886, %v3882
      %v3888 = vlaneseq
      %v3889 = vshrl.u32 %v3888, 7
      %v3890 = vsub.s32 %v3797, %v3889
      %v3891 = vrot.slane %v3419, %v3890
      %v3892 = vsel %vm3802, %v3891, %v3887
      %v3893 = vlaneseq
      %v3894 = vshrl.u32 %v3893, 7
      %v3895 = vsub.s32 %v3804, %v3894
      %v3896 = vrot.slane %v3421, %v3895
      %v3897 = vsel %vm3809, %v3896, %v3892
      %v3898 = vlaneseq
      %v3899 = vshrl.u32 %v3898, 7
      %v3900 = vsub.s32 %v3811, %v3899
      %v3901 = vrot.slane %v3423, %v3900
      %v3902 = vsel %vm3816, %v3901, %v3897
      %v3903 = vlaneseq
      %v3904 = vshrl.u32 %v3903, 7
      %v3905 = vsub.s32 %v3818, %v3904
      %v3906 = vrot.slane %v3425, %v3905
      %v3907 = vsel %vm3823, %v3906, %v3902
      %v3908 = vlaneseq
      %v3909 = vshrl.u32 %v3908, 7
      %v3910 = vsub.s32 %v3825, %v3909
      %v3911 = vrot.slane %v3427, %v3910
      %v3912 = vsel %vm3830, %v3911, %v3907
      %v3913 = vlaneseq
      %v3914 = vshrl.u32 %v3913, 7
      %v3915 = vsub.s32 %v3832, %v3914
      %v3916 = vrot.slane %v3429, %v3915
      %v3917 = vsel %vm3837, %v3916, %v3912
      %3920 = vmatprep.subr.mxu0 %v3431
      %3921 = vmatpush1.msra.mxu0 %v3430
      %3922 = vmatprep.subr.mxu0 %v3439
      %3923 = vmatpush1.msra.mxu0 %v3438
      %3924 = vmatprep.subr.mxu0 %v3447
      %3925 = vmatpush1.msra.mxu0 %v3446
      %3926 = vmatprep.subr.mxu0 %v3455
      %3927 = vmatpush1.msra.mxu0 %v3454
      %3928 = vmatprep.subr.mxu0 %v3463
      %3929 = vmatpush1.msra.mxu0 %v3462
      %3930 = vmatprep.subr.mxu0 %v3471
      %3931 = vmatpush1.msra.mxu0 %v3470
      %3932 = vmatprep.subr.mxu0 %v3479
      %3933 = vmatpush1.msra.mxu0 %v3478
      %3934 = vmatprep.subr.mxu0 %v3487
      %3935 = vmatpush1.msra.mxu0 %v3486
      %3936 = vmatprep.subr.mxu0 %v3495
      %3937 = vmatpush1.msra.mxu0 %v3494
      %3938 = vmatprep.subr.mxu0 %v3503
      %3939 = vmatpush1.msra.mxu0 %v3502
      %3940 = vmatprep.subr.mxu0 %v3511
      %3941 = vmatpush1.msra.mxu0 %v3510
      %3942 = vmatprep.subr.mxu0 %v3519
      %3943 = vmatpush1.msra.mxu0 %v3518
      %3944 = vmatprep.subr.mxu0 %v3527
      %3945 = vmatpush1.msra.mxu0 %v3526
      %3946 = vmatprep.subr.mxu0 %v3535
      %3947 = vmatpush1.msra.mxu0 %v3534
      %3948 = vmatprep.subr.mxu0 %v3543
      %3949 = vmatpush1.msra.mxu0 %v3542
      %3950 = vmatprep.subr.mxu0 %v3551
      %3951 = vmatpush1.msra.mxu0 %v3550
      %3952 = vmatprep.subr.mxu0 %v3559
      %3953 = vmatpush1.msra.mxu0 %v3558
      %3954 = vmatprep.subr.mxu0 %v3567
      %3955 = vmatpush1.msra.mxu0 %v3566
      %3956 = vmatprep.subr.mxu0 %v3575
      %3957 = vmatpush1.msra.mxu0 %v3574
      %3958 = vmatprep.subr.mxu0 %v3583
      %3959 = vmatpush1.msra.mxu0 %v3582
      %3960 = vmatprep.subr.mxu0 %v3591
      %3961 = vmatpush1.msra.mxu0 %v3590
      %3962 = vmatprep.subr.mxu0 %v3599
      %3963 = vmatpush1.msra.mxu0 %v3598
      %3964 = vmatprep.subr.mxu0 %v3607
      %3965 = vmatpush1.msra.mxu0 %v3606
      %3966 = vmatprep.subr.mxu0 %v3615
      %3967 = vmatpush1.msra.mxu0 %v3614
      %3968 = vmatprep.subr.mxu0 %v3623
      %3969 = vmatpush1.msra.mxu0 %v3622
      %3970 = vmatprep.subr.mxu0 %v3631
      %3971 = vmatpush1.msra.mxu0 %v3630
      %3972 = vmatprep.subr.mxu0 %v3639
      %3973 = vmatpush1.msra.mxu0 %v3638
      %3974 = vmatprep.subr.mxu0 %v3647
      %3975 = vmatpush1.msra.mxu0 %v3646
      %3976 = vmatprep.subr.mxu0 %v3655
      %3977 = vmatpush1.msra.mxu0 %v3654
      %3978 = vmatprep.subr.mxu0 %v3663
      %3979 = vmatpush1.msra.mxu0 %v3662
      %3980 = vmatprep.subr.mxu0 %v3671
      %3981 = vmatpush1.msra.mxu0 %v3670
      %3982 = vmatprep.subr.mxu0 %v3679
      %3983 = vmatpush1.msra.mxu0 %v3678
      %3984 = vmatprep.mubr.f32.mxu0 %v3917
      %3985 = vmatmul.mubr.f32.gmra.mrb[0].mxu0 %v3838
      %v3986 = vpop.f32.mrb[0].mxu0
      %v3987 = vadd.f32 %v3695, %v3986
      %v3988 = vpop.f32.mrb[0].mxu0
      %v3989 = vadd.f32 %v3695, %v3988
      %3990 = vdwg.mxu0
      %3991 = vmatprep.subr.mxu0 %v3433
      %3992 = vmatpush1.msra.mxu0 %v3432
      %3993 = vmatprep.subr.mxu0 %v3441
      %3994 = vmatpush1.msra.mxu0 %v3440
      %3995 = vmatprep.subr.mxu0 %v3449
      %3996 = vmatpush1.msra.mxu0 %v3448
      %3997 = vmatprep.subr.mxu0 %v3457
      %3998 = vmatpush1.msra.mxu0 %v3456
      %3999 = vmatprep.subr.mxu0 %v3465
      %4000 = vmatpush1.msra.mxu0 %v3464
      %4001 = vmatprep.subr.mxu0 %v3473
      %4002 = vmatpush1.msra.mxu0 %v3472
      %4003 = vmatprep.subr.mxu0 %v3481
      %4004 = vmatpush1.msra.mxu0 %v3480
      %4005 = vmatprep.subr.mxu0 %v3489
      %4006 = vmatpush1.msra.mxu0 %v3488
      %4007 = vmatprep.subr.mxu0 %v3497
      %4008 = vmatpush1.msra.mxu0 %v3496
      %4009 = vmatprep.subr.mxu0 %v3505
      %4010 = vmatpush1.msra.mxu0 %v3504
      %4011 = vmatprep.subr.mxu0 %v3513
      %4012 = vmatpush1.msra.mxu0 %v3512
      %4013 = vmatprep.subr.mxu0 %v3521
      %4014 = vmatpush1.msra.mxu0 %v3520
      %4015 = vmatprep.subr.mxu0 %v3529
      %4016 = vmatpush1.msra.mxu0 %v3528
      %4017 = vmatprep.subr.mxu0 %v3537
      %4018 = vmatpush1.msra.mxu0 %v3536
      %4019 = vmatprep.subr.mxu0 %v3545
      %4020 = vmatpush1.msra.mxu0 %v3544
      %4021 = vmatprep.subr.mxu0 %v3553
      %4022 = vmatpush1.msra.mxu0 %v3552
      %4023 = vmatprep.subr.mxu0 %v3561
      %4024 = vmatpush1.msra.mxu0 %v3560
      %4025 = vmatprep.subr.mxu0 %v3569
      %4026 = vmatpush1.msra.mxu0 %v3568
      %4027 = vmatprep.subr.mxu0 %v3577
      %4028 = vmatpush1.msra.mxu0 %v3576
      %4029 = vmatprep.subr.mxu0 %v3585
      %4030 = vmatpush1.msra.mxu0 %v3584
      %4031 = vmatprep.subr.mxu0 %v3593
      %4032 = vmatpush1.msra.mxu0 %v3592
      %4033 = vmatprep.subr.mxu0 %v3601
      %4034 = vmatpush1.msra.mxu0 %v3600
      %4035 = vmatprep.subr.mxu0 %v3609
      %4036 = vmatpush1.msra.mxu0 %v3608
      %4037 = vmatprep.subr.mxu0 %v3617
      %4038 = vmatpush1.msra.mxu0 %v3616
      %4039 = vmatprep.subr.mxu0 %v3625
      %4040 = vmatpush1.msra.mxu0 %v3624
      %4041 = vmatprep.subr.mxu0 %v3633
      %4042 = vmatpush1.msra.mxu0 %v3632
      %4043 = vmatprep.subr.mxu0 %v3641
      %4044 = vmatpush1.msra.mxu0 %v3640
      %4045 = vmatprep.subr.mxu0 %v3649
      %4046 = vmatpush1.msra.mxu0 %v3648
      %4047 = vmatprep.subr.mxu0 %v3657
      %4048 = vmatpush1.msra.mxu0 %v3656
      %4049 = vmatprep.subr.mxu0 %v3665
      %4050 = vmatpush1.msra.mxu0 %v3664
      %4051 = vmatprep.subr.mxu0 %v3673
      %4052 = vmatpush1.msra.mxu0 %v3672
      %4053 = vmatprep.subr.mxu0 %v3681
      %4054 = vmatpush1.msra.mxu0 %v3680
      %4055 = vmatprep.mubr.f32.mxu0 %v3917
      %4056 = vmatmul.mubr.f32.gmra.mrb[0].mxu0 %v3838
      %v4057 = vpop.f32.mrb[0].mxu0
      %v4058 = vadd.f32 %v3695, %v4057
      %v4059 = vpop.f32.mrb[0].mxu0
      %v4060 = vadd.f32 %v3695, %v4059
      %4061 = vdwg.mxu0
      %4062 = vmatprep.subr.mxu0 %v3435
      %4063 = vmatpush1.msra.mxu0 %v3434
      %4064 = vmatprep.subr.mxu0 %v3443
      %4065 = vmatpush1.msra.mxu0 %v3442
      %4066 = vmatprep.subr.mxu0 %v3451
      %4067 = vmatpush1.msra.mxu0 %v3450
      %4068 = vmatprep.subr.mxu0 %v3459
      %4069 = vmatpush1.msra.mxu0 %v3458
      %4070 = vmatprep.subr.mxu0 %v3467
      %4071 = vmatpush1.msra.mxu0 %v3466
      %4072 = vmatprep.subr.mxu0 %v3475
      %4073 = vmatpush1.msra.mxu0 %v3474
      %4074 = vmatprep.subr.mxu0 %v3483
      %4075 = vmatpush1.msra.mxu0 %v3482
      %4076 = vmatprep.subr.mxu0 %v3491
      %4077 = vmatpush1.msra.mxu0 %v3490
      %4078 = vmatprep.subr.mxu0 %v3499
      %4079 = vmatpush1.msra.mxu0 %v3498
      %4080 = vmatprep.subr.mxu0 %v3507
      %4081 = vmatpush1.msra.mxu0 %v3506
      %4082 = vmatprep.subr.mxu0 %v3515
      %4083 = vmatpush1.msra.mxu0 %v3514
      %4084 = vmatprep.subr.mxu0 %v3523
      %4085 = vmatpush1.msra.mxu0 %v3522
      %4086 = vmatprep.subr.mxu0 %v3531
      %4087 = vmatpush1.msra.mxu0 %v3530
      %4088 = vmatprep.subr.mxu0 %v3539
      %4089 = vmatpush1.msra.mxu0 %v3538
      %4090 = vmatprep.subr.mxu0 %v3547
      %4091 = vmatpush1.msra.mxu0 %v3546
      %4092 = vmatprep.subr.mxu0 %v3555
      %4093 = vmatpush1.msra.mxu0 %v3554
      %4094 = vmatprep.subr.mxu0 %v3563
      %4095 = vmatpush1.msra.mxu0 %v3562
      %4096 = vmatprep.subr.mxu0 %v3571
      %4097 = vmatpush1.msra.mxu0 %v3570
      %4098 = vmatprep.subr.mxu0 %v3579
      %4099 = vmatpush1.msra.mxu0 %v3578
      %4100 = vmatprep.subr.mxu0 %v3587
      %4101 = vmatpush1.msra.mxu0 %v3586
      %4102 = vmatprep.subr.mxu0 %v3595
      %4103 = vmatpush1.msra.mxu0 %v3594
      %4104 = vmatprep.subr.mxu0 %v3603
      %4105 = vmatpush1.msra.mxu0 %v3602
      %4106 = vmatprep.subr.mxu0 %v3611
      %4107 = vmatpush1.msra.mxu0 %v3610
      %4108 = vmatprep.subr.mxu0 %v3619
      %4109 = vmatpush1.msra.mxu0 %v3618
      %4110 = vmatprep.subr.mxu0 %v3627
      %4111 = vmatpush1.msra.mxu0 %v3626
      %4112 = vmatprep.subr.mxu0 %v3635
      %4113 = vmatpush1.msra.mxu0 %v3634
      %4114 = vmatprep.subr.mxu0 %v3643
      %4115 = vmatpush1.msra.mxu0 %v3642
      %4116 = vmatprep.subr.mxu0 %v3651
      %4117 = vmatpush1.msra.mxu0 %v3650
      %4118 = vmatprep.subr.mxu0 %v3659
      %4119 = vmatpush1.msra.mxu0 %v3658
      %4120 = vmatprep.subr.mxu0 %v3667
      %4121 = vmatpush1.msra.mxu0 %v3666
      %4122 = vmatprep.subr.mxu0 %v3675
      %4123 = vmatpush1.msra.mxu0 %v3674
      %4124 = vmatprep.subr.mxu0 %v3683
      %4125 = vmatpush1.msra.mxu0 %v3682
      %4126 = vmatprep.mubr.f32.mxu0 %v3917
      %4127 = vmatmul.mubr.f32.gmra.mrb[0].mxu0 %v3838
      %v4128 = vpop.f32.mrb[0].mxu0
      %v4129 = vadd.f32 %v3695, %v4128
      %v4130 = vpop.f32.mrb[0].mxu0
      %v4131 = vadd.f32 %v3695, %v4130
      %4132 = vdwg.mxu0
      %4133 = vmatprep.subr.mxu0 %v3437
      %4134 = vmatpush1.msra.mxu0 %v3436
      %4135 = vmatprep.subr.mxu0 %v3445
      %4136 = vmatpush1.msra.mxu0 %v3444
      %4137 = vmatprep.subr.mxu0 %v3453
      %4138 = vmatpush1.msra.mxu0 %v3452
      %4139 = vmatprep.subr.mxu0 %v3461
      %4140 = vmatpush1.msra.mxu0 %v3460
      %4141 = vmatprep.subr.mxu0 %v3469
      %4142 = vmatpush1.msra.mxu0 %v3468
      %4143 = vmatprep.subr.mxu0 %v3477
      %4144 = vmatpush1.msra.mxu0 %v3476
      %4145 = vmatprep.subr.mxu0 %v3485
      %4146 = vmatpush1.msra.mxu0 %v3484
      %4147 = vmatprep.subr.mxu0 %v3493
      %4148 = vmatpush1.msra.mxu0 %v3492
      %4149 = vmatprep.subr.mxu0 %v3501
      %4150 = vmatpush1.msra.mxu0 %v3500
      %4151 = vmatprep.subr.mxu0 %v3509
      %4152 = vmatpush1.msra.mxu0 %v3508
      %4153 = vmatprep.subr.mxu0 %v3517
      %4154 = vmatpush1.msra.mxu0 %v3516
      %4155 = vmatprep.subr.mxu0 %v3525
      %4156 = vmatpush1.msra.mxu0 %v3524
      %4157 = vmatprep.subr.mxu0 %v3533
      %4158 = vmatpush1.msra.mxu0 %v3532
      %4159 = vmatprep.subr.mxu0 %v3541
      %4160 = vmatpush1.msra.mxu0 %v3540
      %4161 = vmatprep.subr.mxu0 %v3549
      %4162 = vmatpush1.msra.mxu0 %v3548
      %4163 = vmatprep.subr.mxu0 %v3557
      %4164 = vmatpush1.msra.mxu0 %v3556
      %4165 = vmatprep.subr.mxu0 %v3565
      %4166 = vmatpush1.msra.mxu0 %v3564
      %4167 = vmatprep.subr.mxu0 %v3573
      %4168 = vmatpush1.msra.mxu0 %v3572
      %4169 = vmatprep.subr.mxu0 %v3581
      %4170 = vmatpush1.msra.mxu0 %v3580
      %4171 = vmatprep.subr.mxu0 %v3589
      %4172 = vmatpush1.msra.mxu0 %v3588
      %4173 = vmatprep.subr.mxu0 %v3597
      %4174 = vmatpush1.msra.mxu0 %v3596
      %4175 = vmatprep.subr.mxu0 %v3605
      %4176 = vmatpush1.msra.mxu0 %v3604
      %4177 = vmatprep.subr.mxu0 %v3613
      %4178 = vmatpush1.msra.mxu0 %v3612
      %4179 = vmatprep.subr.mxu0 %v3621
      %4180 = vmatpush1.msra.mxu0 %v3620
      %4181 = vmatprep.subr.mxu0 %v3629
      %4182 = vmatpush1.msra.mxu0 %v3628
      %4183 = vmatprep.subr.mxu0 %v3637
      %4184 = vmatpush1.msra.mxu0 %v3636
      %4185 = vmatprep.subr.mxu0 %v3645
      %4186 = vmatpush1.msra.mxu0 %v3644
      %4187 = vmatprep.subr.mxu0 %v3653
      %4188 = vmatpush1.msra.mxu0 %v3652
      %4189 = vmatprep.subr.mxu0 %v3661
      %4190 = vmatpush1.msra.mxu0 %v3660
      %4191 = vmatprep.subr.mxu0 %v3669
      %4192 = vmatpush1.msra.mxu0 %v3668
      %4193 = vmatprep.subr.mxu0 %v3677
      %4194 = vmatpush1.msra.mxu0 %v3676
      %4195 = vmatprep.subr.mxu0 %v3685
      %4196 = vmatpush1.msra.mxu0 %v3684
      %4197 = vmatprep.mubr.f32.mxu0 %v3917
      %4198 = vmatmul.mubr.f32.gmra.mrb[0].mxu0 %v3838
      %v4199 = vpop.f32.mrb[0].mxu0
      %v4200 = vadd.f32 %v3695, %v4199
      %v4201 = vpop.f32.mrb[0].mxu0
      %v4202 = vadd.f32 %v3695, %v4201
      %4203 = vdwg.mxu0
      %v4212 = vcombine.low %v3987, %v3989
      %v4213 = vcombine.low %v4058, %v4060
      %v4214 = vcombine.low %v4129, %v4131
      %v4215 = vcombine.low %v4200, %v4202
      %v4217 = vunpack.c.l.s4 1966171168
      %v4218 = vunpack.c.0.s8 %v4217
      %v4219 = vlaneseq
      %v4220 = vshrl.u32 %v4219, 7
      %v4221 = vsub.s32 %v4218, %v4220
      %v4222 = vrot.slane %v4212, %v4221
      %v4224 = vunpack.c.l.s4 1966171168
      %v4225 = vunpack.c.0.s8 %v4224
      %v4226 = vlaneseq
      %v4227 = vshrl.u32 %v4226, 7
      %v4228 = vsub.s32 %v4225, %v4227
      %v4229 = vrot.slane %v4213, %v4228
      %v4231 = vunpack.c.l.s4 1966171168
      %v4232 = vunpack.c.0.s8 %v4231
      %v4233 = vlaneseq
      %v4234 = vshrl.u32 %v4233, 7
      %v4235 = vsub.s32 %v4232, %v4234
      %v4236 = vrot.slane %v4214, %v4235
      %v4238 = vunpack.c.l.s4 1966171168
      %v4239 = vunpack.c.0.s8 %v4238
      %v4240 = vlaneseq
      %v4241 = vshrl.u32 %v4240, 7
      %v4242 = vsub.s32 %v4239, %v4241
      %v4243 = vrot.slane %v4215, %v4242
      %v4244 = vcombine.low %v4222, %v4229
      %v4245 = vcombine.low %v4236, %v4243
      %v4247 = vunpack.c.l.s4 1966171168
      %v4248 = vunpack.c.0.s8 %v4247
      %v4249 = vlaneseq
      %v4250 = vshrl.u32 %v4249, 7
      %v4251 = vsub.s32 %v4248, %v4250
      %v4252 = vrot.slane %v4244, %v4251
      %v4254 = vunpack.c.l.s4 1966171168
      %v4255 = vunpack.c.0.s8 %v4254
      %v4256 = vlaneseq
      %v4257 = vshrl.u32 %v4256, 7
      %v4258 = vsub.s32 %v4255, %v4257
      %v4259 = vrot.slane %v4245, %v4258
      %v4260 = vcombine.low %v4252, %v4259
      %4262 = vst [vmem:[%s278] sm:$0xff] %v4260
      %p4263 = scmp.lt.s32.totalorder %s20, 1
      %s4264 = scalar_select %p4263, %s20, 1
      %s4265 = smul.addr %s4264, 8
      %s4266 = scalar_lea.vmem %s7, %s4265
      // Predicated region
      $region49: #{out_block_forward.1} parent=47 // pred_check
        %p4267 = pneg %p190
      $region50: #{out_block_forward.1} parent=47 // pred_check_branch
        %4269 = sbr.rel (%p4267) target = $region52
      $region51: #{out_block_forward.1} parent=47 // pred_region
        _
      $region52: #{out_block_forward.1} parent=47 // pred_fallthru
        _
    $region48: #{out_block_forward.1} parent=5 // pred_fallthru
      _
    %p4270 = scmp.le.s32.totalorder 2, %s15
    // Predicated region
    $region53: #{out_block_forward.1} parent=5 // pred_check
      %p4271 = pneg %p4270
    $region54: #{out_block_forward.1} parent=5 // pred_check_branch
      %4273 = sbr.rel (%p4271) target = $region56
    $region55: #{out_block_forward.1} parent=5 // pred_region
      %s4274 = ssub.s32 %s15, 2
      // Predicated region
      $region57: #{out_block_forward.1} parent=55 // pred_check
        %p4275 = pneg %p196
      $region58: #{out_block_forward.1} parent=55 // pred_check_branch
        %4277 = sbr.rel (%p4275) target = $region60
      $region59: #{out_block_forward.1} parent=55 // pred_region
        %p4278 = scmp.lt.s32.totalorder %s21, 1
        %s4279 = scalar_select %p4278, %s21, 1
        %s4280 = smul.addr %s4279, 8
        %s4281 = scalar_lea.vmem %s7, %s4280
      $region60: #{out_block_forward.1} parent=55 // pred_fallthru
        _
    $region56: #{out_block_forward.1} parent=5 // pred_fallthru
      _
  $region6: #{out_block_forward.1} parent=0 // loop_footer
    %s19 = sadd.s32 1, %s15
  $region7: #{out_block_forward.1} parent=0 // loop_footer_branch
    %14 = sbr.rel target = $region3
  $region8: #{out_block_forward.1} parent=0 // loop_exit
    _

</llo_original>
